<compile_context>
chip_gen: v7x
topology: tpu7x:2x2x1
jax: 0.10.0
libtpu: 0.0.40
codegen_flags: <defaults>
</compile_context>

<pallas_src>
import numpy as np

import jax
import jax.numpy as jnp
from jax.experimental import pallas as pl
from jax.experimental.pallas import tpu as pltpu

BATCH_TILE = 8  # images per grid step (multiple of 8 for sublane alignment)


# ---------------------------------------------------------------------------
# Fused forward kernel (one batch tile per grid step)
# ---------------------------------------------------------------------------
def _fused_cnn_kernel(x_ref, a1_ref, b1t_ref, a2_ref, b2t_ref, rsel_ref,
                      qsel_ref, g_ref, fb1_ref, w3_ref, b3_ref, out_ref):
    B = x_ref.shape[0]
    x = x_ref[...]                                        # (B, 28, 28) f32

    # --- conv1 (5x5, 1->10): 5 row-shifted banded matmuls ------------------
    # y1 rows: b*24 + oh ; lanes: parity*120 + ow'*10 + oc  (ow = 2*ow'+parity)
    y1 = jnp.zeros((B * 24, 240), jnp.float32)
    for kh in range(5):
        rows = x[:, kh:kh + 24, :].reshape(B * 24, 28)    # (B*24, 28)
        y1 = y1 + jnp.dot(rows, a1_ref[kh],
                          preferred_element_type=jnp.float32)
    y1 = y1 + b1t_ref[...]                                # (1,240) bias

    # --- 2x2 max-pool + ReLU (width = lane halves, height = row pairs) -----
    zw = jnp.maximum(y1[:, :120], y1[:, 120:])            # (B*24, 120)
    m1 = jnp.maximum(zw[:-1, :], zw[1:, :])               # (B*24-1, 120)
    r1 = jnp.maximum(m1, 0.0)                             # valid at even rows

    # --- conv2 (5x5, 10->20): row-select (pool rows + kh shift folded into
    #     precomputed 0/1 selection matrices) then banded matmul ------------
    y2 = jnp.zeros((B * 8, 160), jnp.float32)
    for kh2 in range(5):
        sel = jnp.dot(rsel_ref[kh2], r1,
                      preferred_element_type=jnp.float32)  # (B*8, 120)
        y2 = y2 + jnp.dot(sel, a2_ref[kh2],
                          preferred_element_type=jnp.float32)
    y2 = y2 + b2t_ref[...]                                # (1,160) bias
    # TODO(synk): Dropout2d is identity in eval mode; training-mode channel drop not implemented.

    # --- 2x2 max-pool + ReLU ------------------------------------------------
    zw2 = jnp.maximum(y2[:, :80], y2[:, 80:])             # (B*8, 80)
    m2 = jnp.maximum(zw2[:-1, :], zw2[1:, :])             # (B*8-1, 80)
    r2 = jnp.maximum(m2, 0.0)

    # --- fc1 (320->50) with NCHW-flatten permutation folded into G ---------
    h1 = jnp.zeros((B, 50), jnp.float32)
    for h in range(4):
        selh = jnp.dot(qsel_ref[h], r2,
                       preferred_element_type=jnp.float32)  # (B, 80)
        h1 = h1 + jnp.dot(selh, g_ref[h],
                          preferred_element_type=jnp.float32)
    h1 = jnp.maximum(h1 + fb1_ref[...], 0.0)
    # TODO(synk): F.dropout is identity in eval mode; training-mode dropout not implemented.

    # --- fc2 (50->10) + log_softmax -----------------------------------------
    z = jnp.dot(h1, w3_ref[...], preferred_element_type=jnp.float32)
    z = z + b3_ref[...]
    z = z - jnp.max(z, axis=-1, keepdims=True)
    out_ref[...] = z - jnp.log(jnp.sum(jnp.exp(z), axis=-1, keepdims=True))


# ---------------------------------------------------------------------------
# Parameter preparation (done once, outside the jitted forward)
# ---------------------------------------------------------------------------
def prepare_kernel_params(params, batch_tile=BATCH_TILE):
    B = batch_tile
    w1 = np.asarray(params["conv1_w"], np.float32)   # (10, 1, 5, 5)
    b1 = np.asarray(params["conv1_b"], np.float32)
    w2 = np.asarray(params["conv2_w"], np.float32)   # (20, 10, 5, 5)
    b2 = np.asarray(params["conv2_b"], np.float32)
    f1w = np.asarray(params["fc1_w"], np.float32)    # (50, 320)
    f1b = np.asarray(params["fc1_b"], np.float32)
    f2w = np.asarray(params["fc2_w"], np.float32)    # (10, 50)
    f2b = np.asarray(params["fc2_b"], np.float32)

    # conv1 banded matrices: (5, 28, 240); out lane = parity*120 + ow'*10 + oc
    A1 = np.zeros((5, 28, 240), np.float32)
    for kh in range(5):
        for parity in range(2):
            for owp in range(12):
                ow = 2 * owp + parity
                lane0 = parity * 120 + owp * 10
                for kw in range(5):
                    A1[kh, ow + kw, lane0:lane0 + 10] = w1[:, 0, kh, kw]
    b1t = np.tile(b1, 24)[None, :]                   # (1, 240)

    # conv2 banded matrices: (5, 120, 160);
    # in lane = w'*10 + ic, out lane = parity*80 + ow2'*20 + oc
    A2 = np.zeros((5, 120, 160), np.float32)
    for kh2 in range(5):
        for parity in range(2):
            for owp in range(4):
                ow2 = 2 * owp + parity
                lane0 = parity * 80 + owp * 20
                for kw2 in range(5):
                    w1p = ow2 + kw2
                    A2[kh2, w1p * 10:(w1p + 1) * 10, lane0:lane0 + 20] = \
                        w2[:, :, kh2, kw2].T         # (ic, oc)
    b2t = np.tile(b2, 8)[None, :]                    # (1, 160)

    # conv2 row selection (pooled-row pick + kh shift): (5, B*8, B*24-1)
    R = np.zeros((5, B * 8, B * 24 - 1), np.float32)
    for kh2 in range(5):
        for b in range(B):
            for q in range(8):
                R[kh2, b * 8 + q, b * 24 + 2 * (kh2 + q)] = 1.0

    # fc1 row selection: (4, B, B*8-1)
    Q = np.zeros((4, B, B * 8 - 1), np.float32)
    for h in range(4):
        for b in range(B):
            Q[h, b, b * 8 + 2 * h] = 1.0

    # fc1 weights with the torch NCHW flatten (c*16 + h*4 + w) folded in:
    # G[h, w*20 + c, j] = fc1_w[j, c*16 + h*4 + w]
    f1r = f1w.reshape(50, 20, 4, 4)                  # (j, c, h, w)
    G = np.zeros((4, 80, 50), np.float32)
    for h in range(4):
        G[h] = np.transpose(f1r[:, :, h, :], (2, 1, 0)).reshape(80, 50)

    return {
        "a1": jnp.asarray(A1), "b1t": jnp.asarray(b1t),
        "a2": jnp.asarray(A2), "b2t": jnp.asarray(b2t),
        "rsel": jnp.asarray(R), "qsel": jnp.asarray(Q), "g": jnp.asarray(G),
        "fb1": jnp.asarray(f1b[None, :]),
        "w3": jnp.asarray(np.ascontiguousarray(f2w.T)),
        "b3": jnp.asarray(f2b[None, :]),
    }


# ---------------------------------------------------------------------------
# Jitted forward: pad batch, single fused pallas_call, slice
# ---------------------------------------------------------------------------
@jax.jit
def cnn_forward(x_nchw, kp):
    """x_nchw: (N, 1, 28, 28) float32 -> (N, 10) log-probabilities."""
    N = x_nchw.shape[0]
    B = BATCH_TILE
    x = x_nchw.reshape(N, 28, 28).astype(jnp.float32)
    n_pad = ((N + B - 1) // B) * B
    if n_pad != N:
        x = jnp.pad(x, ((0, n_pad - N), (0, 0), (0, 0)))

    full3 = lambda i: (0, 0, 0)
    full2 = lambda i: (0, 0)
    out = pl.pallas_call(
        _fused_cnn_kernel,
        out_shape=jax.ShapeDtypeStruct((n_pad, 10), jnp.float32),
        grid_spec=pltpu.PrefetchScalarGridSpec(
            num_scalar_prefetch=0,
            grid=(n_pad // B,),
            in_specs=[
                pl.BlockSpec((B, 28, 28), lambda i: (i, 0, 0)),        # x
                pl.BlockSpec((5, 28, 240), full3),                     # a1
                pl.BlockSpec((1, 240), full2),                         # b1t
                pl.BlockSpec((5, 120, 160), full3),                    # a2
                pl.BlockSpec((1, 160), full2),                         # b2t
                pl.BlockSpec((5, B * 8, B * 24 - 1), full3),           # rsel
                pl.BlockSpec((4, B, B * 8 - 1), full3),                # qsel
                pl.BlockSpec((4, 80, 50), full3),                      # g
                pl.BlockSpec((1, 50), full2),                          # fb1
                pl.BlockSpec((50, 10), full2),                         # w3
                pl.BlockSpec((1, 10), full2),                          # b3
            ],
            out_specs=pl.BlockSpec((B, 10), lambda i: (i, 0)),
        ),
        compiler_params=pltpu.CompilerParams(
            dimension_semantics=("parallel",)),
    )(x, kp["a1"], kp["b1t"], kp["a2"], kp["b2t"], kp["rsel"], kp["qsel"],
      kp["g"], kp["fb1"], kp["w3"], kp["b3"])
    return out[:N]


# ---------------------------------------------------------------------------
# Plain-JAX reference (eval-mode semantics of the PyTorch module)
# ---------------------------------------------------------------------------
def reference_forward(x_nchw, params):
    hp = jax.lax.Precision.HIGHEST
    dn = ("NCHW", "OIHW", "NCHW")
    y = jax.lax.conv_general_dilated(x_nchw, params["conv1_w"], (1, 1),
                                     "VALID", dimension_numbers=dn,
                                     precision=hp)
    y = y + params["conv1_b"][None, :, None, None]
    y = jax.lax.reduce_window(y, -jnp.inf, jax.lax.max,
                              (1, 1, 2, 2), (1, 1, 2, 2), "VALID")
    y = jnp.maximum(y, 0.0)
    y = jax.lax.conv_general_dilated(y, params["conv2_w"], (1, 1),
                                     "VALID", dimension_numbers=dn,
                                     precision=hp)
    y = y + params["conv2_b"][None, :, None, None]
    y = jax.lax.reduce_window(y, -jnp.inf, jax.lax.max,
                              (1, 1, 2, 2), (1, 1, 2, 2), "VALID")
    y = jnp.maximum(y, 0.0)
    flat = y.reshape(y.shape[0], 320)
    h = jnp.maximum(jnp.dot(flat, params["fc1_w"].T, precision=hp)
                    + params["fc1_b"], 0.0)
    z = jnp.dot(h, params["fc2_w"].T, precision=hp) + params["fc2_b"]
    return jax.nn.log_softmax(z, axis=-1)


# ---------------------------------------------------------------------------
# Parameter init (PyTorch default-style uniform)
# ---------------------------------------------------------------------------
def init_params(key):
    ks = jax.random.split(key, 8)

    def u(k, shape, fan_in):
        bound = 1.0 / np.sqrt(float(fan_in))
        return jax.random.uniform(k, shape, jnp.float32, -bound, bound)

    return {
        "conv1_w": u(ks[0], (10, 1, 5, 5), 1 * 5 * 5),
        "conv1_b": u(ks[1], (10,), 1 * 5 * 5),
        "conv2_w": u(ks[2], (20, 10, 5, 5), 10 * 5 * 5),
        "conv2_b": u(ks[3], (20,), 10 * 5 * 5),
        "fc1_w": u(ks[4], (50, 320), 320),
        "fc1_b": u(ks[5], (50,), 320),
        "fc2_w": u(ks[6], (10, 50), 50),
        "fc2_b": u(ks[7], (10,), 50),
    }


if __name__ == "__main__":
    key = jax.random.PRNGKey(0)
    k_x, k_p = jax.random.split(key)
    # Input must be (N, 1, 28, 28) so the flatten yields 320 features.
    x = jax.random.normal(k_x, (2, 1, 28, 28), dtype=jnp.float32)
    params = init_params(k_p)
    kparams = prepare_kernel_params(params)

    out = cnn_forward(x, kparams)
    out = jax.block_until_ready(out)
    assert out.shape == (2, 10)
    # log-softmax rows should sum to ~1 in probability space
    assert jnp.allclose(jnp.sum(jnp.exp(out), axis=1), 1.0, atol=1e-4)
    # cross-check against plain-JAX reference of the PyTorch forward
    ref = reference_forward(x, params)
    assert jnp.allclose(out, ref, atol=3e-2, rtol=0.0)
    print("KERNEL_OK")
</pallas_src>

<mosaic_0001>
module attributes {stable_mosaic.version = 11 : i64} {
  func.func @_fused_cnn_kernel(%arg0: i32, %arg1: memref<8x28x28xf32, #tpu.memory_space<vmem>>, %arg2: memref<5x28x240xf32, #tpu.memory_space<vmem>>, %arg3: memref<1x240xf32, #tpu.memory_space<vmem>>, %arg4: memref<5x120x160xf32, #tpu.memory_space<vmem>>, %arg5: memref<1x160xf32, #tpu.memory_space<vmem>>, %arg6: memref<5x64x191xf32, #tpu.memory_space<vmem>>, %arg7: memref<4x8x63xf32, #tpu.memory_space<vmem>>, %arg8: memref<4x80x50xf32, #tpu.memory_space<vmem>>, %arg9: memref<1x50xf32, #tpu.memory_space<vmem>>, %arg10: memref<50x10xf32, #tpu.memory_space<vmem>>, %arg11: memref<1x10xf32, #tpu.memory_space<vmem>>, %arg12: memref<8x10xf32, #tpu.memory_space<vmem>>) attributes {dimension_semantics = [#tpu.dimension_semantics<parallel>], iteration_bounds = array<i64: 1>, scalar_prefetch = 0 : i64, scratch_operands = 0 : i64, tpu.core_type = #tpu.core_type<tc>, window_params = [{transform_indices = @transform_0, window_bounds = array<i64: 8, 28, 28>}, {pipeline_mode = #tpu.pipeline_mode<synchronous>, transform_indices = @transform_1, window_bounds = array<i64: 5, 28, 240>}, {pipeline_mode = #tpu.pipeline_mode<synchronous>, transform_indices = @transform_2, window_bounds = array<i64: 1, 240>}, {pipeline_mode = #tpu.pipeline_mode<synchronous>, transform_indices = @transform_3, window_bounds = array<i64: 5, 120, 160>}, {pipeline_mode = #tpu.pipeline_mode<synchronous>, transform_indices = @transform_4, window_bounds = array<i64: 1, 160>}, {pipeline_mode = #tpu.pipeline_mode<synchronous>, transform_indices = @transform_5, window_bounds = array<i64: 5, 64, 191>}, {pipeline_mode = #tpu.pipeline_mode<synchronous>, transform_indices = @transform_6, window_bounds = array<i64: 4, 8, 63>}, {pipeline_mode = #tpu.pipeline_mode<synchronous>, transform_indices = @transform_7, window_bounds = array<i64: 4, 80, 50>}, {pipeline_mode = #tpu.pipeline_mode<synchronous>, transform_indices = @transform_8, window_bounds = array<i64: 1, 50>}, {pipeline_mode = #tpu.pipeline_mode<synchronous>, transform_indices = @transform_9, window_bounds = array<i64: 50, 10>}, {pipeline_mode = #tpu.pipeline_mode<synchronous>, transform_indices = @transform_10, window_bounds = array<i64: 1, 10>}, {transform_indices = @transform_11, window_bounds = array<i64: 8, 10>}]} {
    %c0 = arith.constant 0 : index
    %c0_0 = arith.constant 0 : index
    %c0_1 = arith.constant 0 : index
    %0 = vector.load %arg1[%c0, %c0_0, %c0_1] : memref<8x28x28xf32, #tpu.memory_space<vmem>>, vector<8x28x28xf32>
    %cst = arith.constant 0.000000e+00 : f32
    %1 = vector.broadcast %cst : f32 to vector<192x240xf32>
    %2 = vector.extract_strided_slice %0 {offsets = [0, 0, 0], sizes = [8, 24, 28], strides = [1, 1, 1]} : vector<8x28x28xf32> to vector<8x24x28xf32>
    %3 = vector.shape_cast %2 : vector<8x24x28xf32> to vector<192x28xf32>
    %c0_2 = arith.constant 0 : index
    %c0_3 = arith.constant 0 : index
    %c0_4 = arith.constant 0 : index
    %4 = vector.load %arg2[%c0_2, %c0_3, %c0_4] : memref<5x28x240xf32, #tpu.memory_space<vmem>>, vector<1x28x240xf32>
    %5 = vector.shape_cast %4 : vector<1x28x240xf32> to vector<28x240xf32>
    %cst_5 = arith.constant dense<0.000000e+00> : vector<192x240xf32>
    %6 = tpu.matmul %3, %5, %cst_5 {dimension_numbers = #tpu.dot_dimension_numbers<[1], [0], [0], [1], [0, 0, 1, 1], [], []>} : vector<192x28xf32>, vector<28x240xf32>, vector<192x240xf32> -> vector<192x240xf32>
    %7 = arith.addf %1, %6 : vector<192x240xf32>
    %8 = vector.extract_strided_slice %0 {offsets = [0, 1, 0], sizes = [8, 24, 28], strides = [1, 1, 1]} : vector<8x28x28xf32> to vector<8x24x28xf32>
    %9 = vector.shape_cast %8 : vector<8x24x28xf32> to vector<192x28xf32>
    %c1 = arith.constant 1 : index
    %c0_6 = arith.constant 0 : index
    %c0_7 = arith.constant 0 : index
    %10 = vector.load %arg2[%c1, %c0_6, %c0_7] : memref<5x28x240xf32, #tpu.memory_space<vmem>>, vector<1x28x240xf32>
    %11 = vector.shape_cast %10 : vector<1x28x240xf32> to vector<28x240xf32>
    %cst_8 = arith.constant dense<0.000000e+00> : vector<192x240xf32>
    %12 = tpu.matmul %9, %11, %cst_8 {dimension_numbers = #tpu.dot_dimension_numbers<[1], [0], [0], [1], [0, 0, 1, 1], [], []>} : vector<192x28xf32>, vector<28x240xf32>, vector<192x240xf32> -> vector<192x240xf32>
    %13 = arith.addf %7, %12 : vector<192x240xf32>
    %14 = vector.extract_strided_slice %0 {offsets = [0, 2, 0], sizes = [8, 24, 28], strides = [1, 1, 1]} : vector<8x28x28xf32> to vector<8x24x28xf32>
    %15 = vector.shape_cast %14 : vector<8x24x28xf32> to vector<192x28xf32>
    %c2 = arith.constant 2 : index
    %c0_9 = arith.constant 0 : index
    %c0_10 = arith.constant 0 : index
    %16 = vector.load %arg2[%c2, %c0_9, %c0_10] : memref<5x28x240xf32, #tpu.memory_space<vmem>>, vector<1x28x240xf32>
    %17 = vector.shape_cast %16 : vector<1x28x240xf32> to vector<28x240xf32>
    %cst_11 = arith.constant dense<0.000000e+00> : vector<192x240xf32>
    %18 = tpu.matmul %15, %17, %cst_11 {dimension_numbers = #tpu.dot_dimension_numbers<[1], [0], [0], [1], [0, 0, 1, 1], [], []>} : vector<192x28xf32>, vector<28x240xf32>, vector<192x240xf32> -> vector<192x240xf32>
    %19 = arith.addf %13, %18 : vector<192x240xf32>
    %20 = vector.extract_strided_slice %0 {offsets = [0, 3, 0], sizes = [8, 24, 28], strides = [1, 1, 1]} : vector<8x28x28xf32> to vector<8x24x28xf32>
    %21 = vector.shape_cast %20 : vector<8x24x28xf32> to vector<192x28xf32>
    %c3 = arith.constant 3 : index
    %c0_12 = arith.constant 0 : index
    %c0_13 = arith.constant 0 : index
    %22 = vector.load %arg2[%c3, %c0_12, %c0_13] : memref<5x28x240xf32, #tpu.memory_space<vmem>>, vector<1x28x240xf32>
    %23 = vector.shape_cast %22 : vector<1x28x240xf32> to vector<28x240xf32>
    %cst_14 = arith.constant dense<0.000000e+00> : vector<192x240xf32>
    %24 = tpu.matmul %21, %23, %cst_14 {dimension_numbers = #tpu.dot_dimension_numbers<[1], [0], [0], [1], [0, 0, 1, 1], [], []>} : vector<192x28xf32>, vector<28x240xf32>, vector<192x240xf32> -> vector<192x240xf32>
    %25 = arith.addf %19, %24 : vector<192x240xf32>
    %26 = vector.extract_strided_slice %0 {offsets = [0, 4, 0], sizes = [8, 24, 28], strides = [1, 1, 1]} : vector<8x28x28xf32> to vector<8x24x28xf32>
    %27 = vector.shape_cast %26 : vector<8x24x28xf32> to vector<192x28xf32>
    %c4 = arith.constant 4 : index
    %c0_15 = arith.constant 0 : index
    %c0_16 = arith.constant 0 : index
    %28 = vector.load %arg2[%c4, %c0_15, %c0_16] : memref<5x28x240xf32, #tpu.memory_space<vmem>>, vector<1x28x240xf32>
    %29 = vector.shape_cast %28 : vector<1x28x240xf32> to vector<28x240xf32>
    %cst_17 = arith.constant dense<0.000000e+00> : vector<192x240xf32>
    %30 = tpu.matmul %27, %29, %cst_17 {dimension_numbers = #tpu.dot_dimension_numbers<[1], [0], [0], [1], [0, 0, 1, 1], [], []>} : vector<192x28xf32>, vector<28x240xf32>, vector<192x240xf32> -> vector<192x240xf32>
    %31 = arith.addf %25, %30 : vector<192x240xf32>
    %c0_18 = arith.constant 0 : index
    %c0_19 = arith.constant 0 : index
    %32 = vector.load %arg3[%c0_18, %c0_19] : memref<1x240xf32, #tpu.memory_space<vmem>>, vector<1x240xf32>
    %33 = vector.broadcast %32 : vector<1x240xf32> to vector<192x240xf32>
    %34 = arith.addf %31, %33 : vector<192x240xf32>
    %35 = vector.extract_strided_slice %34 {offsets = [0, 0], sizes = [192, 120], strides = [1, 1]} : vector<192x240xf32> to vector<192x120xf32>
    %36 = vector.extract_strided_slice %34 {offsets = [0, 120], sizes = [192, 120], strides = [1, 1]} : vector<192x240xf32> to vector<192x120xf32>
    %37 = arith.maximumf %35, %36 : vector<192x120xf32>
    %38 = vector.extract_strided_slice %37 {offsets = [0, 0], sizes = [191, 120], strides = [1, 1]} : vector<192x120xf32> to vector<191x120xf32>
    %39 = vector.extract_strided_slice %37 {offsets = [1, 0], sizes = [191, 120], strides = [1, 1]} : vector<192x120xf32> to vector<191x120xf32>
    %40 = arith.maximumf %38, %39 : vector<191x120xf32>
    %cst_20 = arith.constant 0.000000e+00 : f32
    %41 = vector.broadcast %cst_20 : f32 to vector<191x120xf32>
    %42 = arith.maximumf %40, %41 : vector<191x120xf32>
    %cst_21 = arith.constant 0.000000e+00 : f32
    %43 = vector.broadcast %cst_21 : f32 to vector<64x160xf32>
    %c0_22 = arith.constant 0 : index
    %c0_23 = arith.constant 0 : index
    %c0_24 = arith.constant 0 : index
    %44 = vector.load %arg6[%c0_22, %c0_23, %c0_24] : memref<5x64x191xf32, #tpu.memory_space<vmem>>, vector<1x64x191xf32>
    %45 = vector.shape_cast %44 : vector<1x64x191xf32> to vector<64x191xf32>
    %cst_25 = arith.constant dense<0.000000e+00> : vector<64x120xf32>
    %46 = tpu.matmul %45, %42, %cst_25 {dimension_numbers = #tpu.dot_dimension_numbers<[1], [0], [0], [1], [0, 0, 1, 1], [], []>} : vector<64x191xf32>, vector<191x120xf32>, vector<64x120xf32> -> vector<64x120xf32>
    %c0_26 = arith.constant 0 : index
    %c0_27 = arith.constant 0 : index
    %c0_28 = arith.constant 0 : index
    %47 = vector.load %arg4[%c0_26, %c0_27, %c0_28] : memref<5x120x160xf32, #tpu.memory_space<vmem>>, vector<1x120x160xf32>
    %48 = vector.shape_cast %47 : vector<1x120x160xf32> to vector<120x160xf32>
    %cst_29 = arith.constant dense<0.000000e+00> : vector<64x160xf32>
    %49 = tpu.matmul %46, %48, %cst_29 {dimension_numbers = #tpu.dot_dimension_numbers<[1], [0], [0], [1], [0, 0, 1, 1], [], []>} : vector<64x120xf32>, vector<120x160xf32>, vector<64x160xf32> -> vector<64x160xf32>
    %50 = arith.addf %43, %49 : vector<64x160xf32>
    %c1_30 = arith.constant 1 : index
    %c0_31 = arith.constant 0 : index
    %c0_32 = arith.constant 0 : index
    %51 = vector.load %arg6[%c1_30, %c0_31, %c0_32] : memref<5x64x191xf32, #tpu.memory_space<vmem>>, vector<1x64x191xf32>
    %52 = vector.shape_cast %51 : vector<1x64x191xf32> to vector<64x191xf32>
    %cst_33 = arith.constant dense<0.000000e+00> : vector<64x120xf32>
    %53 = tpu.matmul %52, %42, %cst_33 {dimension_numbers = #tpu.dot_dimension_numbers<[1], [0], [0], [1], [0, 0, 1, 1], [], []>} : vector<64x191xf32>, vector<191x120xf32>, vector<64x120xf32> -> vector<64x120xf32>
    %c1_34 = arith.constant 1 : index
    %c0_35 = arith.constant 0 : index
    %c0_36 = arith.constant 0 : index
    %54 = vector.load %arg4[%c1_34, %c0_35, %c0_36] : memref<5x120x160xf32, #tpu.memory_space<vmem>>, vector<1x120x160xf32>
    %55 = vector.shape_cast %54 : vector<1x120x160xf32> to vector<120x160xf32>
    %cst_37 = arith.constant dense<0.000000e+00> : vector<64x160xf32>
    %56 = tpu.matmul %53, %55, %cst_37 {dimension_numbers = #tpu.dot_dimension_numbers<[1], [0], [0], [1], [0, 0, 1, 1], [], []>} : vector<64x120xf32>, vector<120x160xf32>, vector<64x160xf32> -> vector<64x160xf32>
    %57 = arith.addf %50, %56 : vector<64x160xf32>
    %c2_38 = arith.constant 2 : index
    %c0_39 = arith.constant 0 : index
    %c0_40 = arith.constant 0 : index
    %58 = vector.load %arg6[%c2_38, %c0_39, %c0_40] : memref<5x64x191xf32, #tpu.memory_space<vmem>>, vector<1x64x191xf32>
    %59 = vector.shape_cast %58 : vector<1x64x191xf32> to vector<64x191xf32>
    %cst_41 = arith.constant dense<0.000000e+00> : vector<64x120xf32>
    %60 = tpu.matmul %59, %42, %cst_41 {dimension_numbers = #tpu.dot_dimension_numbers<[1], [0], [0], [1], [0, 0, 1, 1], [], []>} : vector<64x191xf32>, vector<191x120xf32>, vector<64x120xf32> -> vector<64x120xf32>
    %c2_42 = arith.constant 2 : index
    %c0_43 = arith.constant 0 : index
    %c0_44 = arith.constant 0 : index
    %61 = vector.load %arg4[%c2_42, %c0_43, %c0_44] : memref<5x120x160xf32, #tpu.memory_space<vmem>>, vector<1x120x160xf32>
    %62 = vector.shape_cast %61 : vector<1x120x160xf32> to vector<120x160xf32>
    %cst_45 = arith.constant dense<0.000000e+00> : vector<64x160xf32>
    %63 = tpu.matmul %60, %62, %cst_45 {dimension_numbers = #tpu.dot_dimension_numbers<[1], [0], [0], [1], [0, 0, 1, 1], [], []>} : vector<64x120xf32>, vector<120x160xf32>, vector<64x160xf32> -> vector<64x160xf32>
    %64 = arith.addf %57, %63 : vector<64x160xf32>
    %c3_46 = arith.constant 3 : index
    %c0_47 = arith.constant 0 : index
    %c0_48 = arith.constant 0 : index
    %65 = vector.load %arg6[%c3_46, %c0_47, %c0_48] : memref<5x64x191xf32, #tpu.memory_space<vmem>>, vector<1x64x191xf32>
    %66 = vector.shape_cast %65 : vector<1x64x191xf32> to vector<64x191xf32>
    %cst_49 = arith.constant dense<0.000000e+00> : vector<64x120xf32>
    %67 = tpu.matmul %66, %42, %cst_49 {dimension_numbers = #tpu.dot_dimension_numbers<[1], [0], [0], [1], [0, 0, 1, 1], [], []>} : vector<64x191xf32>, vector<191x120xf32>, vector<64x120xf32> -> vector<64x120xf32>
    %c3_50 = arith.constant 3 : index
    %c0_51 = arith.constant 0 : index
    %c0_52 = arith.constant 0 : index
    %68 = vector.load %arg4[%c3_50, %c0_51, %c0_52] : memref<5x120x160xf32, #tpu.memory_space<vmem>>, vector<1x120x160xf32>
    %69 = vector.shape_cast %68 : vector<1x120x160xf32> to vector<120x160xf32>
    %cst_53 = arith.constant dense<0.000000e+00> : vector<64x160xf32>
    %70 = tpu.matmul %67, %69, %cst_53 {dimension_numbers = #tpu.dot_dimension_numbers<[1], [0], [0], [1], [0, 0, 1, 1], [], []>} : vector<64x120xf32>, vector<120x160xf32>, vector<64x160xf32> -> vector<64x160xf32>
    %71 = arith.addf %64, %70 : vector<64x160xf32>
    %c4_54 = arith.constant 4 : index
    %c0_55 = arith.constant 0 : index
    %c0_56 = arith.constant 0 : index
    %72 = vector.load %arg6[%c4_54, %c0_55, %c0_56] : memref<5x64x191xf32, #tpu.memory_space<vmem>>, vector<1x64x191xf32>
    %73 = vector.shape_cast %72 : vector<1x64x191xf32> to vector<64x191xf32>
    %cst_57 = arith.constant dense<0.000000e+00> : vector<64x120xf32>
    %74 = tpu.matmul %73, %42, %cst_57 {dimension_numbers = #tpu.dot_dimension_numbers<[1], [0], [0], [1], [0, 0, 1, 1], [], []>} : vector<64x191xf32>, vector<191x120xf32>, vector<64x120xf32> -> vector<64x120xf32>
    %c4_58 = arith.constant 4 : index
    %c0_59 = arith.constant 0 : index
    %c0_60 = arith.constant 0 : index
    %75 = vector.load %arg4[%c4_58, %c0_59, %c0_60] : memref<5x120x160xf32, #tpu.memory_space<vmem>>, vector<1x120x160xf32>
    %76 = vector.shape_cast %75 : vector<1x120x160xf32> to vector<120x160xf32>
    %cst_61 = arith.constant dense<0.000000e+00> : vector<64x160xf32>
    %77 = tpu.matmul %74, %76, %cst_61 {dimension_numbers = #tpu.dot_dimension_numbers<[1], [0], [0], [1], [0, 0, 1, 1], [], []>} : vector<64x120xf32>, vector<120x160xf32>, vector<64x160xf32> -> vector<64x160xf32>
    %78 = arith.addf %71, %77 : vector<64x160xf32>
    %c0_62 = arith.constant 0 : index
    %c0_63 = arith.constant 0 : index
    %79 = vector.load %arg5[%c0_62, %c0_63] : memref<1x160xf32, #tpu.memory_space<vmem>>, vector<1x160xf32>
    %80 = vector.broadcast %79 : vector<1x160xf32> to vector<64x160xf32>
    %81 = arith.addf %78, %80 : vector<64x160xf32>
    %82 = vector.extract_strided_slice %81 {offsets = [0, 0], sizes = [64, 80], strides = [1, 1]} : vector<64x160xf32> to vector<64x80xf32>
    %83 = vector.extract_strided_slice %81 {offsets = [0, 80], sizes = [64, 80], strides = [1, 1]} : vector<64x160xf32> to vector<64x80xf32>
    %84 = arith.maximumf %82, %83 : vector<64x80xf32>
    %85 = vector.extract_strided_slice %84 {offsets = [0, 0], sizes = [63, 80], strides = [1, 1]} : vector<64x80xf32> to vector<63x80xf32>
    %86 = vector.extract_strided_slice %84 {offsets = [1, 0], sizes = [63, 80], strides = [1, 1]} : vector<64x80xf32> to vector<63x80xf32>
    %87 = arith.maximumf %85, %86 : vector<63x80xf32>
    %cst_64 = arith.constant 0.000000e+00 : f32
    %88 = vector.broadcast %cst_64 : f32 to vector<63x80xf32>
    %89 = arith.maximumf %87, %88 : vector<63x80xf32>
    %cst_65 = arith.constant 0.000000e+00 : f32
    %90 = vector.broadcast %cst_65 : f32 to vector<8x50xf32>
    %c0_66 = arith.constant 0 : index
    %c0_67 = arith.constant 0 : index
    %c0_68 = arith.constant 0 : index
    %91 = vector.load %arg7[%c0_66, %c0_67, %c0_68] : memref<4x8x63xf32, #tpu.memory_space<vmem>>, vector<1x8x63xf32>
    %92 = vector.shape_cast %91 : vector<1x8x63xf32> to vector<8x63xf32>
    %cst_69 = arith.constant dense<0.000000e+00> : vector<8x80xf32>
    %93 = tpu.matmul %92, %89, %cst_69 {dimension_numbers = #tpu.dot_dimension_numbers<[1], [0], [0], [1], [0, 0, 1, 1], [], []>} : vector<8x63xf32>, vector<63x80xf32>, vector<8x80xf32> -> vector<8x80xf32>
    %c0_70 = arith.constant 0 : index
    %c0_71 = arith.constant 0 : index
    %c0_72 = arith.constant 0 : index
    %94 = vector.load %arg8[%c0_70, %c0_71, %c0_72] : memref<4x80x50xf32, #tpu.memory_space<vmem>>, vector<1x80x50xf32>
    %95 = vector.shape_cast %94 : vector<1x80x50xf32> to vector<80x50xf32>
    %cst_73 = arith.constant dense<0.000000e+00> : vector<8x50xf32>
    %96 = tpu.matmul %93, %95, %cst_73 {dimension_numbers = #tpu.dot_dimension_numbers<[1], [0], [0], [1], [0, 0, 1, 1], [], []>} : vector<8x80xf32>, vector<80x50xf32>, vector<8x50xf32> -> vector<8x50xf32>
    %97 = arith.addf %90, %96 : vector<8x50xf32>
    %c1_74 = arith.constant 1 : index
    %c0_75 = arith.constant 0 : index
    %c0_76 = arith.constant 0 : index
    %98 = vector.load %arg7[%c1_74, %c0_75, %c0_76] : memref<4x8x63xf32, #tpu.memory_space<vmem>>, vector<1x8x63xf32>
    %99 = vector.shape_cast %98 : vector<1x8x63xf32> to vector<8x63xf32>
    %cst_77 = arith.constant dense<0.000000e+00> : vector<8x80xf32>
    %100 = tpu.matmul %99, %89, %cst_77 {dimension_numbers = #tpu.dot_dimension_numbers<[1], [0], [0], [1], [0, 0, 1, 1], [], []>} : vector<8x63xf32>, vector<63x80xf32>, vector<8x80xf32> -> vector<8x80xf32>
    %c1_78 = arith.constant 1 : index
    %c0_79 = arith.constant 0 : index
    %c0_80 = arith.constant 0 : index
    %101 = vector.load %arg8[%c1_78, %c0_79, %c0_80] : memref<4x80x50xf32, #tpu.memory_space<vmem>>, vector<1x80x50xf32>
    %102 = vector.shape_cast %101 : vector<1x80x50xf32> to vector<80x50xf32>
    %cst_81 = arith.constant dense<0.000000e+00> : vector<8x50xf32>
    %103 = tpu.matmul %100, %102, %cst_81 {dimension_numbers = #tpu.dot_dimension_numbers<[1], [0], [0], [1], [0, 0, 1, 1], [], []>} : vector<8x80xf32>, vector<80x50xf32>, vector<8x50xf32> -> vector<8x50xf32>
    %104 = arith.addf %97, %103 : vector<8x50xf32>
    %c2_82 = arith.constant 2 : index
    %c0_83 = arith.constant 0 : index
    %c0_84 = arith.constant 0 : index
    %105 = vector.load %arg7[%c2_82, %c0_83, %c0_84] : memref<4x8x63xf32, #tpu.memory_space<vmem>>, vector<1x8x63xf32>
    %106 = vector.shape_cast %105 : vector<1x8x63xf32> to vector<8x63xf32>
    %cst_85 = arith.constant dense<0.000000e+00> : vector<8x80xf32>
    %107 = tpu.matmul %106, %89, %cst_85 {dimension_numbers = #tpu.dot_dimension_numbers<[1], [0], [0], [1], [0, 0, 1, 1], [], []>} : vector<8x63xf32>, vector<63x80xf32>, vector<8x80xf32> -> vector<8x80xf32>
    %c2_86 = arith.constant 2 : index
    %c0_87 = arith.constant 0 : index
    %c0_88 = arith.constant 0 : index
    %108 = vector.load %arg8[%c2_86, %c0_87, %c0_88] : memref<4x80x50xf32, #tpu.memory_space<vmem>>, vector<1x80x50xf32>
    %109 = vector.shape_cast %108 : vector<1x80x50xf32> to vector<80x50xf32>
    %cst_89 = arith.constant dense<0.000000e+00> : vector<8x50xf32>
    %110 = tpu.matmul %107, %109, %cst_89 {dimension_numbers = #tpu.dot_dimension_numbers<[1], [0], [0], [1], [0, 0, 1, 1], [], []>} : vector<8x80xf32>, vector<80x50xf32>, vector<8x50xf32> -> vector<8x50xf32>
    %111 = arith.addf %104, %110 : vector<8x50xf32>
    %c3_90 = arith.constant 3 : index
    %c0_91 = arith.constant 0 : index
    %c0_92 = arith.constant 0 : index
    %112 = vector.load %arg7[%c3_90, %c0_91, %c0_92] : memref<4x8x63xf32, #tpu.memory_space<vmem>>, vector<1x8x63xf32>
    %113 = vector.shape_cast %112 : vector<1x8x63xf32> to vector<8x63xf32>
    %cst_93 = arith.constant dense<0.000000e+00> : vector<8x80xf32>
    %114 = tpu.matmul %113, %89, %cst_93 {dimension_numbers = #tpu.dot_dimension_numbers<[1], [0], [0], [1], [0, 0, 1, 1], [], []>} : vector<8x63xf32>, vector<63x80xf32>, vector<8x80xf32> -> vector<8x80xf32>
    %c3_94 = arith.constant 3 : index
    %c0_95 = arith.constant 0 : index
    %c0_96 = arith.constant 0 : index
    %115 = vector.load %arg8[%c3_94, %c0_95, %c0_96] : memref<4x80x50xf32, #tpu.memory_space<vmem>>, vector<1x80x50xf32>
    %116 = vector.shape_cast %115 : vector<1x80x50xf32> to vector<80x50xf32>
    %cst_97 = arith.constant dense<0.000000e+00> : vector<8x50xf32>
    %117 = tpu.matmul %114, %116, %cst_97 {dimension_numbers = #tpu.dot_dimension_numbers<[1], [0], [0], [1], [0, 0, 1, 1], [], []>} : vector<8x80xf32>, vector<80x50xf32>, vector<8x50xf32> -> vector<8x50xf32>
    %118 = arith.addf %111, %117 : vector<8x50xf32>
    %c0_98 = arith.constant 0 : index
    %c0_99 = arith.constant 0 : index
    %119 = vector.load %arg9[%c0_98, %c0_99] : memref<1x50xf32, #tpu.memory_space<vmem>>, vector<1x50xf32>
    %120 = vector.broadcast %119 : vector<1x50xf32> to vector<8x50xf32>
    %121 = arith.addf %118, %120 : vector<8x50xf32>
    %cst_100 = arith.constant 0.000000e+00 : f32
    %122 = vector.broadcast %cst_100 : f32 to vector<8x50xf32>
    %123 = arith.maximumf %121, %122 : vector<8x50xf32>
    %c0_101 = arith.constant 0 : index
    %c0_102 = arith.constant 0 : index
    %124 = vector.load %arg10[%c0_101, %c0_102] : memref<50x10xf32, #tpu.memory_space<vmem>>, vector<50x10xf32>
    %cst_103 = arith.constant dense<0.000000e+00> : vector<8x10xf32>
    %125 = tpu.matmul %123, %124, %cst_103 {dimension_numbers = #tpu.dot_dimension_numbers<[1], [0], [0], [1], [0, 0, 1, 1], [], []>} : vector<8x50xf32>, vector<50x10xf32>, vector<8x10xf32> -> vector<8x10xf32>
    %c0_104 = arith.constant 0 : index
    %c0_105 = arith.constant 0 : index
    %126 = vector.load %arg11[%c0_104, %c0_105] : memref<1x10xf32, #tpu.memory_space<vmem>>, vector<1x10xf32>
    %127 = vector.broadcast %126 : vector<1x10xf32> to vector<8x10xf32>
    %128 = arith.addf %125, %127 : vector<8x10xf32>
    %cst_106 = arith.constant dense<0xFF800000> : vector<8xf32>
    %129 = vector.multi_reduction <maximumf>, %128, %cst_106 [1] : vector<8x10xf32> to vector<8xf32>
    %130 = vector.shape_cast %129 : vector<8xf32> to vector<8x1xf32>
    %131 = vector.broadcast %130 : vector<8x1xf32> to vector<8x10xf32>
    %132 = arith.subf %128, %131 : vector<8x10xf32>
    %133 = math.exp %132 : vector<8x10xf32>
    %cst_107 = arith.constant dense<0.000000e+00> : vector<8xf32>
    %134 = vector.multi_reduction <add>, %133, %cst_107 [1] : vector<8x10xf32> to vector<8xf32>
    %135 = vector.shape_cast %134 : vector<8xf32> to vector<8x1xf32>
    %136 = math.log %135 : vector<8x1xf32>
    %137 = vector.broadcast %136 : vector<8x1xf32> to vector<8x10xf32>
    %138 = arith.subf %132, %137 : vector<8x10xf32>
    %c0_108 = arith.constant 0 : index
    %c0_109 = arith.constant 0 : index
    %139 = vector.load %arg12[%c0_108, %c0_109] : memref<8x10xf32, #tpu.memory_space<vmem>>, vector<8x10xf32>
    tpu.vector_store %arg12[%c0_108, %c0_109], %138 {strides = array<i32>} : memref<8x10xf32, #tpu.memory_space<vmem>>, vector<8x10xf32>,
    return
  }
  func.func @transform_0(%arg0: i32) -> (i32, i32, i32) {
    %c0_i32 = arith.constant 0 : i32
    %c0_i32_0 = arith.constant 0 : i32
    %c0_i32_1 = arith.constant 0 : i32
    return %arg0, %c0_i32, %c0_i32_0 : i32, i32, i32
  }
  func.func @transform_1(%arg0: i32) -> (i32, i32, i32) {
    %c0_i32 = arith.constant 0 : i32
    %c0_i32_0 = arith.constant 0 : i32
    %c0_i32_1 = arith.constant 0 : i32
    %c0_i32_2 = arith.constant 0 : i32
    return %c0_i32, %c0_i32_0, %c0_i32_1 : i32, i32, i32
  }
  func.func @transform_2(%arg0: i32) -> (i32, i32) {
    %c0_i32 = arith.constant 0 : i32
    %c0_i32_0 = arith.constant 0 : i32
    %c0_i32_1 = arith.constant 0 : i32
    return %c0_i32, %c0_i32_0 : i32, i32
  }
  func.func @transform_3(%arg0: i32) -> (i32, i32, i32) {
    %c0_i32 = arith.constant 0 : i32
    %c0_i32_0 = arith.constant 0 : i32
    %c0_i32_1 = arith.constant 0 : i32
    %c0_i32_2 = arith.constant 0 : i32
    return %c0_i32, %c0_i32_0, %c0_i32_1 : i32, i32, i32
  }
  func.func @transform_4(%arg0: i32) -> (i32, i32) {
    %c0_i32 = arith.constant 0 : i32
    %c0_i32_0 = arith.constant 0 : i32
    %c0_i32_1 = arith.constant 0 : i32
    return %c0_i32, %c0_i32_0 : i32, i32
  }
  func.func @transform_5(%arg0: i32) -> (i32, i32, i32) {
    %c0_i32 = arith.constant 0 : i32
    %c0_i32_0 = arith.constant 0 : i32
    %c0_i32_1 = arith.constant 0 : i32
    %c0_i32_2 = arith.constant 0 : i32
    return %c0_i32, %c0_i32_0, %c0_i32_1 : i32, i32, i32
  }
  func.func @transform_6(%arg0: i32) -> (i32, i32, i32) {
    %c0_i32 = arith.constant 0 : i32
    %c0_i32_0 = arith.constant 0 : i32
    %c0_i32_1 = arith.constant 0 : i32
    %c0_i32_2 = arith.constant 0 : i32
    return %c0_i32, %c0_i32_0, %c0_i32_1 : i32, i32, i32
  }
  func.func @transform_7(%arg0: i32) -> (i32, i32, i32) {
    %c0_i32 = arith.constant 0 : i32
    %c0_i32_0 = arith.constant 0 : i32
    %c0_i32_1 = arith.constant 0 : i32
    %c0_i32_2 = arith.constant 0 : i32
    return %c0_i32, %c0_i32_0, %c0_i32_1 : i32, i32, i32
  }
  func.func @transform_8(%arg0: i32) -> (i32, i32) {
    %c0_i32 = arith.constant 0 : i32
    %c0_i32_0 = arith.constant 0 : i32
    %c0_i32_1 = arith.constant 0 : i32
    return %c0_i32, %c0_i32_0 : i32, i32
  }
  func.func @transform_9(%arg0: i32) -> (i32, i32) {
    %c0_i32 = arith.constant 0 : i32
    %c0_i32_0 = arith.constant 0 : i32
    %c0_i32_1 = arith.constant 0 : i32
    return %c0_i32, %c0_i32_0 : i32, i32
  }
  func.func @transform_10(%arg0: i32) -> (i32, i32) {
    %c0_i32 = arith.constant 0 : i32
    %c0_i32_0 = arith.constant 0 : i32
    %c0_i32_1 = arith.constant 0 : i32
    return %c0_i32, %c0_i32_0 : i32, i32
  }
  func.func @transform_11(%arg0: i32) -> (i32, i32) {
    %c0_i32 = arith.constant 0 : i32
    %c0_i32_0 = arith.constant 0 : i32
    return %arg0, %c0_i32 : i32, i32
  }
}

</mosaic_0001>

<llo_original>
// kernel: cnn_forward.1
$region0: #{cnn_forward.1}
  #allocation0 [shape = 'u32[]', space=smem, size = 0x4, offset = 0x4, fixed_abs, tag = 'smem constant byte address 0x4 - core index']
  #allocation1 [shape = 'u32[144,128]{1,0:T(1,128)}', space=vmem, size = 0x12000, scoped, tag = 'internal scratch']
  %s0 = inlined_call_operand.vmem [shape: f32[8,28,28], index: 0, kind: input, shape index: {}]
  %s1 = inlined_call_operand.vmem [shape: f32[5,28,240], index: 1, kind: input, shape index: {}]
  %s2 = inlined_call_operand.vmem [shape: f32[1,240], index: 2, kind: input, shape index: {}]
  %s3 = inlined_call_operand.vmem [shape: f32[5,120,160], index: 3, kind: input, shape index: {}]
  %s4 = inlined_call_operand.vmem [shape: f32[1,160], index: 4, kind: input, shape index: {}]
  %s5 = inlined_call_operand.vmem [shape: f32[5,64,191], index: 5, kind: input, shape index: {}]
  %s6 = inlined_call_operand.vmem [shape: f32[4,8,63], index: 6, kind: input, shape index: {}]
  %s7 = inlined_call_operand.vmem [shape: f32[4,80,50], index: 7, kind: input, shape index: {}]
  %s8 = inlined_call_operand.vmem [shape: f32[1,50], index: 8, kind: input, shape index: {}]
  %s9 = inlined_call_operand.vmem [shape: f32[50,10], index: 9, kind: input, shape index: {}]
  %s10 = inlined_call_operand.vmem [shape: f32[1,10], index: 10, kind: input, shape index: {}]
  %s11 = inlined_call_operand.vmem [shape: f32[8,10], index: 11, kind: output, shape index: {}]
  %s12 = sld [smem:[#allocation0]]
  $region54: #{cnn_forward.1} parent=0
    _
  %s14 = ssub.s32 1, %s12
  %s15 = scalar_select 0, %s14, %s12
  // Predicated region
  $region2: #{cnn_forward.1} parent=0 // pred_check
    _
  $region3: #{cnn_forward.1} parent=0 // pred_check_branch
    %17 = sbr.rel (0) target = $region5
  $region4: #{cnn_forward.1} parent=0 // pred_region
    _
  $region5: #{cnn_forward.1} parent=0 // pred_fallthru
    _
  // Predicated region
  $region6: #{cnn_forward.1} parent=0 // pred_check
    _
  $region7: #{cnn_forward.1} parent=0 // pred_check_branch
    %19 = sbr.rel (0) target = $region9
  $region8: #{cnn_forward.1} parent=0 // pred_region
    _
  $region9: #{cnn_forward.1} parent=0 // pred_fallthru
    _
  // Predicated region
  $region10: #{cnn_forward.1} parent=0 // pred_check
    _
  $region11: #{cnn_forward.1} parent=0 // pred_check_branch
    %21 = sbr.rel (0) target = $region13
  $region12: #{cnn_forward.1} parent=0 // pred_region
    _
  $region13: #{cnn_forward.1} parent=0 // pred_fallthru
    _
  // Predicated region
  $region14: #{cnn_forward.1} parent=0 // pred_check
    _
  $region15: #{cnn_forward.1} parent=0 // pred_check_branch
    %23 = sbr.rel (0) target = $region17
  $region16: #{cnn_forward.1} parent=0 // pred_region
    _
  $region17: #{cnn_forward.1} parent=0 // pred_fallthru
    _
  // Predicated region
  $region18: #{cnn_forward.1} parent=0 // pred_check
    _
  $region19: #{cnn_forward.1} parent=0 // pred_check_branch
    %25 = sbr.rel (0) target = $region21
  $region20: #{cnn_forward.1} parent=0 // pred_region
    _
  $region21: #{cnn_forward.1} parent=0 // pred_fallthru
    _
  // Predicated region
  $region22: #{cnn_forward.1} parent=0 // pred_check
    _
  $region23: #{cnn_forward.1} parent=0 // pred_check_branch
    %27 = sbr.rel (0) target = $region25
  $region24: #{cnn_forward.1} parent=0 // pred_region
    _
  $region25: #{cnn_forward.1} parent=0 // pred_fallthru
    _
  // Predicated region
  $region26: #{cnn_forward.1} parent=0 // pred_check
    _
  $region27: #{cnn_forward.1} parent=0 // pred_check_branch
    %29 = sbr.rel (0) target = $region29
  $region28: #{cnn_forward.1} parent=0 // pred_region
    _
  $region29: #{cnn_forward.1} parent=0 // pred_fallthru
    _
  // Predicated region
  $region30: #{cnn_forward.1} parent=0 // pred_check
    _
  $region31: #{cnn_forward.1} parent=0 // pred_check_branch
    %31 = sbr.rel (0) target = $region33
  $region32: #{cnn_forward.1} parent=0 // pred_region
    _
  $region33: #{cnn_forward.1} parent=0 // pred_fallthru
    _
  // Predicated region
  $region34: #{cnn_forward.1} parent=0 // pred_check
    _
  $region35: #{cnn_forward.1} parent=0 // pred_check_branch
    %33 = sbr.rel (0) target = $region37
  $region36: #{cnn_forward.1} parent=0 // pred_region
    _
  $region37: #{cnn_forward.1} parent=0 // pred_fallthru
    _
  // Predicated region
  $region38: #{cnn_forward.1} parent=0 // pred_check
    _
  $region39: #{cnn_forward.1} parent=0 // pred_check_branch
    %35 = sbr.rel (0) target = $region41
  $region40: #{cnn_forward.1} parent=0 // pred_region
    _
  $region41: #{cnn_forward.1} parent=0 // pred_fallthru
    _
  // Predicated region
  $region42: #{cnn_forward.1} parent=0 // pred_check
    _
  $region43: #{cnn_forward.1} parent=0 // pred_check_branch
    %37 = sbr.rel (0) target = $region45
  $region44: #{cnn_forward.1} parent=0 // pred_region
    _
  $region45: #{cnn_forward.1} parent=0 // pred_fallthru
    _
  %v38 = vld [vmem:[%s0] sm:$0xff]
  %v39 = vld [vmem:[%s0 + $0x8] sm:$0xff]
  %v40 = vld [vmem:[%s0 + $0x10] sm:$0xff]
  %v41 = vld [vmem:[%s0 + $0x18] sm:$0xf]
  %v42 = vld [vmem:[%s0 + $0x20] sm:$0xff]
  %v43 = vld [vmem:[%s0 + $0x28] sm:$0xff]
  %v44 = vld [vmem:[%s0 + $0x30] sm:$0xff]
  %v45 = vld [vmem:[%s0 + $0x38] sm:$0xf]
  %v46 = vld [vmem:[%s0 + $0x40] sm:$0xff]
  %v47 = vld [vmem:[%s0 + $0x48] sm:$0xff]
  %v48 = vld [vmem:[%s0 + $0x50] sm:$0xff]
  %v49 = vld [vmem:[%s0 + $0x58] sm:$0xf]
  %v50 = vld [vmem:[%s0 + $0x60] sm:$0xff]
  %v51 = vld [vmem:[%s0 + $0x68] sm:$0xff]
  %v52 = vld [vmem:[%s0 + $0x70] sm:$0xff]
  %v53 = vld [vmem:[%s0 + $0x78] sm:$0xf]
  %v54 = vld [vmem:[%s0 + $0x80] sm:$0xff]
  %v55 = vld [vmem:[%s0 + $0x88] sm:$0xff]
  %v56 = vld [vmem:[%s0 + $0x90] sm:$0xff]
  %v57 = vld [vmem:[%s0 + $0x98] sm:$0xf]
  %v58 = vld [vmem:[%s0 + $0xa0] sm:$0xff]
  %v59 = vld [vmem:[%s0 + $0xa8] sm:$0xff]
  %v60 = vld [vmem:[%s0 + $0xb0] sm:$0xff]
  %v61 = vld [vmem:[%s0 + $0xb8] sm:$0xf]
  %v62 = vld [vmem:[%s0 + $0xc0] sm:$0xff]
  %v63 = vld [vmem:[%s0 + $0xc8] sm:$0xff]
  %v64 = vld [vmem:[%s0 + $0xd0] sm:$0xff]
  %v65 = vld [vmem:[%s0 + $0xd8] sm:$0xf]
  %v66 = vld [vmem:[%s0 + $0xe0] sm:$0xff]
  %v67 = vld [vmem:[%s0 + $0xe8] sm:$0xff]
  %v68 = vld [vmem:[%s0 + $0xf0] sm:$0xff]
  %v69 = vld [vmem:[%s0 + $0xf8] sm:$0xf]
  %v70 = vld [vmem:[%s1] sm:$0xff]
  %v71 = vld [vmem:[%s1 + $0x8] sm:$0xff]
  %v72 = vld [vmem:[%s1 + $0x10] sm:$0xff]
  %v73 = vld [vmem:[%s1 + $0x18] sm:$0xff]
  %v74 = vld [vmem:[%s1 + $0x20] sm:$0xff]
  %v75 = vld [vmem:[%s1 + $0x28] sm:$0xff]
  %v76 = vld [vmem:[%s1 + $0x30] sm:$0xf]
  %v77 = vld [vmem:[%s1 + $0x38] sm:$0xf]
  %vm110 = vcmask 1046528
  %v111 = vrot.slane %v38, 1
  %v112 = vrot.slane %v39, 1
  %v113 = vsel %vm110, %v111, %v112
  %v114 = vrot.slane %v40, 1
  %v115 = vsel %vm110, %v112, %v114
  %v116 = vrot.slane %v41, 1
  %v117 = vsel %vm110, %v114, %v116
  %v118 = vrot.slane %v42, 1
  %v119 = vrot.slane %v43, 1
  %v120 = vsel %vm110, %v118, %v119
  %v121 = vrot.slane %v44, 1
  %v122 = vsel %vm110, %v119, %v121
  %v123 = vrot.slane %v45, 1
  %v124 = vsel %vm110, %v121, %v123
  %v125 = vrot.slane %v46, 1
  %v126 = vrot.slane %v47, 1
  %v127 = vsel %vm110, %v125, %v126
  %v128 = vrot.slane %v48, 1
  %v129 = vsel %vm110, %v126, %v128
  %v130 = vrot.slane %v49, 1
  %v131 = vsel %vm110, %v128, %v130
  %v132 = vrot.slane %v50, 1
  %v133 = vrot.slane %v51, 1
  %v134 = vsel %vm110, %v132, %v133
  %v135 = vrot.slane %v52, 1
  %v136 = vsel %vm110, %v133, %v135
  %v137 = vrot.slane %v53, 1
  %v138 = vsel %vm110, %v135, %v137
  %v139 = vrot.slane %v54, 1
  %v140 = vrot.slane %v55, 1
  %v141 = vsel %vm110, %v139, %v140
  %v142 = vrot.slane %v56, 1
  %v143 = vsel %vm110, %v140, %v142
  %v144 = vrot.slane %v57, 1
  %v145 = vsel %vm110, %v142, %v144
  %v146 = vrot.slane %v58, 1
  %v147 = vrot.slane %v59, 1
  %v148 = vsel %vm110, %v146, %v147
  %v149 = vrot.slane %v60, 1
  %v150 = vsel %vm110, %v147, %v149
  %v151 = vrot.slane %v61, 1
  %v152 = vsel %vm110, %v149, %v151
  %v153 = vrot.slane %v62, 1
  %v154 = vrot.slane %v63, 1
  %v155 = vsel %vm110, %v153, %v154
  %v156 = vrot.slane %v64, 1
  %v157 = vsel %vm110, %v154, %v156
  %v158 = vrot.slane %v65, 1
  %v159 = vsel %vm110, %v156, %v158
  %v160 = vrot.slane %v66, 1
  %v161 = vrot.slane %v67, 1
  %v162 = vsel %vm110, %v160, %v161
  %v163 = vrot.slane %v68, 1
  %v164 = vsel %vm110, %v161, %v163
  %v165 = vrot.slane %v69, 1
  %v166 = vsel %vm110, %v163, %v165
  %s167 = scalar_lea.vmem %s1, 64
  %v168 = vld [vmem:[%s167] sm:$0xff]
  %v169 = vld [vmem:[%s167 + $0x8] sm:$0xff]
  %v170 = vld [vmem:[%s167 + $0x10] sm:$0xff]
  %v171 = vld [vmem:[%s167 + $0x18] sm:$0xff]
  %v172 = vld [vmem:[%s167 + $0x20] sm:$0xff]
  %v173 = vld [vmem:[%s167 + $0x28] sm:$0xff]
  %v174 = vld [vmem:[%s167 + $0x30] sm:$0xf]
  %v175 = vld [vmem:[%s167 + $0x38] sm:$0xf]
  %vm176 = vcmask 228352
  %v177 = vsel %vm176, %v113, 0
  %v179 = vsel %vm176, %v115, 0
  %v181 = vsel %vm176, %v117, 0
  %v183 = vsel %vm176, %v120, 0
  %v185 = vsel %vm176, %v122, 0
  %v187 = vsel %vm176, %v124, 0
  %v189 = vsel %vm176, %v127, 0
  %v191 = vsel %vm176, %v129, 0
  %v193 = vsel %vm176, %v131, 0
  %v195 = vsel %vm176, %v134, 0
  %v197 = vsel %vm176, %v136, 0
  %v199 = vsel %vm176, %v138, 0
  %v201 = vsel %vm176, %v141, 0
  %v203 = vsel %vm176, %v143, 0
  %v205 = vsel %vm176, %v145, 0
  %v207 = vsel %vm176, %v148, 0
  %v209 = vsel %vm176, %v150, 0
  %v211 = vsel %vm176, %v152, 0
  %v213 = vsel %vm176, %v155, 0
  %v215 = vsel %vm176, %v157, 0
  %v217 = vsel %vm176, %v159, 0
  %v219 = vsel %vm176, %v162, 0
  %v221 = vsel %vm176, %v164, 0
  %v223 = vsel %vm176, %v166, 0
  %vm225 = vcmask 1043456
  %v227 = vsel %vm225, %v174, 0
  %v230 = vsel %vm225, %v175, 0
  %232 = vmatprep.subr.mxu0 %v169
  %233 = vmatpush1.msra.mxu0 %v168
  %234 = vmatprep.subr.mxu0 %v171
  %235 = vmatpush1.msra.mxu0 %v170
  %236 = vmatprep.subr.mxu0 %v173
  %237 = vmatpush1.msra.mxu0 %v172
  %238 = vmatprep.subr.mxu0 %v230
  %239 = vmatpush1.msra.mxu0 %v227
  %240 = vmatprep.subr.mxu0 0.0
  %241 = vmatpush1.msra.mxu0 0.0
  %242 = vmatprep.subr.mxu0 0.0
  %243 = vmatpush1.msra.mxu0 0.0
  %244 = vmatprep.subr.mxu0 0.0
  %245 = vmatpush1.msra.mxu0 0.0
  %246 = vmatprep.subr.mxu0 0.0
  %247 = vmatpush1.msra.mxu0 0.0
  %248 = vmatprep.subr.mxu0 0.0
  %249 = vmatpush1.msra.mxu0 0.0
  %250 = vmatprep.subr.mxu0 0.0
  %251 = vmatpush1.msra.mxu0 0.0
  %252 = vmatprep.subr.mxu0 0.0
  %253 = vmatpush1.msra.mxu0 0.0
  %254 = vmatprep.subr.mxu0 0.0
  %255 = vmatpush1.msra.mxu0 0.0
  %256 = vmatprep.subr.mxu0 0.0
  %257 = vmatpush1.msra.mxu0 0.0
  %258 = vmatprep.subr.mxu0 0.0
  %259 = vmatpush1.msra.mxu0 0.0
  %260 = vmatprep.subr.mxu0 0.0
  %261 = vmatpush1.msra.mxu0 0.0
  %262 = vmatprep.subr.mxu0 0.0
  %263 = vmatpush1.msra.mxu0 0.0
  %264 = vmatprep.subr.mxu0 0.0
  %265 = vmatpush1.msra.mxu0 0.0
  %266 = vmatprep.subr.mxu0 0.0
  %267 = vmatpush1.msra.mxu0 0.0
  %268 = vmatprep.subr.mxu0 0.0
  %269 = vmatpush1.msra.mxu0 0.0
  %270 = vmatprep.subr.mxu0 0.0
  %271 = vmatpush1.msra.mxu0 0.0
  %272 = vmatprep.subr.mxu0 0.0
  %273 = vmatpush1.msra.mxu0 0.0
  %274 = vmatprep.subr.mxu0 0.0
  %275 = vmatpush1.msra.mxu0 0.0
  %276 = vmatprep.subr.mxu0 0.0
  %277 = vmatpush1.msra.mxu0 0.0
  %278 = vmatprep.subr.mxu0 0.0
  %279 = vmatpush1.msra.mxu0 0.0
  %280 = vmatprep.subr.mxu0 0.0
  %281 = vmatpush1.msra.mxu0 0.0
  %282 = vmatprep.subr.mxu0 0.0
  %283 = vmatpush1.msra.mxu0 0.0
  %284 = vmatprep.subr.mxu0 0.0
  %285 = vmatpush1.msra.mxu0 0.0
  %286 = vmatprep.subr.mxu0 0.0
  %287 = vmatpush1.msra.mxu0 0.0
  %288 = vmatprep.subr.mxu0 0.0
  %289 = vmatpush1.msra.mxu0 0.0
  %290 = vmatprep.subr.mxu0 0.0
  %291 = vmatpush1.msra.mxu0 0.0
  %292 = vmatprep.subr.mxu0 0.0
  %293 = vmatpush1.msra.mxu0 0.0
  %294 = vmatprep.subr.mxu0 0.0
  %295 = vmatpush1.msra.mxu0 0.0
  %296 = vmatprep.mubr.f32.mxu0 0.0
  %297 = vmatmul.mubr.f32.gmra.mrb[0].mxu0 %v177
  %v298 = vpop.f32.mrb[0].mxu0
  %v299 = vadd.f32 0.0, %v298
  %v300 = vpop.f32.mrb[0].mxu0
  %v301 = vadd.f32 0.0, %v300
  %302 = vmatprep.mubr.f32.mxu0 0.0
  %303 = vmatmul.mubr.f32.gmra.mrb[0].mxu0 %v179
  %v304 = vpop.f32.mrb[0].mxu0
  %v305 = vadd.f32 0.0, %v304
  %v306 = vpop.f32.mrb[0].mxu0
  %v307 = vadd.f32 0.0, %v306
  %308 = vmatprep.mubr.f32.mxu0 0.0
  %309 = vmatmul.mubr.f32.gmra.mrb[0].mxu0 %v181
  %v310 = vpop.f32.mrb[0].mxu0
  %v311 = vadd.f32 0.0, %v310
  %v312 = vpop.f32.mrb[0].mxu0
  %v313 = vadd.f32 0.0, %v312
  %314 = vmatprep.mubr.f32.mxu0 0.0
  %315 = vmatmul.mubr.f32.gmra.mrb[0].mxu0 %v183
  %v316 = vpop.f32.mrb[0].mxu0
  %v317 = vadd.f32 0.0, %v316
  %v318 = vpop.f32.mrb[0].mxu0
  %v319 = vadd.f32 0.0, %v318
  %320 = vmatprep.mubr.f32.mxu0 0.0
  %321 = vmatmul.mubr.f32.gmra.mrb[0].mxu0 %v185
  %v322 = vpop.f32.mrb[0].mxu0
  %v323 = vadd.f32 0.0, %v322
  %v324 = vpop.f32.mrb[0].mxu0
  %v325 = vadd.f32 0.0, %v324
  %326 = vmatprep.mubr.f32.mxu0 0.0
  %327 = vmatmul.mubr.f32.gmra.mrb[0].mxu0 %v187
  %v328 = vpop.f32.mrb[0].mxu0
  %v329 = vadd.f32 0.0, %v328
  %v330 = vpop.f32.mrb[0].mxu0
  %v331 = vadd.f32 0.0, %v330
  %332 = vmatprep.mubr.f32.mxu0 0.0
  %333 = vmatmul.mubr.f32.gmra.mrb[0].mxu0 %v189
  %v334 = vpop.f32.mrb[0].mxu0
  %v335 = vadd.f32 0.0, %v334
  %v336 = vpop.f32.mrb[0].mxu0
  %v337 = vadd.f32 0.0, %v336
  %338 = vmatprep.mubr.f32.mxu0 0.0
  %339 = vmatmul.mubr.f32.gmra.mrb[0].mxu0 %v191
  %v340 = vpop.f32.mrb[0].mxu0
  %v341 = vadd.f32 0.0, %v340
  %v342 = vpop.f32.mrb[0].mxu0
  %v343 = vadd.f32 0.0, %v342
  %344 = vmatprep.mubr.f32.mxu0 0.0
  %345 = vmatmul.mubr.f32.gmra.mrb[0].mxu0 %v193
  %v346 = vpop.f32.mrb[0].mxu0
  %v347 = vadd.f32 0.0, %v346
  %v348 = vpop.f32.mrb[0].mxu0
  %v349 = vadd.f32 0.0, %v348
  %350 = vmatprep.mubr.f32.mxu0 0.0
  %351 = vmatmul.mubr.f32.gmra.mrb[0].mxu0 %v195
  %v352 = vpop.f32.mrb[0].mxu0
  %v353 = vadd.f32 0.0, %v352
  %v354 = vpop.f32.mrb[0].mxu0
  %v355 = vadd.f32 0.0, %v354
  %356 = vmatprep.mubr.f32.mxu0 0.0
  %357 = vmatmul.mubr.f32.gmra.mrb[0].mxu0 %v197
  %v358 = vpop.f32.mrb[0].mxu0
  %v359 = vadd.f32 0.0, %v358
  %v360 = vpop.f32.mrb[0].mxu0
  %v361 = vadd.f32 0.0, %v360
  %362 = vmatprep.mubr.f32.mxu0 0.0
  %363 = vmatmul.mubr.f32.gmra.mrb[0].mxu0 %v199
  %v364 = vpop.f32.mrb[0].mxu0
  %v365 = vadd.f32 0.0, %v364
  %v366 = vpop.f32.mrb[0].mxu0
  %v367 = vadd.f32 0.0, %v366
  %368 = vmatprep.mubr.f32.mxu0 0.0
  %369 = vmatmul.mubr.f32.gmra.mrb[0].mxu0 %v201
  %v370 = vpop.f32.mrb[0].mxu0
  %v371 = vadd.f32 0.0, %v370
  %v372 = vpop.f32.mrb[0].mxu0
  %v373 = vadd.f32 0.0, %v372
  %374 = vmatprep.mubr.f32.mxu0 0.0
  %375 = vmatmul.mubr.f32.gmra.mrb[0].mxu0 %v203
  %v376 = vpop.f32.mrb[0].mxu0
  %v377 = vadd.f32 0.0, %v376
  %v378 = vpop.f32.mrb[0].mxu0
  %v379 = vadd.f32 0.0, %v378
  %380 = vmatprep.mubr.f32.mxu0 0.0
  %381 = vmatmul.mubr.f32.gmra.mrb[0].mxu0 %v205
  %v382 = vpop.f32.mrb[0].mxu0
  %v383 = vadd.f32 0.0, %v382
  %v384 = vpop.f32.mrb[0].mxu0
  %v385 = vadd.f32 0.0, %v384
  %386 = vmatprep.mubr.f32.mxu0 0.0
  %387 = vmatmul.mubr.f32.gmra.mrb[0].mxu0 %v207
  %v388 = vpop.f32.mrb[0].mxu0
  %v389 = vadd.f32 0.0, %v388
  %v390 = vpop.f32.mrb[0].mxu0
  %v391 = vadd.f32 0.0, %v390
  %392 = vmatprep.mubr.f32.mxu0 0.0
  %393 = vmatmul.mubr.f32.gmra.mrb[0].mxu0 %v209
  %v394 = vpop.f32.mrb[0].mxu0
  %v395 = vadd.f32 0.0, %v394
  %v396 = vpop.f32.mrb[0].mxu0
  %v397 = vadd.f32 0.0, %v396
  %398 = vmatprep.mubr.f32.mxu0 0.0
  %399 = vmatmul.mubr.f32.gmra.mrb[0].mxu0 %v211
  %v400 = vpop.f32.mrb[0].mxu0
  %v401 = vadd.f32 0.0, %v400
  %v402 = vpop.f32.mrb[0].mxu0
  %v403 = vadd.f32 0.0, %v402
  %404 = vmatprep.mubr.f32.mxu0 0.0
  %405 = vmatmul.mubr.f32.gmra.mrb[0].mxu0 %v213
  %v406 = vpop.f32.mrb[0].mxu0
  %v407 = vadd.f32 0.0, %v406
  %v408 = vpop.f32.mrb[0].mxu0
  %v409 = vadd.f32 0.0, %v408
  %410 = vmatprep.mubr.f32.mxu0 0.0
  %411 = vmatmul.mubr.f32.gmra.mrb[0].mxu0 %v215
  %v412 = vpop.f32.mrb[0].mxu0
  %v413 = vadd.f32 0.0, %v412
  %v414 = vpop.f32.mrb[0].mxu0
  %v415 = vadd.f32 0.0, %v414
  %416 = vmatprep.mubr.f32.mxu0 0.0
  %417 = vmatmul.mubr.f32.gmra.mrb[0].mxu0 %v217
  %v418 = vpop.f32.mrb[0].mxu0
  %v419 = vadd.f32 0.0, %v418
  %v420 = vpop.f32.mrb[0].mxu0
  %v421 = vadd.f32 0.0, %v420
  %422 = vmatprep.mubr.f32.mxu0 0.0
  %423 = vmatmul.mubr.f32.gmra.mrb[0].mxu0 %v219
  %v424 = vpop.f32.mrb[0].mxu0
  %v425 = vadd.f32 0.0, %v424
  %v426 = vpop.f32.mrb[0].mxu0
  %v427 = vadd.f32 0.0, %v426
  %428 = vmatprep.mubr.f32.mxu0 0.0
  %429 = vmatmul.mubr.f32.gmra.mrb[0].mxu0 %v221
  %v430 = vpop.f32.mrb[0].mxu0
  %v431 = vadd.f32 0.0, %v430
  %v432 = vpop.f32.mrb[0].mxu0
  %v433 = vadd.f32 0.0, %v432
  %434 = vmatprep.mubr.f32.mxu0 0.0
  %435 = vmatmul.mubr.f32.gmra.mrb[0].mxu0 %v223
  %v436 = vpop.f32.mrb[0].mxu0
  %v437 = vadd.f32 0.0, %v436
  %v438 = vpop.f32.mrb[0].mxu0
  %v439 = vadd.f32 0.0, %v438
  %440 = vdwg.mxu0
  %v441 = vsel %vm176, %v38, 0
  %v443 = vsel %vm176, %v39, 0
  %v445 = vsel %vm176, %v40, 0
  %v447 = vsel %vm176, %v42, 0
  %v449 = vsel %vm176, %v43, 0
  %v451 = vsel %vm176, %v44, 0
  %v453 = vsel %vm176, %v46, 0
  %v455 = vsel %vm176, %v47, 0
  %v457 = vsel %vm176, %v48, 0
  %v459 = vsel %vm176, %v50, 0
  %v461 = vsel %vm176, %v51, 0
  %v463 = vsel %vm176, %v52, 0
  %v465 = vsel %vm176, %v54, 0
  %v467 = vsel %vm176, %v55, 0
  %v469 = vsel %vm176, %v56, 0
  %v471 = vsel %vm176, %v58, 0
  %v473 = vsel %vm176, %v59, 0
  %v475 = vsel %vm176, %v60, 0
  %v477 = vsel %vm176, %v62, 0
  %v479 = vsel %vm176, %v63, 0
  %v481 = vsel %vm176, %v64, 0
  %v483 = vsel %vm176, %v66, 0
  %v485 = vsel %vm176, %v67, 0
  %v487 = vsel %vm176, %v68, 0
  %v490 = vsel %vm225, %v76, 0
  %v493 = vsel %vm225, %v77, 0
  %495 = vmatprep.subr.mxu0 %v71
  %496 = vmatpush1.msra.mxu0 %v70
  %497 = vmatprep.subr.mxu0 %v73
  %498 = vmatpush1.msra.mxu0 %v72
  %499 = vmatprep.subr.mxu0 %v75
  %500 = vmatpush1.msra.mxu0 %v74
  %501 = vmatprep.subr.mxu0 %v493
  %502 = vmatpush1.msra.mxu0 %v490
  %503 = vmatprep.subr.mxu0 0.0
  %504 = vmatpush1.msra.mxu0 0.0
  %505 = vmatprep.subr.mxu0 0.0
  %506 = vmatpush1.msra.mxu0 0.0
  %507 = vmatprep.subr.mxu0 0.0
  %508 = vmatpush1.msra.mxu0 0.0
  %509 = vmatprep.subr.mxu0 0.0
  %510 = vmatpush1.msra.mxu0 0.0
  %511 = vmatprep.subr.mxu0 0.0
  %512 = vmatpush1.msra.mxu0 0.0
  %513 = vmatprep.subr.mxu0 0.0
  %514 = vmatpush1.msra.mxu0 0.0
  %515 = vmatprep.subr.mxu0 0.0
  %516 = vmatpush1.msra.mxu0 0.0
  %517 = vmatprep.subr.mxu0 0.0
  %518 = vmatpush1.msra.mxu0 0.0
  %519 = vmatprep.subr.mxu0 0.0
  %520 = vmatpush1.msra.mxu0 0.0
  %521 = vmatprep.subr.mxu0 0.0
  %522 = vmatpush1.msra.mxu0 0.0
  %523 = vmatprep.subr.mxu0 0.0
  %524 = vmatpush1.msra.mxu0 0.0
  %525 = vmatprep.subr.mxu0 0.0
  %526 = vmatpush1.msra.mxu0 0.0
  %527 = vmatprep.subr.mxu0 0.0
  %528 = vmatpush1.msra.mxu0 0.0
  %529 = vmatprep.subr.mxu0 0.0
  %530 = vmatpush1.msra.mxu0 0.0
  %531 = vmatprep.subr.mxu0 0.0
  %532 = vmatpush1.msra.mxu0 0.0
  %533 = vmatprep.subr.mxu0 0.0
  %534 = vmatpush1.msra.mxu0 0.0
  %535 = vmatprep.subr.mxu0 0.0
  %536 = vmatpush1.msra.mxu0 0.0
  %537 = vmatprep.subr.mxu0 0.0
  %538 = vmatpush1.msra.mxu0 0.0
  %539 = vmatprep.subr.mxu0 0.0
  %540 = vmatpush1.msra.mxu0 0.0
  %541 = vmatprep.subr.mxu0 0.0
  %542 = vmatpush1.msra.mxu0 0.0
  %543 = vmatprep.subr.mxu0 0.0
  %544 = vmatpush1.msra.mxu0 0.0
  %545 = vmatprep.subr.mxu0 0.0
  %546 = vmatpush1.msra.mxu0 0.0
  %547 = vmatprep.subr.mxu0 0.0
  %548 = vmatpush1.msra.mxu0 0.0
  %549 = vmatprep.subr.mxu0 0.0
  %550 = vmatpush1.msra.mxu0 0.0
  %551 = vmatprep.subr.mxu0 0.0
  %552 = vmatpush1.msra.mxu0 0.0
  %553 = vmatprep.subr.mxu0 0.0
  %554 = vmatpush1.msra.mxu0 0.0
  %555 = vmatprep.subr.mxu0 0.0
  %556 = vmatpush1.msra.mxu0 0.0
  %557 = vmatprep.subr.mxu0 0.0
  %558 = vmatpush1.msra.mxu0 0.0
  %559 = vmatprep.mubr.f32.mxu0 0.0
  %560 = vmatmul.mubr.f32.gmra.mrb[0].mxu0 %v441
  %v561 = vpop.f32.mrb[0].mxu0
  %v562 = vadd.f32 %v299, %v561
  %v563 = vpop.f32.mrb[0].mxu0
  %v564 = vadd.f32 %v301, %v563
  %565 = vmatprep.mubr.f32.mxu0 0.0
  %566 = vmatmul.mubr.f32.gmra.mrb[0].mxu0 %v443
  %v567 = vpop.f32.mrb[0].mxu0
  %v568 = vadd.f32 %v305, %v567
  %v569 = vpop.f32.mrb[0].mxu0
  %v570 = vadd.f32 %v307, %v569
  %571 = vmatprep.mubr.f32.mxu0 0.0
  %572 = vmatmul.mubr.f32.gmra.mrb[0].mxu0 %v445
  %v573 = vpop.f32.mrb[0].mxu0
  %v574 = vadd.f32 %v311, %v573
  %v575 = vpop.f32.mrb[0].mxu0
  %v576 = vadd.f32 %v313, %v575
  %577 = vmatprep.mubr.f32.mxu0 0.0
  %578 = vmatmul.mubr.f32.gmra.mrb[0].mxu0 %v447
  %v579 = vpop.f32.mrb[0].mxu0
  %v580 = vadd.f32 %v317, %v579
  %v581 = vpop.f32.mrb[0].mxu0
  %v582 = vadd.f32 %v319, %v581
  %583 = vmatprep.mubr.f32.mxu0 0.0
  %584 = vmatmul.mubr.f32.gmra.mrb[0].mxu0 %v449
  %v585 = vpop.f32.mrb[0].mxu0
  %v586 = vadd.f32 %v323, %v585
  %v587 = vpop.f32.mrb[0].mxu0
  %v588 = vadd.f32 %v325, %v587
  %589 = vmatprep.mubr.f32.mxu0 0.0
  %590 = vmatmul.mubr.f32.gmra.mrb[0].mxu0 %v451
  %v591 = vpop.f32.mrb[0].mxu0
  %v592 = vadd.f32 %v329, %v591
  %v593 = vpop.f32.mrb[0].mxu0
  %v594 = vadd.f32 %v331, %v593
  %595 = vmatprep.mubr.f32.mxu0 0.0
  %596 = vmatmul.mubr.f32.gmra.mrb[0].mxu0 %v453
  %v597 = vpop.f32.mrb[0].mxu0
  %v598 = vadd.f32 %v335, %v597
  %v599 = vpop.f32.mrb[0].mxu0
  %v600 = vadd.f32 %v337, %v599
  %601 = vmatprep.mubr.f32.mxu0 0.0
  %602 = vmatmul.mubr.f32.gmra.mrb[0].mxu0 %v455
  %v603 = vpop.f32.mrb[0].mxu0
  %v604 = vadd.f32 %v341, %v603
  %v605 = vpop.f32.mrb[0].mxu0
  %v606 = vadd.f32 %v343, %v605
  %607 = vmatprep.mubr.f32.mxu0 0.0
  %608 = vmatmul.mubr.f32.gmra.mrb[0].mxu0 %v457
  %v609 = vpop.f32.mrb[0].mxu0
  %v610 = vadd.f32 %v347, %v609
  %v611 = vpop.f32.mrb[0].mxu0
  %v612 = vadd.f32 %v349, %v611
  %613 = vmatprep.mubr.f32.mxu0 0.0
  %614 = vmatmul.mubr.f32.gmra.mrb[0].mxu0 %v459
  %v615 = vpop.f32.mrb[0].mxu0
  %v616 = vadd.f32 %v353, %v615
  %v617 = vpop.f32.mrb[0].mxu0
  %v618 = vadd.f32 %v355, %v617
  %619 = vmatprep.mubr.f32.mxu0 0.0
  %620 = vmatmul.mubr.f32.gmra.mrb[0].mxu0 %v461
  %v621 = vpop.f32.mrb[0].mxu0
  %v622 = vadd.f32 %v359, %v621
  %v623 = vpop.f32.mrb[0].mxu0
  %v624 = vadd.f32 %v361, %v623
  %625 = vmatprep.mubr.f32.mxu0 0.0
  %626 = vmatmul.mubr.f32.gmra.mrb[0].mxu0 %v463
  %v627 = vpop.f32.mrb[0].mxu0
  %v628 = vadd.f32 %v365, %v627
  %v629 = vpop.f32.mrb[0].mxu0
  %v630 = vadd.f32 %v367, %v629
  %631 = vmatprep.mubr.f32.mxu0 0.0
  %632 = vmatmul.mubr.f32.gmra.mrb[0].mxu0 %v465
  %v633 = vpop.f32.mrb[0].mxu0
  %v634 = vadd.f32 %v371, %v633
  %v635 = vpop.f32.mrb[0].mxu0
  %v636 = vadd.f32 %v373, %v635
  %637 = vmatprep.mubr.f32.mxu0 0.0
  %638 = vmatmul.mubr.f32.gmra.mrb[0].mxu0 %v467
  %v639 = vpop.f32.mrb[0].mxu0
  %v640 = vadd.f32 %v377, %v639
  %v641 = vpop.f32.mrb[0].mxu0
  %v642 = vadd.f32 %v379, %v641
  %643 = vmatprep.mubr.f32.mxu0 0.0
  %644 = vmatmul.mubr.f32.gmra.mrb[0].mxu0 %v469
  %v645 = vpop.f32.mrb[0].mxu0
  %v646 = vadd.f32 %v383, %v645
  %v647 = vpop.f32.mrb[0].mxu0
  %v648 = vadd.f32 %v385, %v647
  %649 = vmatprep.mubr.f32.mxu0 0.0
  %650 = vmatmul.mubr.f32.gmra.mrb[0].mxu0 %v471
  %v651 = vpop.f32.mrb[0].mxu0
  %v652 = vadd.f32 %v389, %v651
  %v653 = vpop.f32.mrb[0].mxu0
  %v654 = vadd.f32 %v391, %v653
  %655 = vmatprep.mubr.f32.mxu0 0.0
  %656 = vmatmul.mubr.f32.gmra.mrb[0].mxu0 %v473
  %v657 = vpop.f32.mrb[0].mxu0
  %v658 = vadd.f32 %v395, %v657
  %v659 = vpop.f32.mrb[0].mxu0
  %v660 = vadd.f32 %v397, %v659
  %661 = vmatprep.mubr.f32.mxu0 0.0
  %662 = vmatmul.mubr.f32.gmra.mrb[0].mxu0 %v475
  %v663 = vpop.f32.mrb[0].mxu0
  %v664 = vadd.f32 %v401, %v663
  %v665 = vpop.f32.mrb[0].mxu0
  %v666 = vadd.f32 %v403, %v665
  %667 = vmatprep.mubr.f32.mxu0 0.0
  %668 = vmatmul.mubr.f32.gmra.mrb[0].mxu0 %v477
  %v669 = vpop.f32.mrb[0].mxu0
  %v670 = vadd.f32 %v407, %v669
  %v671 = vpop.f32.mrb[0].mxu0
  %v672 = vadd.f32 %v409, %v671
  %673 = vmatprep.mubr.f32.mxu0 0.0
  %674 = vmatmul.mubr.f32.gmra.mrb[0].mxu0 %v479
  %v675 = vpop.f32.mrb[0].mxu0
  %v676 = vadd.f32 %v413, %v675
  %v677 = vpop.f32.mrb[0].mxu0
  %v678 = vadd.f32 %v415, %v677
  %679 = vmatprep.mubr.f32.mxu0 0.0
  %680 = vmatmul.mubr.f32.gmra.mrb[0].mxu0 %v481
  %v681 = vpop.f32.mrb[0].mxu0
  %v682 = vadd.f32 %v419, %v681
  %v683 = vpop.f32.mrb[0].mxu0
  %v684 = vadd.f32 %v421, %v683
  %685 = vmatprep.mubr.f32.mxu0 0.0
  %686 = vmatmul.mubr.f32.gmra.mrb[0].mxu0 %v483
  %v687 = vpop.f32.mrb[0].mxu0
  %v688 = vadd.f32 %v425, %v687
  %v689 = vpop.f32.mrb[0].mxu0
  %v690 = vadd.f32 %v427, %v689
  %691 = vmatprep.mubr.f32.mxu0 0.0
  %692 = vmatmul.mubr.f32.gmra.mrb[0].mxu0 %v485
  %v693 = vpop.f32.mrb[0].mxu0
  %v694 = vadd.f32 %v431, %v693
  %v695 = vpop.f32.mrb[0].mxu0
  %v696 = vadd.f32 %v433, %v695
  %697 = vmatprep.mubr.f32.mxu0 0.0
  %698 = vmatmul.mubr.f32.gmra.mrb[0].mxu0 %v487
  %v699 = vpop.f32.mrb[0].mxu0
  %v700 = vadd.f32 %v437, %v699
  %v701 = vpop.f32.mrb[0].mxu0
  %v702 = vadd.f32 %v439, %v701
  %703 = vdwg.mxu0
  %vm704 = vcmask 1045504
  %v705 = vrot.slane %v38, 2
  %v706 = vrot.slane %v39, 2
  %v707 = vsel %vm704, %v705, %v706
  %v708 = vrot.slane %v40, 2
  %v709 = vsel %vm704, %v706, %v708
  %v710 = vrot.slane %v41, 2
  %v711 = vsel %vm704, %v708, %v710
  %v712 = vrot.slane %v42, 2
  %v713 = vrot.slane %v43, 2
  %v714 = vsel %vm704, %v712, %v713
  %v715 = vrot.slane %v44, 2
  %v716 = vsel %vm704, %v713, %v715
  %v717 = vrot.slane %v45, 2
  %v718 = vsel %vm704, %v715, %v717
  %v719 = vrot.slane %v46, 2
  %v720 = vrot.slane %v47, 2
  %v721 = vsel %vm704, %v719, %v720
  %v722 = vrot.slane %v48, 2
  %v723 = vsel %vm704, %v720, %v722
  %v724 = vrot.slane %v49, 2
  %v725 = vsel %vm704, %v722, %v724
  %v726 = vrot.slane %v50, 2
  %v727 = vrot.slane %v51, 2
  %v728 = vsel %vm704, %v726, %v727
  %v729 = vrot.slane %v52, 2
  %v730 = vsel %vm704, %v727, %v729
  %v731 = vrot.slane %v53, 2
  %v732 = vsel %vm704, %v729, %v731
  %v733 = vrot.slane %v54, 2
  %v734 = vrot.slane %v55, 2
  %v735 = vsel %vm704, %v733, %v734
  %v736 = vrot.slane %v56, 2
  %v737 = vsel %vm704, %v734, %v736
  %v738 = vrot.slane %v57, 2
  %v739 = vsel %vm704, %v736, %v738
  %v740 = vrot.slane %v58, 2
  %v741 = vrot.slane %v59, 2
  %v742 = vsel %vm704, %v740, %v741
  %v743 = vrot.slane %v60, 2
  %v744 = vsel %vm704, %v741, %v743
  %v745 = vrot.slane %v61, 2
  %v746 = vsel %vm704, %v743, %v745
  %v747 = vrot.slane %v62, 2
  %v748 = vrot.slane %v63, 2
  %v749 = vsel %vm704, %v747, %v748
  %v750 = vrot.slane %v64, 2
  %v751 = vsel %vm704, %v748, %v750
  %v752 = vrot.slane %v65, 2
  %v753 = vsel %vm704, %v750, %v752
  %v754 = vrot.slane %v66, 2
  %v755 = vrot.slane %v67, 2
  %v756 = vsel %vm704, %v754, %v755
  %v757 = vrot.slane %v68, 2
  %v758 = vsel %vm704, %v755, %v757
  %v759 = vrot.slane %v69, 2
  %v760 = vsel %vm704, %v757, %v759
  %s761 = scalar_lea.vmem %s1, 128
  %v762 = vld [vmem:[%s761] sm:$0xff]
  %v763 = vld [vmem:[%s761 + $0x8] sm:$0xff]
  %v764 = vld [vmem:[%s761 + $0x10] sm:$0xff]
  %v765 = vld [vmem:[%s761 + $0x18] sm:$0xff]
  %v766 = vld [vmem:[%s761 + $0x20] sm:$0xff]
  %v767 = vld [vmem:[%s761 + $0x28] sm:$0xff]
  %v768 = vld [vmem:[%s761 + $0x30] sm:$0xf]
  %v769 = vld [vmem:[%s761 + $0x38] sm:$0xf]
  %v770 = vsel %vm176, %v707, 0
  %v772 = vsel %vm176, %v709, 0
  %v774 = vsel %vm176, %v711, 0
  %v776 = vsel %vm176, %v714, 0
  %v778 = vsel %vm176, %v716, 0
  %v780 = vsel %vm176, %v718, 0
  %v782 = vsel %vm176, %v721, 0
  %v784 = vsel %vm176, %v723, 0
  %v786 = vsel %vm176, %v725, 0
  %v788 = vsel %vm176, %v728, 0
  %v790 = vsel %vm176, %v730, 0
  %v792 = vsel %vm176, %v732, 0
  %v794 = vsel %vm176, %v735, 0
  %v796 = vsel %vm176, %v737, 0
  %v798 = vsel %vm176, %v739, 0
  %v800 = vsel %vm176, %v742, 0
  %v802 = vsel %vm176, %v744, 0
  %v804 = vsel %vm176, %v746, 0
  %v806 = vsel %vm176, %v749, 0
  %v808 = vsel %vm176, %v751, 0
  %v810 = vsel %vm176, %v753, 0
  %v812 = vsel %vm176, %v756, 0
  %v814 = vsel %vm176, %v758, 0
  %v816 = vsel %vm176, %v760, 0
  %v819 = vsel %vm225, %v768, 0
  %v822 = vsel %vm225, %v769, 0
  %824 = vmatprep.subr.mxu0 %v763
  %825 = vmatpush1.msra.mxu0 %v762
  %826 = vmatprep.subr.mxu0 %v765
  %827 = vmatpush1.msra.mxu0 %v764
  %828 = vmatprep.subr.mxu0 %v767
  %829 = vmatpush1.msra.mxu0 %v766
  %830 = vmatprep.subr.mxu0 %v822
  %831 = vmatpush1.msra.mxu0 %v819
  %832 = vmatprep.subr.mxu0 0.0
  %833 = vmatpush1.msra.mxu0 0.0
  %834 = vmatprep.subr.mxu0 0.0
  %835 = vmatpush1.msra.mxu0 0.0
  %836 = vmatprep.subr.mxu0 0.0
  %837 = vmatpush1.msra.mxu0 0.0
  %838 = vmatprep.subr.mxu0 0.0
  %839 = vmatpush1.msra.mxu0 0.0
  %840 = vmatprep.subr.mxu0 0.0
  %841 = vmatpush1.msra.mxu0 0.0
  %842 = vmatprep.subr.mxu0 0.0
  %843 = vmatpush1.msra.mxu0 0.0
  %844 = vmatprep.subr.mxu0 0.0
  %845 = vmatpush1.msra.mxu0 0.0
  %846 = vmatprep.subr.mxu0 0.0
  %847 = vmatpush1.msra.mxu0 0.0
  %848 = vmatprep.subr.mxu0 0.0
  %849 = vmatpush1.msra.mxu0 0.0
  %850 = vmatprep.subr.mxu0 0.0
  %851 = vmatpush1.msra.mxu0 0.0
  %852 = vmatprep.subr.mxu0 0.0
  %853 = vmatpush1.msra.mxu0 0.0
  %854 = vmatprep.subr.mxu0 0.0
  %855 = vmatpush1.msra.mxu0 0.0
  %856 = vmatprep.subr.mxu0 0.0
  %857 = vmatpush1.msra.mxu0 0.0
  %858 = vmatprep.subr.mxu0 0.0
  %859 = vmatpush1.msra.mxu0 0.0
  %860 = vmatprep.subr.mxu0 0.0
  %861 = vmatpush1.msra.mxu0 0.0
  %862 = vmatprep.subr.mxu0 0.0
  %863 = vmatpush1.msra.mxu0 0.0
  %864 = vmatprep.subr.mxu0 0.0
  %865 = vmatpush1.msra.mxu0 0.0
  %866 = vmatprep.subr.mxu0 0.0
  %867 = vmatpush1.msra.mxu0 0.0
  %868 = vmatprep.subr.mxu0 0.0
  %869 = vmatpush1.msra.mxu0 0.0
  %870 = vmatprep.subr.mxu0 0.0
  %871 = vmatpush1.msra.mxu0 0.0
  %872 = vmatprep.subr.mxu0 0.0
  %873 = vmatpush1.msra.mxu0 0.0
  %874 = vmatprep.subr.mxu0 0.0
  %875 = vmatpush1.msra.mxu0 0.0
  %876 = vmatprep.subr.mxu0 0.0
  %877 = vmatpush1.msra.mxu0 0.0
  %878 = vmatprep.subr.mxu0 0.0
  %879 = vmatpush1.msra.mxu0 0.0
  %880 = vmatprep.subr.mxu0 0.0
  %881 = vmatpush1.msra.mxu0 0.0
  %882 = vmatprep.subr.mxu0 0.0
  %883 = vmatpush1.msra.mxu0 0.0
  %884 = vmatprep.subr.mxu0 0.0
  %885 = vmatpush1.msra.mxu0 0.0
  %886 = vmatprep.subr.mxu0 0.0
  %887 = vmatpush1.msra.mxu0 0.0
  %888 = vmatprep.mubr.f32.mxu0 0.0
  %889 = vmatmul.mubr.f32.gmra.mrb[0].mxu0 %v770
  %v890 = vpop.f32.mrb[0].mxu0
  %v891 = vadd.f32 0.0, %v890
  %v892 = vpop.f32.mrb[0].mxu0
  %v893 = vadd.f32 0.0, %v892
  %894 = vmatprep.mubr.f32.mxu0 0.0
  %895 = vmatmul.mubr.f32.gmra.mrb[0].mxu0 %v772
  %v896 = vpop.f32.mrb[0].mxu0
  %v897 = vadd.f32 0.0, %v896
  %v898 = vpop.f32.mrb[0].mxu0
  %v899 = vadd.f32 0.0, %v898
  %900 = vmatprep.mubr.f32.mxu0 0.0
  %901 = vmatmul.mubr.f32.gmra.mrb[0].mxu0 %v774
  %v902 = vpop.f32.mrb[0].mxu0
  %v903 = vadd.f32 0.0, %v902
  %v904 = vpop.f32.mrb[0].mxu0
  %v905 = vadd.f32 0.0, %v904
  %906 = vmatprep.mubr.f32.mxu0 0.0
  %907 = vmatmul.mubr.f32.gmra.mrb[0].mxu0 %v776
  %v908 = vpop.f32.mrb[0].mxu0
  %v909 = vadd.f32 0.0, %v908
  %v910 = vpop.f32.mrb[0].mxu0
  %v911 = vadd.f32 0.0, %v910
  %912 = vmatprep.mubr.f32.mxu0 0.0
  %913 = vmatmul.mubr.f32.gmra.mrb[0].mxu0 %v778
  %v914 = vpop.f32.mrb[0].mxu0
  %v915 = vadd.f32 0.0, %v914
  %v916 = vpop.f32.mrb[0].mxu0
  %v917 = vadd.f32 0.0, %v916
  %918 = vmatprep.mubr.f32.mxu0 0.0
  %919 = vmatmul.mubr.f32.gmra.mrb[0].mxu0 %v780
  %v920 = vpop.f32.mrb[0].mxu0
  %v921 = vadd.f32 0.0, %v920
  %v922 = vpop.f32.mrb[0].mxu0
  %v923 = vadd.f32 0.0, %v922
  %924 = vmatprep.mubr.f32.mxu0 0.0
  %925 = vmatmul.mubr.f32.gmra.mrb[0].mxu0 %v782
  %v926 = vpop.f32.mrb[0].mxu0
  %v927 = vadd.f32 0.0, %v926
  %v928 = vpop.f32.mrb[0].mxu0
  %v929 = vadd.f32 0.0, %v928
  %930 = vmatprep.mubr.f32.mxu0 0.0
  %931 = vmatmul.mubr.f32.gmra.mrb[0].mxu0 %v784
  %v932 = vpop.f32.mrb[0].mxu0
  %v933 = vadd.f32 0.0, %v932
  %v934 = vpop.f32.mrb[0].mxu0
  %v935 = vadd.f32 0.0, %v934
  %936 = vmatprep.mubr.f32.mxu0 0.0
  %937 = vmatmul.mubr.f32.gmra.mrb[0].mxu0 %v786
  %v938 = vpop.f32.mrb[0].mxu0
  %v939 = vadd.f32 0.0, %v938
  %v940 = vpop.f32.mrb[0].mxu0
  %v941 = vadd.f32 0.0, %v940
  %942 = vmatprep.mubr.f32.mxu0 0.0
  %943 = vmatmul.mubr.f32.gmra.mrb[0].mxu0 %v788
  %v944 = vpop.f32.mrb[0].mxu0
  %v945 = vadd.f32 0.0, %v944
  %v946 = vpop.f32.mrb[0].mxu0
  %v947 = vadd.f32 0.0, %v946
  %948 = vmatprep.mubr.f32.mxu0 0.0
  %949 = vmatmul.mubr.f32.gmra.mrb[0].mxu0 %v790
  %v950 = vpop.f32.mrb[0].mxu0
  %v951 = vadd.f32 0.0, %v950
  %v952 = vpop.f32.mrb[0].mxu0
  %v953 = vadd.f32 0.0, %v952
  %954 = vmatprep.mubr.f32.mxu0 0.0
  %955 = vmatmul.mubr.f32.gmra.mrb[0].mxu0 %v792
  %v956 = vpop.f32.mrb[0].mxu0
  %v957 = vadd.f32 0.0, %v956
  %v958 = vpop.f32.mrb[0].mxu0
  %v959 = vadd.f32 0.0, %v958
  %960 = vmatprep.mubr.f32.mxu0 0.0
  %961 = vmatmul.mubr.f32.gmra.mrb[0].mxu0 %v794
  %v962 = vpop.f32.mrb[0].mxu0
  %v963 = vadd.f32 0.0, %v962
  %v964 = vpop.f32.mrb[0].mxu0
  %v965 = vadd.f32 0.0, %v964
  %966 = vmatprep.mubr.f32.mxu0 0.0
  %967 = vmatmul.mubr.f32.gmra.mrb[0].mxu0 %v796
  %v968 = vpop.f32.mrb[0].mxu0
  %v969 = vadd.f32 0.0, %v968
  %v970 = vpop.f32.mrb[0].mxu0
  %v971 = vadd.f32 0.0, %v970
  %972 = vmatprep.mubr.f32.mxu0 0.0
  %973 = vmatmul.mubr.f32.gmra.mrb[0].mxu0 %v798
  %v974 = vpop.f32.mrb[0].mxu0
  %v975 = vadd.f32 0.0, %v974
  %v976 = vpop.f32.mrb[0].mxu0
  %v977 = vadd.f32 0.0, %v976
  %978 = vmatprep.mubr.f32.mxu0 0.0
  %979 = vmatmul.mubr.f32.gmra.mrb[0].mxu0 %v800
  %v980 = vpop.f32.mrb[0].mxu0
  %v981 = vadd.f32 0.0, %v980
  %v982 = vpop.f32.mrb[0].mxu0
  %v983 = vadd.f32 0.0, %v982
  %984 = vmatprep.mubr.f32.mxu0 0.0
  %985 = vmatmul.mubr.f32.gmra.mrb[0].mxu0 %v802
  %v986 = vpop.f32.mrb[0].mxu0
  %v987 = vadd.f32 0.0, %v986
  %v988 = vpop.f32.mrb[0].mxu0
  %v989 = vadd.f32 0.0, %v988
  %990 = vmatprep.mubr.f32.mxu0 0.0
  %991 = vmatmul.mubr.f32.gmra.mrb[0].mxu0 %v804
  %v992 = vpop.f32.mrb[0].mxu0
  %v993 = vadd.f32 0.0, %v992
  %v994 = vpop.f32.mrb[0].mxu0
  %v995 = vadd.f32 0.0, %v994
  %996 = vmatprep.mubr.f32.mxu0 0.0
  %997 = vmatmul.mubr.f32.gmra.mrb[0].mxu0 %v806
  %v998 = vpop.f32.mrb[0].mxu0
  %v999 = vadd.f32 0.0, %v998
  %v1000 = vpop.f32.mrb[0].mxu0
  %v1001 = vadd.f32 0.0, %v1000
  %1002 = vmatprep.mubr.f32.mxu0 0.0
  %1003 = vmatmul.mubr.f32.gmra.mrb[0].mxu0 %v808
  %v1004 = vpop.f32.mrb[0].mxu0
  %v1005 = vadd.f32 0.0, %v1004
  %v1006 = vpop.f32.mrb[0].mxu0
  %v1007 = vadd.f32 0.0, %v1006
  %1008 = vmatprep.mubr.f32.mxu0 0.0
  %1009 = vmatmul.mubr.f32.gmra.mrb[0].mxu0 %v810
  %v1010 = vpop.f32.mrb[0].mxu0
  %v1011 = vadd.f32 0.0, %v1010
  %v1012 = vpop.f32.mrb[0].mxu0
  %v1013 = vadd.f32 0.0, %v1012
  %1014 = vmatprep.mubr.f32.mxu0 0.0
  %1015 = vmatmul.mubr.f32.gmra.mrb[0].mxu0 %v812
  %v1016 = vpop.f32.mrb[0].mxu0
  %v1017 = vadd.f32 0.0, %v1016
  %v1018 = vpop.f32.mrb[0].mxu0
  %v1019 = vadd.f32 0.0, %v1018
  %1020 = vmatprep.mubr.f32.mxu0 0.0
  %1021 = vmatmul.mubr.f32.gmra.mrb[0].mxu0 %v814
  %v1022 = vpop.f32.mrb[0].mxu0
  %v1023 = vadd.f32 0.0, %v1022
  %v1024 = vpop.f32.mrb[0].mxu0
  %v1025 = vadd.f32 0.0, %v1024
  %1026 = vmatprep.mubr.f32.mxu0 0.0
  %1027 = vmatmul.mubr.f32.gmra.mrb[0].mxu0 %v816
  %v1028 = vpop.f32.mrb[0].mxu0
  %v1029 = vadd.f32 0.0, %v1028
  %v1030 = vpop.f32.mrb[0].mxu0
  %v1031 = vadd.f32 0.0, %v1030
  %1032 = vdwg.mxu0
  %v1033 = vadd.f32 %v562, %v891
  %v1034 = vadd.f32 %v564, %v893
  %v1035 = vadd.f32 %v568, %v897
  %v1036 = vadd.f32 %v570, %v899
  %v1037 = vadd.f32 %v574, %v903
  %v1038 = vadd.f32 %v576, %v905
  %v1039 = vadd.f32 %v580, %v909
  %v1040 = vadd.f32 %v582, %v911
  %v1041 = vadd.f32 %v586, %v915
  %v1042 = vadd.f32 %v588, %v917
  %v1043 = vadd.f32 %v592, %v921
  %v1044 = vadd.f32 %v594, %v923
  %v1045 = vadd.f32 %v598, %v927
  %v1046 = vadd.f32 %v600, %v929
  %v1047 = vadd.f32 %v604, %v933
  %v1048 = vadd.f32 %v606, %v935
  %v1049 = vadd.f32 %v610, %v939
  %v1050 = vadd.f32 %v612, %v941
  %v1051 = vadd.f32 %v616, %v945
  %v1052 = vadd.f32 %v618, %v947
  %v1053 = vadd.f32 %v622, %v951
  %v1054 = vadd.f32 %v624, %v953
  %v1055 = vadd.f32 %v628, %v957
  %v1056 = vadd.f32 %v630, %v959
  %v1057 = vadd.f32 %v634, %v963
  %v1058 = vadd.f32 %v636, %v965
  %v1059 = vadd.f32 %v640, %v969
  %v1060 = vadd.f32 %v642, %v971
  %v1061 = vadd.f32 %v646, %v975
  %v1062 = vadd.f32 %v648, %v977
  %v1063 = vadd.f32 %v652, %v981
  %v1064 = vadd.f32 %v654, %v983
  %v1065 = vadd.f32 %v658, %v987
  %v1066 = vadd.f32 %v660, %v989
  %v1067 = vadd.f32 %v664, %v993
  %v1068 = vadd.f32 %v666, %v995
  %v1069 = vadd.f32 %v670, %v999
  %v1070 = vadd.f32 %v672, %v1001
  %v1071 = vadd.f32 %v676, %v1005
  %v1072 = vadd.f32 %v678, %v1007
  %v1073 = vadd.f32 %v682, %v1011
  %v1074 = vadd.f32 %v684, %v1013
  %v1075 = vadd.f32 %v688, %v1017
  %v1076 = vadd.f32 %v690, %v1019
  %v1077 = vadd.f32 %v694, %v1023
  %v1078 = vadd.f32 %v696, %v1025
  %v1079 = vadd.f32 %v700, %v1029
  %v1080 = vadd.f32 %v702, %v1031
  %vm1081 = vcmask 1044480
  %v1082 = vrot.slane %v38, 3
  %v1083 = vrot.slane %v39, 3
  %v1084 = vsel %vm1081, %v1082, %v1083
  %v1085 = vrot.slane %v40, 3
  %v1086 = vsel %vm1081, %v1083, %v1085
  %v1087 = vrot.slane %v41, 3
  %v1088 = vsel %vm1081, %v1085, %v1087
  %v1089 = vrot.slane %v42, 3
  %v1090 = vrot.slane %v43, 3
  %v1091 = vsel %vm1081, %v1089, %v1090
  %v1092 = vrot.slane %v44, 3
  %v1093 = vsel %vm1081, %v1090, %v1092
  %v1094 = vrot.slane %v45, 3
  %v1095 = vsel %vm1081, %v1092, %v1094
  %v1096 = vrot.slane %v46, 3
  %v1097 = vrot.slane %v47, 3
  %v1098 = vsel %vm1081, %v1096, %v1097
  %v1099 = vrot.slane %v48, 3
  %v1100 = vsel %vm1081, %v1097, %v1099
  %v1101 = vrot.slane %v49, 3
  %v1102 = vsel %vm1081, %v1099, %v1101
  %v1103 = vrot.slane %v50, 3
  %v1104 = vrot.slane %v51, 3
  %v1105 = vsel %vm1081, %v1103, %v1104
  %v1106 = vrot.slane %v52, 3
  %v1107 = vsel %vm1081, %v1104, %v1106
  %v1108 = vrot.slane %v53, 3
  %v1109 = vsel %vm1081, %v1106, %v1108
  %v1110 = vrot.slane %v54, 3
  %v1111 = vrot.slane %v55, 3
  %v1112 = vsel %vm1081, %v1110, %v1111
  %v1113 = vrot.slane %v56, 3
  %v1114 = vsel %vm1081, %v1111, %v1113
  %v1115 = vrot.slane %v57, 3
  %v1116 = vsel %vm1081, %v1113, %v1115
  %v1117 = vrot.slane %v58, 3
  %v1118 = vrot.slane %v59, 3
  %v1119 = vsel %vm1081, %v1117, %v1118
  %v1120 = vrot.slane %v60, 3
  %v1121 = vsel %vm1081, %v1118, %v1120
  %v1122 = vrot.slane %v61, 3
  %v1123 = vsel %vm1081, %v1120, %v1122
  %v1124 = vrot.slane %v62, 3
  %v1125 = vrot.slane %v63, 3
  %v1126 = vsel %vm1081, %v1124, %v1125
  %v1127 = vrot.slane %v64, 3
  %v1128 = vsel %vm1081, %v1125, %v1127
  %v1129 = vrot.slane %v65, 3
  %v1130 = vsel %vm1081, %v1127, %v1129
  %v1131 = vrot.slane %v66, 3
  %v1132 = vrot.slane %v67, 3
  %v1133 = vsel %vm1081, %v1131, %v1132
  %v1134 = vrot.slane %v68, 3
  %v1135 = vsel %vm1081, %v1132, %v1134
  %v1136 = vrot.slane %v69, 3
  %v1137 = vsel %vm1081, %v1134, %v1136
  %s1138 = scalar_lea.vmem %s1, 192
  %v1139 = vld [vmem:[%s1138] sm:$0xff]
  %v1140 = vld [vmem:[%s1138 + $0x8] sm:$0xff]
  %v1141 = vld [vmem:[%s1138 + $0x10] sm:$0xff]
  %v1142 = vld [vmem:[%s1138 + $0x18] sm:$0xff]
  %v1143 = vld [vmem:[%s1138 + $0x20] sm:$0xff]
  %v1144 = vld [vmem:[%s1138 + $0x28] sm:$0xff]
  %v1145 = vld [vmem:[%s1138 + $0x30] sm:$0xf]
  %v1146 = vld [vmem:[%s1138 + $0x38] sm:$0xf]
  %v1147 = vsel %vm176, %v1084, 0
  %v1149 = vsel %vm176, %v1086, 0
  %v1151 = vsel %vm176, %v1088, 0
  %v1153 = vsel %vm176, %v1091, 0
  %v1155 = vsel %vm176, %v1093, 0
  %v1157 = vsel %vm176, %v1095, 0
  %v1159 = vsel %vm176, %v1098, 0
  %v1161 = vsel %vm176, %v1100, 0
  %v1163 = vsel %vm176, %v1102, 0
  %v1165 = vsel %vm176, %v1105, 0
  %v1167 = vsel %vm176, %v1107, 0
  %v1169 = vsel %vm176, %v1109, 0
  %v1171 = vsel %vm176, %v1112, 0
  %v1173 = vsel %vm176, %v1114, 0
  %v1175 = vsel %vm176, %v1116, 0
  %v1177 = vsel %vm176, %v1119, 0
  %v1179 = vsel %vm176, %v1121, 0
  %v1181 = vsel %vm176, %v1123, 0
  %v1183 = vsel %vm176, %v1126, 0
  %v1185 = vsel %vm176, %v1128, 0
  %v1187 = vsel %vm176, %v1130, 0
  %v1189 = vsel %vm176, %v1133, 0
  %v1191 = vsel %vm176, %v1135, 0
  %v1193 = vsel %vm176, %v1137, 0
  %v1196 = vsel %vm225, %v1145, 0
  %v1199 = vsel %vm225, %v1146, 0
  %1201 = vmatprep.subr.mxu0 %v1140
  %1202 = vmatpush1.msra.mxu0 %v1139
  %1203 = vmatprep.subr.mxu0 %v1142
  %1204 = vmatpush1.msra.mxu0 %v1141
  %1205 = vmatprep.subr.mxu0 %v1144
  %1206 = vmatpush1.msra.mxu0 %v1143
  %1207 = vmatprep.subr.mxu0 %v1199
  %1208 = vmatpush1.msra.mxu0 %v1196
  %1209 = vmatprep.subr.mxu0 0.0
  %1210 = vmatpush1.msra.mxu0 0.0
  %1211 = vmatprep.subr.mxu0 0.0
  %1212 = vmatpush1.msra.mxu0 0.0
  %1213 = vmatprep.subr.mxu0 0.0
  %1214 = vmatpush1.msra.mxu0 0.0
  %1215 = vmatprep.subr.mxu0 0.0
  %1216 = vmatpush1.msra.mxu0 0.0
  %1217 = vmatprep.subr.mxu0 0.0
  %1218 = vmatpush1.msra.mxu0 0.0
  %1219 = vmatprep.subr.mxu0 0.0
  %1220 = vmatpush1.msra.mxu0 0.0
  %1221 = vmatprep.subr.mxu0 0.0
  %1222 = vmatpush1.msra.mxu0 0.0
  %1223 = vmatprep.subr.mxu0 0.0
  %1224 = vmatpush1.msra.mxu0 0.0
  %1225 = vmatprep.subr.mxu0 0.0
  %1226 = vmatpush1.msra.mxu0 0.0
  %1227 = vmatprep.subr.mxu0 0.0
  %1228 = vmatpush1.msra.mxu0 0.0
  %1229 = vmatprep.subr.mxu0 0.0
  %1230 = vmatpush1.msra.mxu0 0.0
  %1231 = vmatprep.subr.mxu0 0.0
  %1232 = vmatpush1.msra.mxu0 0.0
  %1233 = vmatprep.subr.mxu0 0.0
  %1234 = vmatpush1.msra.mxu0 0.0
  %1235 = vmatprep.subr.mxu0 0.0
  %1236 = vmatpush1.msra.mxu0 0.0
  %1237 = vmatprep.subr.mxu0 0.0
  %1238 = vmatpush1.msra.mxu0 0.0
  %1239 = vmatprep.subr.mxu0 0.0
  %1240 = vmatpush1.msra.mxu0 0.0
  %1241 = vmatprep.subr.mxu0 0.0
  %1242 = vmatpush1.msra.mxu0 0.0
  %1243 = vmatprep.subr.mxu0 0.0
  %1244 = vmatpush1.msra.mxu0 0.0
  %1245 = vmatprep.subr.mxu0 0.0
  %1246 = vmatpush1.msra.mxu0 0.0
  %1247 = vmatprep.subr.mxu0 0.0
  %1248 = vmatpush1.msra.mxu0 0.0
  %1249 = vmatprep.subr.mxu0 0.0
  %1250 = vmatpush1.msra.mxu0 0.0
  %1251 = vmatprep.subr.mxu0 0.0
  %1252 = vmatpush1.msra.mxu0 0.0
  %1253 = vmatprep.subr.mxu0 0.0
  %1254 = vmatpush1.msra.mxu0 0.0
  %1255 = vmatprep.subr.mxu0 0.0
  %1256 = vmatpush1.msra.mxu0 0.0
  %1257 = vmatprep.subr.mxu0 0.0
  %1258 = vmatpush1.msra.mxu0 0.0
  %1259 = vmatprep.subr.mxu0 0.0
  %1260 = vmatpush1.msra.mxu0 0.0
  %1261 = vmatprep.subr.mxu0 0.0
  %1262 = vmatpush1.msra.mxu0 0.0
  %1263 = vmatprep.subr.mxu0 0.0
  %1264 = vmatpush1.msra.mxu0 0.0
  %1265 = vmatprep.mubr.f32.mxu0 0.0
  %1266 = vmatmul.mubr.f32.gmra.mrb[0].mxu0 %v1147
  %v1267 = vpop.f32.mrb[0].mxu0
  %v1268 = vadd.f32 0.0, %v1267
  %v1269 = vpop.f32.mrb[0].mxu0
  %v1270 = vadd.f32 0.0, %v1269
  %1271 = vmatprep.mubr.f32.mxu0 0.0
  %1272 = vmatmul.mubr.f32.gmra.mrb[0].mxu0 %v1149
  %v1273 = vpop.f32.mrb[0].mxu0
  %v1274 = vadd.f32 0.0, %v1273
  %v1275 = vpop.f32.mrb[0].mxu0
  %v1276 = vadd.f32 0.0, %v1275
  %1277 = vmatprep.mubr.f32.mxu0 0.0
  %1278 = vmatmul.mubr.f32.gmra.mrb[0].mxu0 %v1151
  %v1279 = vpop.f32.mrb[0].mxu0
  %v1280 = vadd.f32 0.0, %v1279
  %v1281 = vpop.f32.mrb[0].mxu0
  %v1282 = vadd.f32 0.0, %v1281
  %1283 = vmatprep.mubr.f32.mxu0 0.0
  %1284 = vmatmul.mubr.f32.gmra.mrb[0].mxu0 %v1153
  %v1285 = vpop.f32.mrb[0].mxu0
  %v1286 = vadd.f32 0.0, %v1285
  %v1287 = vpop.f32.mrb[0].mxu0
  %v1288 = vadd.f32 0.0, %v1287
  %1289 = vmatprep.mubr.f32.mxu0 0.0
  %1290 = vmatmul.mubr.f32.gmra.mrb[0].mxu0 %v1155
  %v1291 = vpop.f32.mrb[0].mxu0
  %v1292 = vadd.f32 0.0, %v1291
  %v1293 = vpop.f32.mrb[0].mxu0
  %v1294 = vadd.f32 0.0, %v1293
  %1295 = vmatprep.mubr.f32.mxu0 0.0
  %1296 = vmatmul.mubr.f32.gmra.mrb[0].mxu0 %v1157
  %v1297 = vpop.f32.mrb[0].mxu0
  %v1298 = vadd.f32 0.0, %v1297
  %v1299 = vpop.f32.mrb[0].mxu0
  %v1300 = vadd.f32 0.0, %v1299
  %1301 = vmatprep.mubr.f32.mxu0 0.0
  %1302 = vmatmul.mubr.f32.gmra.mrb[0].mxu0 %v1159
  %v1303 = vpop.f32.mrb[0].mxu0
  %v1304 = vadd.f32 0.0, %v1303
  %v1305 = vpop.f32.mrb[0].mxu0
  %v1306 = vadd.f32 0.0, %v1305
  %1307 = vmatprep.mubr.f32.mxu0 0.0
  %1308 = vmatmul.mubr.f32.gmra.mrb[0].mxu0 %v1161
  %v1309 = vpop.f32.mrb[0].mxu0
  %v1310 = vadd.f32 0.0, %v1309
  %v1311 = vpop.f32.mrb[0].mxu0
  %v1312 = vadd.f32 0.0, %v1311
  %1313 = vmatprep.mubr.f32.mxu0 0.0
  %1314 = vmatmul.mubr.f32.gmra.mrb[0].mxu0 %v1163
  %v1315 = vpop.f32.mrb[0].mxu0
  %v1316 = vadd.f32 0.0, %v1315
  %v1317 = vpop.f32.mrb[0].mxu0
  %v1318 = vadd.f32 0.0, %v1317
  %1319 = vmatprep.mubr.f32.mxu0 0.0
  %1320 = vmatmul.mubr.f32.gmra.mrb[0].mxu0 %v1165
  %v1321 = vpop.f32.mrb[0].mxu0
  %v1322 = vadd.f32 0.0, %v1321
  %v1323 = vpop.f32.mrb[0].mxu0
  %v1324 = vadd.f32 0.0, %v1323
  %1325 = vmatprep.mubr.f32.mxu0 0.0
  %1326 = vmatmul.mubr.f32.gmra.mrb[0].mxu0 %v1167
  %v1327 = vpop.f32.mrb[0].mxu0
  %v1328 = vadd.f32 0.0, %v1327
  %v1329 = vpop.f32.mrb[0].mxu0
  %v1330 = vadd.f32 0.0, %v1329
  %1331 = vmatprep.mubr.f32.mxu0 0.0
  %1332 = vmatmul.mubr.f32.gmra.mrb[0].mxu0 %v1169
  %v1333 = vpop.f32.mrb[0].mxu0
  %v1334 = vadd.f32 0.0, %v1333
  %v1335 = vpop.f32.mrb[0].mxu0
  %v1336 = vadd.f32 0.0, %v1335
  %1337 = vmatprep.mubr.f32.mxu0 0.0
  %1338 = vmatmul.mubr.f32.gmra.mrb[0].mxu0 %v1171
  %v1339 = vpop.f32.mrb[0].mxu0
  %v1340 = vadd.f32 0.0, %v1339
  %v1341 = vpop.f32.mrb[0].mxu0
  %v1342 = vadd.f32 0.0, %v1341
  %1343 = vmatprep.mubr.f32.mxu0 0.0
  %1344 = vmatmul.mubr.f32.gmra.mrb[0].mxu0 %v1173
  %v1345 = vpop.f32.mrb[0].mxu0
  %v1346 = vadd.f32 0.0, %v1345
  %v1347 = vpop.f32.mrb[0].mxu0
  %v1348 = vadd.f32 0.0, %v1347
  %1349 = vmatprep.mubr.f32.mxu0 0.0
  %1350 = vmatmul.mubr.f32.gmra.mrb[0].mxu0 %v1175
  %v1351 = vpop.f32.mrb[0].mxu0
  %v1352 = vadd.f32 0.0, %v1351
  %v1353 = vpop.f32.mrb[0].mxu0
  %v1354 = vadd.f32 0.0, %v1353
  %1355 = vmatprep.mubr.f32.mxu0 0.0
  %1356 = vmatmul.mubr.f32.gmra.mrb[0].mxu0 %v1177
  %v1357 = vpop.f32.mrb[0].mxu0
  %v1358 = vadd.f32 0.0, %v1357
  %v1359 = vpop.f32.mrb[0].mxu0
  %v1360 = vadd.f32 0.0, %v1359
  %1361 = vmatprep.mubr.f32.mxu0 0.0
  %1362 = vmatmul.mubr.f32.gmra.mrb[0].mxu0 %v1179
  %v1363 = vpop.f32.mrb[0].mxu0
  %v1364 = vadd.f32 0.0, %v1363
  %v1365 = vpop.f32.mrb[0].mxu0
  %v1366 = vadd.f32 0.0, %v1365
  %1367 = vmatprep.mubr.f32.mxu0 0.0
  %1368 = vmatmul.mubr.f32.gmra.mrb[0].mxu0 %v1181
  %v1369 = vpop.f32.mrb[0].mxu0
  %v1370 = vadd.f32 0.0, %v1369
  %v1371 = vpop.f32.mrb[0].mxu0
  %v1372 = vadd.f32 0.0, %v1371
  %1373 = vmatprep.mubr.f32.mxu0 0.0
  %1374 = vmatmul.mubr.f32.gmra.mrb[0].mxu0 %v1183
  %v1375 = vpop.f32.mrb[0].mxu0
  %v1376 = vadd.f32 0.0, %v1375
  %v1377 = vpop.f32.mrb[0].mxu0
  %v1378 = vadd.f32 0.0, %v1377
  %1379 = vmatprep.mubr.f32.mxu0 0.0
  %1380 = vmatmul.mubr.f32.gmra.mrb[0].mxu0 %v1185
  %v1381 = vpop.f32.mrb[0].mxu0
  %v1382 = vadd.f32 0.0, %v1381
  %v1383 = vpop.f32.mrb[0].mxu0
  %v1384 = vadd.f32 0.0, %v1383
  %1385 = vmatprep.mubr.f32.mxu0 0.0
  %1386 = vmatmul.mubr.f32.gmra.mrb[0].mxu0 %v1187
  %v1387 = vpop.f32.mrb[0].mxu0
  %v1388 = vadd.f32 0.0, %v1387
  %v1389 = vpop.f32.mrb[0].mxu0
  %v1390 = vadd.f32 0.0, %v1389
  %1391 = vmatprep.mubr.f32.mxu0 0.0
  %1392 = vmatmul.mubr.f32.gmra.mrb[0].mxu0 %v1189
  %v1393 = vpop.f32.mrb[0].mxu0
  %v1394 = vadd.f32 0.0, %v1393
  %v1395 = vpop.f32.mrb[0].mxu0
  %v1396 = vadd.f32 0.0, %v1395
  %1397 = vmatprep.mubr.f32.mxu0 0.0
  %1398 = vmatmul.mubr.f32.gmra.mrb[0].mxu0 %v1191
  %v1399 = vpop.f32.mrb[0].mxu0
  %v1400 = vadd.f32 0.0, %v1399
  %v1401 = vpop.f32.mrb[0].mxu0
  %v1402 = vadd.f32 0.0, %v1401
  %1403 = vmatprep.mubr.f32.mxu0 0.0
  %1404 = vmatmul.mubr.f32.gmra.mrb[0].mxu0 %v1193
  %v1405 = vpop.f32.mrb[0].mxu0
  %v1406 = vadd.f32 0.0, %v1405
  %v1407 = vpop.f32.mrb[0].mxu0
  %v1408 = vadd.f32 0.0, %v1407
  %1409 = vdwg.mxu0
  %v1410 = vadd.f32 %v1033, %v1268
  %v1411 = vadd.f32 %v1034, %v1270
  %v1412 = vadd.f32 %v1035, %v1274
  %v1413 = vadd.f32 %v1036, %v1276
  %v1414 = vadd.f32 %v1037, %v1280
  %v1415 = vadd.f32 %v1038, %v1282
  %v1416 = vadd.f32 %v1039, %v1286
  %v1417 = vadd.f32 %v1040, %v1288
  %v1418 = vadd.f32 %v1041, %v1292
  %v1419 = vadd.f32 %v1042, %v1294
  %v1420 = vadd.f32 %v1043, %v1298
  %v1421 = vadd.f32 %v1044, %v1300
  %v1422 = vadd.f32 %v1045, %v1304
  %v1423 = vadd.f32 %v1046, %v1306
  %v1424 = vadd.f32 %v1047, %v1310
  %v1425 = vadd.f32 %v1048, %v1312
  %v1426 = vadd.f32 %v1049, %v1316
  %v1427 = vadd.f32 %v1050, %v1318
  %v1428 = vadd.f32 %v1051, %v1322
  %v1429 = vadd.f32 %v1052, %v1324
  %v1430 = vadd.f32 %v1053, %v1328
  %v1431 = vadd.f32 %v1054, %v1330
  %v1432 = vadd.f32 %v1055, %v1334
  %v1433 = vadd.f32 %v1056, %v1336
  %v1434 = vadd.f32 %v1057, %v1340
  %v1435 = vadd.f32 %v1058, %v1342
  %v1436 = vadd.f32 %v1059, %v1346
  %v1437 = vadd.f32 %v1060, %v1348
  %v1438 = vadd.f32 %v1061, %v1352
  %v1439 = vadd.f32 %v1062, %v1354
  %v1440 = vadd.f32 %v1063, %v1358
  %v1441 = vadd.f32 %v1064, %v1360
  %v1442 = vadd.f32 %v1065, %v1364
  %v1443 = vadd.f32 %v1066, %v1366
  %v1444 = vadd.f32 %v1067, %v1370
  %v1445 = vadd.f32 %v1068, %v1372
  %v1446 = vadd.f32 %v1069, %v1376
  %v1447 = vadd.f32 %v1070, %v1378
  %v1448 = vadd.f32 %v1071, %v1382
  %v1449 = vadd.f32 %v1072, %v1384
  %v1450 = vadd.f32 %v1073, %v1388
  %v1451 = vadd.f32 %v1074, %v1390
  %v1452 = vadd.f32 %v1075, %v1394
  %v1453 = vadd.f32 %v1076, %v1396
  %v1454 = vadd.f32 %v1077, %v1400
  %v1455 = vadd.f32 %v1078, %v1402
  %v1456 = vadd.f32 %v1079, %v1406
  %v1457 = vadd.f32 %v1080, %v1408
  %v1458 = vrot.slane %v38, 4
  %v1459 = vrot.slane %v39, 4
  %v1460 = vsel %vm225, %v1458, %v1459
  %v1461 = vrot.slane %v40, 4
  %v1462 = vsel %vm225, %v1459, %v1461
  %v1463 = vrot.slane %v41, 4
  %v1464 = vsel %vm225, %v1461, %v1463
  %v1465 = vrot.slane %v42, 4
  %v1466 = vrot.slane %v43, 4
  %v1467 = vsel %vm225, %v1465, %v1466
  %v1468 = vrot.slane %v44, 4
  %v1469 = vsel %vm225, %v1466, %v1468
  %v1470 = vrot.slane %v45, 4
  %v1471 = vsel %vm225, %v1468, %v1470
  %v1472 = vrot.slane %v46, 4
  %v1473 = vrot.slane %v47, 4
  %v1474 = vsel %vm225, %v1472, %v1473
  %v1475 = vrot.slane %v48, 4
  %v1476 = vsel %vm225, %v1473, %v1475
  %v1477 = vrot.slane %v49, 4
  %v1478 = vsel %vm225, %v1475, %v1477
  %v1479 = vrot.slane %v50, 4
  %v1480 = vrot.slane %v51, 4
  %v1481 = vsel %vm225, %v1479, %v1480
  %v1482 = vrot.slane %v52, 4
  %v1483 = vsel %vm225, %v1480, %v1482
  %v1484 = vrot.slane %v53, 4
  %v1485 = vsel %vm225, %v1482, %v1484
  %v1486 = vrot.slane %v54, 4
  %v1487 = vrot.slane %v55, 4
  %v1488 = vsel %vm225, %v1486, %v1487
  %v1489 = vrot.slane %v56, 4
  %v1490 = vsel %vm225, %v1487, %v1489
  %v1491 = vrot.slane %v57, 4
  %v1492 = vsel %vm225, %v1489, %v1491
  %v1493 = vrot.slane %v58, 4
  %v1494 = vrot.slane %v59, 4
  %v1495 = vsel %vm225, %v1493, %v1494
  %v1496 = vrot.slane %v60, 4
  %v1497 = vsel %vm225, %v1494, %v1496
  %v1498 = vrot.slane %v61, 4
  %v1499 = vsel %vm225, %v1496, %v1498
  %v1500 = vrot.slane %v62, 4
  %v1501 = vrot.slane %v63, 4
  %v1502 = vsel %vm225, %v1500, %v1501
  %v1503 = vrot.slane %v64, 4
  %v1504 = vsel %vm225, %v1501, %v1503
  %v1505 = vrot.slane %v65, 4
  %v1506 = vsel %vm225, %v1503, %v1505
  %v1507 = vrot.slane %v66, 4
  %v1508 = vrot.slane %v67, 4
  %v1509 = vsel %vm225, %v1507, %v1508
  %v1510 = vrot.slane %v68, 4
  %v1511 = vsel %vm225, %v1508, %v1510
  %v1512 = vrot.slane %v69, 4
  %v1513 = vsel %vm225, %v1510, %v1512
  %s1514 = scalar_lea.vmem %s1, 256
  %v1515 = vld [vmem:[%s1514] sm:$0xff]
  %v1516 = vld [vmem:[%s1514 + $0x8] sm:$0xff]
  %v1517 = vld [vmem:[%s1514 + $0x10] sm:$0xff]
  %v1518 = vld [vmem:[%s1514 + $0x18] sm:$0xff]
  %v1519 = vld [vmem:[%s1514 + $0x20] sm:$0xff]
  %v1520 = vld [vmem:[%s1514 + $0x28] sm:$0xff]
  %v1521 = vld [vmem:[%s1514 + $0x30] sm:$0xf]
  %v1522 = vld [vmem:[%s1514 + $0x38] sm:$0xf]
  %v1523 = vsel %vm176, %v1460, 0
  %v1525 = vsel %vm176, %v1462, 0
  %v1527 = vsel %vm176, %v1464, 0
  %v1529 = vsel %vm176, %v1467, 0
  %v1531 = vsel %vm176, %v1469, 0
  %v1533 = vsel %vm176, %v1471, 0
  %v1535 = vsel %vm176, %v1474, 0
  %v1537 = vsel %vm176, %v1476, 0
  %v1539 = vsel %vm176, %v1478, 0
  %v1541 = vsel %vm176, %v1481, 0
  %v1543 = vsel %vm176, %v1483, 0
  %v1545 = vsel %vm176, %v1485, 0
  %v1547 = vsel %vm176, %v1488, 0
  %v1549 = vsel %vm176, %v1490, 0
  %v1551 = vsel %vm176, %v1492, 0
  %v1553 = vsel %vm176, %v1495, 0
  %v1555 = vsel %vm176, %v1497, 0
  %v1557 = vsel %vm176, %v1499, 0
  %v1559 = vsel %vm176, %v1502, 0
  %v1561 = vsel %vm176, %v1504, 0
  %v1563 = vsel %vm176, %v1506, 0
  %v1565 = vsel %vm176, %v1509, 0
  %v1567 = vsel %vm176, %v1511, 0
  %v1569 = vsel %vm176, %v1513, 0
  %v1572 = vsel %vm225, %v1521, 0
  %v1575 = vsel %vm225, %v1522, 0
  %1577 = vmatprep.subr.mxu0 %v1516
  %1578 = vmatpush1.msra.mxu0 %v1515
  %1579 = vmatprep.subr.mxu0 %v1518
  %1580 = vmatpush1.msra.mxu0 %v1517
  %1581 = vmatprep.subr.mxu0 %v1520
  %1582 = vmatpush1.msra.mxu0 %v1519
  %1583 = vmatprep.subr.mxu0 %v1575
  %1584 = vmatpush1.msra.mxu0 %v1572
  %1585 = vmatprep.subr.mxu0 0.0
  %1586 = vmatpush1.msra.mxu0 0.0
  %1587 = vmatprep.subr.mxu0 0.0
  %1588 = vmatpush1.msra.mxu0 0.0
  %1589 = vmatprep.subr.mxu0 0.0
  %1590 = vmatpush1.msra.mxu0 0.0
  %1591 = vmatprep.subr.mxu0 0.0
  %1592 = vmatpush1.msra.mxu0 0.0
  %1593 = vmatprep.subr.mxu0 0.0
  %1594 = vmatpush1.msra.mxu0 0.0
  %1595 = vmatprep.subr.mxu0 0.0
  %1596 = vmatpush1.msra.mxu0 0.0
  %1597 = vmatprep.subr.mxu0 0.0
  %1598 = vmatpush1.msra.mxu0 0.0
  %1599 = vmatprep.subr.mxu0 0.0
  %1600 = vmatpush1.msra.mxu0 0.0
  %1601 = vmatprep.subr.mxu0 0.0
  %1602 = vmatpush1.msra.mxu0 0.0
  %1603 = vmatprep.subr.mxu0 0.0
  %1604 = vmatpush1.msra.mxu0 0.0
  %1605 = vmatprep.subr.mxu0 0.0
  %1606 = vmatpush1.msra.mxu0 0.0
  %1607 = vmatprep.subr.mxu0 0.0
  %1608 = vmatpush1.msra.mxu0 0.0
  %1609 = vmatprep.subr.mxu0 0.0
  %1610 = vmatpush1.msra.mxu0 0.0
  %1611 = vmatprep.subr.mxu0 0.0
  %1612 = vmatpush1.msra.mxu0 0.0
  %1613 = vmatprep.subr.mxu0 0.0
  %1614 = vmatpush1.msra.mxu0 0.0
  %1615 = vmatprep.subr.mxu0 0.0
  %1616 = vmatpush1.msra.mxu0 0.0
  %1617 = vmatprep.subr.mxu0 0.0
  %1618 = vmatpush1.msra.mxu0 0.0
  %1619 = vmatprep.subr.mxu0 0.0
  %1620 = vmatpush1.msra.mxu0 0.0
  %1621 = vmatprep.subr.mxu0 0.0
  %1622 = vmatpush1.msra.mxu0 0.0
  %1623 = vmatprep.subr.mxu0 0.0
  %1624 = vmatpush1.msra.mxu0 0.0
  %1625 = vmatprep.subr.mxu0 0.0
  %1626 = vmatpush1.msra.mxu0 0.0
  %1627 = vmatprep.subr.mxu0 0.0
  %1628 = vmatpush1.msra.mxu0 0.0
  %1629 = vmatprep.subr.mxu0 0.0
  %1630 = vmatpush1.msra.mxu0 0.0
  %1631 = vmatprep.subr.mxu0 0.0
  %1632 = vmatpush1.msra.mxu0 0.0
  %1633 = vmatprep.subr.mxu0 0.0
  %1634 = vmatpush1.msra.mxu0 0.0
  %1635 = vmatprep.subr.mxu0 0.0
  %1636 = vmatpush1.msra.mxu0 0.0
  %1637 = vmatprep.subr.mxu0 0.0
  %1638 = vmatpush1.msra.mxu0 0.0
  %1639 = vmatprep.subr.mxu0 0.0
  %1640 = vmatpush1.msra.mxu0 0.0
  %1641 = vmatprep.mubr.f32.mxu0 0.0
  %1642 = vmatmul.mubr.f32.gmra.mrb[0].mxu0 %v1523
  %v1643 = vpop.f32.mrb[0].mxu0
  %v1644 = vadd.f32 0.0, %v1643
  %v1645 = vpop.f32.mrb[0].mxu0
  %v1646 = vadd.f32 0.0, %v1645
  %1647 = vmatprep.mubr.f32.mxu0 0.0
  %1648 = vmatmul.mubr.f32.gmra.mrb[0].mxu0 %v1525
  %v1649 = vpop.f32.mrb[0].mxu0
  %v1650 = vadd.f32 0.0, %v1649
  %v1651 = vpop.f32.mrb[0].mxu0
  %v1652 = vadd.f32 0.0, %v1651
  %1653 = vmatprep.mubr.f32.mxu0 0.0
  %1654 = vmatmul.mubr.f32.gmra.mrb[0].mxu0 %v1527
  %v1655 = vpop.f32.mrb[0].mxu0
  %v1656 = vadd.f32 0.0, %v1655
  %v1657 = vpop.f32.mrb[0].mxu0
  %v1658 = vadd.f32 0.0, %v1657
  %1659 = vmatprep.mubr.f32.mxu0 0.0
  %1660 = vmatmul.mubr.f32.gmra.mrb[0].mxu0 %v1529
  %v1661 = vpop.f32.mrb[0].mxu0
  %v1662 = vadd.f32 0.0, %v1661
  %v1663 = vpop.f32.mrb[0].mxu0
  %v1664 = vadd.f32 0.0, %v1663
  %1665 = vmatprep.mubr.f32.mxu0 0.0
  %1666 = vmatmul.mubr.f32.gmra.mrb[0].mxu0 %v1531
  %v1667 = vpop.f32.mrb[0].mxu0
  %v1668 = vadd.f32 0.0, %v1667
  %v1669 = vpop.f32.mrb[0].mxu0
  %v1670 = vadd.f32 0.0, %v1669
  %1671 = vmatprep.mubr.f32.mxu0 0.0
  %1672 = vmatmul.mubr.f32.gmra.mrb[0].mxu0 %v1533
  %v1673 = vpop.f32.mrb[0].mxu0
  %v1674 = vadd.f32 0.0, %v1673
  %v1675 = vpop.f32.mrb[0].mxu0
  %v1676 = vadd.f32 0.0, %v1675
  %1677 = vmatprep.mubr.f32.mxu0 0.0
  %1678 = vmatmul.mubr.f32.gmra.mrb[0].mxu0 %v1535
  %v1679 = vpop.f32.mrb[0].mxu0
  %v1680 = vadd.f32 0.0, %v1679
  %v1681 = vpop.f32.mrb[0].mxu0
  %v1682 = vadd.f32 0.0, %v1681
  %1683 = vmatprep.mubr.f32.mxu0 0.0
  %1684 = vmatmul.mubr.f32.gmra.mrb[0].mxu0 %v1537
  %v1685 = vpop.f32.mrb[0].mxu0
  %v1686 = vadd.f32 0.0, %v1685
  %v1687 = vpop.f32.mrb[0].mxu0
  %v1688 = vadd.f32 0.0, %v1687
  %1689 = vmatprep.mubr.f32.mxu0 0.0
  %1690 = vmatmul.mubr.f32.gmra.mrb[0].mxu0 %v1539
  %v1691 = vpop.f32.mrb[0].mxu0
  %v1692 = vadd.f32 0.0, %v1691
  %v1693 = vpop.f32.mrb[0].mxu0
  %v1694 = vadd.f32 0.0, %v1693
  %1695 = vmatprep.mubr.f32.mxu0 0.0
  %1696 = vmatmul.mubr.f32.gmra.mrb[0].mxu0 %v1541
  %v1697 = vpop.f32.mrb[0].mxu0
  %v1698 = vadd.f32 0.0, %v1697
  %v1699 = vpop.f32.mrb[0].mxu0
  %v1700 = vadd.f32 0.0, %v1699
  %1701 = vmatprep.mubr.f32.mxu0 0.0
  %1702 = vmatmul.mubr.f32.gmra.mrb[0].mxu0 %v1543
  %v1703 = vpop.f32.mrb[0].mxu0
  %v1704 = vadd.f32 0.0, %v1703
  %v1705 = vpop.f32.mrb[0].mxu0
  %v1706 = vadd.f32 0.0, %v1705
  %1707 = vmatprep.mubr.f32.mxu0 0.0
  %1708 = vmatmul.mubr.f32.gmra.mrb[0].mxu0 %v1545
  %v1709 = vpop.f32.mrb[0].mxu0
  %v1710 = vadd.f32 0.0, %v1709
  %v1711 = vpop.f32.mrb[0].mxu0
  %v1712 = vadd.f32 0.0, %v1711
  %1713 = vmatprep.mubr.f32.mxu0 0.0
  %1714 = vmatmul.mubr.f32.gmra.mrb[0].mxu0 %v1547
  %v1715 = vpop.f32.mrb[0].mxu0
  %v1716 = vadd.f32 0.0, %v1715
  %v1717 = vpop.f32.mrb[0].mxu0
  %v1718 = vadd.f32 0.0, %v1717
  %1719 = vmatprep.mubr.f32.mxu0 0.0
  %1720 = vmatmul.mubr.f32.gmra.mrb[0].mxu0 %v1549
  %v1721 = vpop.f32.mrb[0].mxu0
  %v1722 = vadd.f32 0.0, %v1721
  %v1723 = vpop.f32.mrb[0].mxu0
  %v1724 = vadd.f32 0.0, %v1723
  %1725 = vmatprep.mubr.f32.mxu0 0.0
  %1726 = vmatmul.mubr.f32.gmra.mrb[0].mxu0 %v1551
  %v1727 = vpop.f32.mrb[0].mxu0
  %v1728 = vadd.f32 0.0, %v1727
  %v1729 = vpop.f32.mrb[0].mxu0
  %v1730 = vadd.f32 0.0, %v1729
  %1731 = vmatprep.mubr.f32.mxu0 0.0
  %1732 = vmatmul.mubr.f32.gmra.mrb[0].mxu0 %v1553
  %v1733 = vpop.f32.mrb[0].mxu0
  %v1734 = vadd.f32 0.0, %v1733
  %v1735 = vpop.f32.mrb[0].mxu0
  %v1736 = vadd.f32 0.0, %v1735
  %1737 = vmatprep.mubr.f32.mxu0 0.0
  %1738 = vmatmul.mubr.f32.gmra.mrb[0].mxu0 %v1555
  %v1739 = vpop.f32.mrb[0].mxu0
  %v1740 = vadd.f32 0.0, %v1739
  %v1741 = vpop.f32.mrb[0].mxu0
  %v1742 = vadd.f32 0.0, %v1741
  %1743 = vmatprep.mubr.f32.mxu0 0.0
  %1744 = vmatmul.mubr.f32.gmra.mrb[0].mxu0 %v1557
  %v1745 = vpop.f32.mrb[0].mxu0
  %v1746 = vadd.f32 0.0, %v1745
  %v1747 = vpop.f32.mrb[0].mxu0
  %v1748 = vadd.f32 0.0, %v1747
  %1749 = vmatprep.mubr.f32.mxu0 0.0
  %1750 = vmatmul.mubr.f32.gmra.mrb[0].mxu0 %v1559
  %v1751 = vpop.f32.mrb[0].mxu0
  %v1752 = vadd.f32 0.0, %v1751
  %v1753 = vpop.f32.mrb[0].mxu0
  %v1754 = vadd.f32 0.0, %v1753
  %1755 = vmatprep.mubr.f32.mxu0 0.0
  %1756 = vmatmul.mubr.f32.gmra.mrb[0].mxu0 %v1561
  %v1757 = vpop.f32.mrb[0].mxu0
  %v1758 = vadd.f32 0.0, %v1757
  %v1759 = vpop.f32.mrb[0].mxu0
  %v1760 = vadd.f32 0.0, %v1759
  %1761 = vmatprep.mubr.f32.mxu0 0.0
  %1762 = vmatmul.mubr.f32.gmra.mrb[0].mxu0 %v1563
  %v1763 = vpop.f32.mrb[0].mxu0
  %v1764 = vadd.f32 0.0, %v1763
  %v1765 = vpop.f32.mrb[0].mxu0
  %v1766 = vadd.f32 0.0, %v1765
  %1767 = vmatprep.mubr.f32.mxu0 0.0
  %1768 = vmatmul.mubr.f32.gmra.mrb[0].mxu0 %v1565
  %v1769 = vpop.f32.mrb[0].mxu0
  %v1770 = vadd.f32 0.0, %v1769
  %v1771 = vpop.f32.mrb[0].mxu0
  %v1772 = vadd.f32 0.0, %v1771
  %1773 = vmatprep.mubr.f32.mxu0 0.0
  %1774 = vmatmul.mubr.f32.gmra.mrb[0].mxu0 %v1567
  %v1775 = vpop.f32.mrb[0].mxu0
  %v1776 = vadd.f32 0.0, %v1775
  %v1777 = vpop.f32.mrb[0].mxu0
  %v1778 = vadd.f32 0.0, %v1777
  %1779 = vmatprep.mubr.f32.mxu0 0.0
  %1780 = vmatmul.mubr.f32.gmra.mrb[0].mxu0 %v1569
  %v1781 = vpop.f32.mrb[0].mxu0
  %v1782 = vadd.f32 0.0, %v1781
  %v1783 = vpop.f32.mrb[0].mxu0
  %v1784 = vadd.f32 0.0, %v1783
  %1785 = vdwg.mxu0
  %v1786 = vadd.f32 %v1410, %v1644
  %v1787 = vadd.f32 %v1411, %v1646
  %v1788 = vadd.f32 %v1412, %v1650
  %v1789 = vadd.f32 %v1413, %v1652
  %v1790 = vadd.f32 %v1414, %v1656
  %v1791 = vadd.f32 %v1415, %v1658
  %v1792 = vadd.f32 %v1416, %v1662
  %v1793 = vadd.f32 %v1417, %v1664
  %v1794 = vadd.f32 %v1418, %v1668
  %v1795 = vadd.f32 %v1419, %v1670
  %v1796 = vadd.f32 %v1420, %v1674
  %v1797 = vadd.f32 %v1421, %v1676
  %v1798 = vadd.f32 %v1422, %v1680
  %v1799 = vadd.f32 %v1423, %v1682
  %v1800 = vadd.f32 %v1424, %v1686
  %v1801 = vadd.f32 %v1425, %v1688
  %v1802 = vadd.f32 %v1426, %v1692
  %v1803 = vadd.f32 %v1427, %v1694
  %v1804 = vadd.f32 %v1428, %v1698
  %v1805 = vadd.f32 %v1429, %v1700
  %v1806 = vadd.f32 %v1430, %v1704
  %v1807 = vadd.f32 %v1431, %v1706
  %v1808 = vadd.f32 %v1432, %v1710
  %v1809 = vadd.f32 %v1433, %v1712
  %v1810 = vadd.f32 %v1434, %v1716
  %v1811 = vadd.f32 %v1435, %v1718
  %v1812 = vadd.f32 %v1436, %v1722
  %v1813 = vadd.f32 %v1437, %v1724
  %v1814 = vadd.f32 %v1438, %v1728
  %v1815 = vadd.f32 %v1439, %v1730
  %v1816 = vadd.f32 %v1440, %v1734
  %v1817 = vadd.f32 %v1441, %v1736
  %v1818 = vadd.f32 %v1442, %v1740
  %v1819 = vadd.f32 %v1443, %v1742
  %v1820 = vadd.f32 %v1444, %v1746
  %v1821 = vadd.f32 %v1445, %v1748
  %v1822 = vadd.f32 %v1446, %v1752
  %v1823 = vadd.f32 %v1447, %v1754
  %v1824 = vadd.f32 %v1448, %v1758
  %v1825 = vadd.f32 %v1449, %v1760
  %v1826 = vadd.f32 %v1450, %v1764
  %v1827 = vadd.f32 %v1451, %v1766
  %v1828 = vadd.f32 %v1452, %v1770
  %v1829 = vadd.f32 %v1453, %v1772
  %v1830 = vadd.f32 %v1454, %v1776
  %v1831 = vadd.f32 %v1455, %v1778
  %v1832 = vadd.f32 %v1456, %v1782
  %v1833 = vadd.f32 %v1457, %v1784
  %v1834 = vld [vmem:[%s2] sm:$0x3]
  %v1836 = vlaneseq
  %v1837 = vshrl.u32 %v1836, 7
  %v1838 = vsub.s32 0, %v1837
  %v1839 = vrot.slane %v1834, %v1838
  %v1840 = vlaneseq
  %v1841 = vshrl.u32 %v1840, 7
  %v1842 = vsub.s32 1, %v1841
  %v1843 = vrot.slane %v1834, %v1842
  %v1846 = vadd.f32 %v1786, %v1839
  %v1847 = vadd.f32 %v1787, %v1843
  %v1848 = vadd.f32 %v1788, %v1839
  %v1849 = vadd.f32 %v1789, %v1843
  %v1850 = vadd.f32 %v1790, %v1839
  %v1851 = vadd.f32 %v1791, %v1843
  %v1852 = vadd.f32 %v1792, %v1839
  %v1853 = vadd.f32 %v1793, %v1843
  %v1854 = vadd.f32 %v1794, %v1839
  %v1855 = vadd.f32 %v1795, %v1843
  %v1856 = vadd.f32 %v1796, %v1839
  %v1857 = vadd.f32 %v1797, %v1843
  %v1858 = vadd.f32 %v1798, %v1839
  %v1859 = vadd.f32 %v1799, %v1843
  %v1860 = vadd.f32 %v1800, %v1839
  %v1861 = vadd.f32 %v1801, %v1843
  %v1862 = vadd.f32 %v1802, %v1839
  %v1863 = vadd.f32 %v1803, %v1843
  %v1864 = vadd.f32 %v1804, %v1839
  %v1865 = vadd.f32 %v1805, %v1843
  %v1866 = vadd.f32 %v1806, %v1839
  %v1867 = vadd.f32 %v1807, %v1843
  %v1868 = vadd.f32 %v1808, %v1839
  %v1869 = vadd.f32 %v1809, %v1843
  %v1870 = vadd.f32 %v1810, %v1839
  %v1871 = vadd.f32 %v1811, %v1843
  %v1872 = vadd.f32 %v1812, %v1839
  %v1873 = vadd.f32 %v1813, %v1843
  %v1874 = vadd.f32 %v1814, %v1839
  %v1875 = vadd.f32 %v1815, %v1843
  %v1876 = vadd.f32 %v1816, %v1839
  %v1877 = vadd.f32 %v1817, %v1843
  %v1878 = vadd.f32 %v1818, %v1839
  %v1879 = vadd.f32 %v1819, %v1843
  %v1880 = vadd.f32 %v1820, %v1839
  %v1881 = vadd.f32 %v1821, %v1843
  %v1882 = vadd.f32 %v1822, %v1839
  %v1883 = vadd.f32 %v1823, %v1843
  %v1884 = vadd.f32 %v1824, %v1839
  %v1885 = vadd.f32 %v1825, %v1843
  %v1886 = vadd.f32 %v1826, %v1839
  %v1887 = vadd.f32 %v1827, %v1843
  %v1888 = vadd.f32 %v1828, %v1839
  %v1889 = vadd.f32 %v1829, %v1843
  %v1890 = vadd.f32 %v1830, %v1839
  %v1891 = vadd.f32 %v1831, %v1843
  %v1892 = vadd.f32 %v1832, %v1839
  %v1893 = vadd.f32 %v1833, %v1843
  %1942 = vrot.lane.b32.xlu0 %v1846, 8
  %v1943 = vpop.permute.xlu0 %1942
  %1944 = vrot.lane.b32.xlu0 %v1847, 8
  %v1945 = vpop.permute.xlu0 %1944
  %1946 = vrot.lane.b32.xlu0 %v1848, 8
  %v1947 = vpop.permute.xlu0 %1946
  %1948 = vrot.lane.b32.xlu0 %v1849, 8
  %v1949 = vpop.permute.xlu0 %1948
  %1950 = vrot.lane.b32.xlu0 %v1850, 8
  %v1951 = vpop.permute.xlu0 %1950
  %1952 = vrot.lane.b32.xlu0 %v1851, 8
  %v1953 = vpop.permute.xlu0 %1952
  %1954 = vrot.lane.b32.xlu0 %v1852, 8
  %v1955 = vpop.permute.xlu0 %1954
  %1956 = vrot.lane.b32.xlu0 %v1853, 8
  %v1957 = vpop.permute.xlu0 %1956
  %1958 = vrot.lane.b32.xlu0 %v1854, 8
  %v1959 = vpop.permute.xlu0 %1958
  %1960 = vrot.lane.b32.xlu0 %v1855, 8
  %v1961 = vpop.permute.xlu0 %1960
  %1962 = vrot.lane.b32.xlu0 %v1856, 8
  %v1963 = vpop.permute.xlu0 %1962
  %1964 = vrot.lane.b32.xlu0 %v1857, 8
  %v1965 = vpop.permute.xlu0 %1964
  %1966 = vrot.lane.b32.xlu0 %v1858, 8
  %v1967 = vpop.permute.xlu0 %1966
  %1968 = vrot.lane.b32.xlu0 %v1859, 8
  %v1969 = vpop.permute.xlu0 %1968
  %1970 = vrot.lane.b32.xlu0 %v1860, 8
  %v1971 = vpop.permute.xlu0 %1970
  %1972 = vrot.lane.b32.xlu0 %v1861, 8
  %v1973 = vpop.permute.xlu0 %1972
  %1974 = vrot.lane.b32.xlu0 %v1862, 8
  %v1975 = vpop.permute.xlu0 %1974
  %1976 = vrot.lane.b32.xlu0 %v1863, 8
  %v1977 = vpop.permute.xlu0 %1976
  %1978 = vrot.lane.b32.xlu0 %v1864, 8
  %v1979 = vpop.permute.xlu0 %1978
  %1980 = vrot.lane.b32.xlu0 %v1865, 8
  %v1981 = vpop.permute.xlu0 %1980
  %1982 = vrot.lane.b32.xlu0 %v1866, 8
  %v1983 = vpop.permute.xlu0 %1982
  %1984 = vrot.lane.b32.xlu0 %v1867, 8
  %v1985 = vpop.permute.xlu0 %1984
  %1986 = vrot.lane.b32.xlu0 %v1868, 8
  %v1987 = vpop.permute.xlu0 %1986
  %1988 = vrot.lane.b32.xlu0 %v1869, 8
  %v1989 = vpop.permute.xlu0 %1988
  %1990 = vrot.lane.b32.xlu0 %v1870, 8
  %v1991 = vpop.permute.xlu0 %1990
  %1992 = vrot.lane.b32.xlu0 %v1871, 8
  %v1993 = vpop.permute.xlu0 %1992
  %1994 = vrot.lane.b32.xlu0 %v1872, 8
  %v1995 = vpop.permute.xlu0 %1994
  %1996 = vrot.lane.b32.xlu0 %v1873, 8
  %v1997 = vpop.permute.xlu0 %1996
  %1998 = vrot.lane.b32.xlu0 %v1874, 8
  %v1999 = vpop.permute.xlu0 %1998
  %2000 = vrot.lane.b32.xlu0 %v1875, 8
  %v2001 = vpop.permute.xlu0 %2000
  %2002 = vrot.lane.b32.xlu0 %v1876, 8
  %v2003 = vpop.permute.xlu0 %2002
  %2004 = vrot.lane.b32.xlu0 %v1877, 8
  %v2005 = vpop.permute.xlu0 %2004
  %2006 = vrot.lane.b32.xlu0 %v1878, 8
  %v2007 = vpop.permute.xlu0 %2006
  %2008 = vrot.lane.b32.xlu0 %v1879, 8
  %v2009 = vpop.permute.xlu0 %2008
  %2010 = vrot.lane.b32.xlu0 %v1880, 8
  %v2011 = vpop.permute.xlu0 %2010
  %2012 = vrot.lane.b32.xlu0 %v1881, 8
  %v2013 = vpop.permute.xlu0 %2012
  %2014 = vrot.lane.b32.xlu0 %v1882, 8
  %v2015 = vpop.permute.xlu0 %2014
  %2016 = vrot.lane.b32.xlu0 %v1883, 8
  %v2017 = vpop.permute.xlu0 %2016
  %2018 = vrot.lane.b32.xlu0 %v1884, 8
  %v2019 = vpop.permute.xlu0 %2018
  %2020 = vrot.lane.b32.xlu0 %v1885, 8
  %v2021 = vpop.permute.xlu0 %2020
  %2022 = vrot.lane.b32.xlu0 %v1886, 8
  %v2023 = vpop.permute.xlu0 %2022
  %2024 = vrot.lane.b32.xlu0 %v1887, 8
  %v2025 = vpop.permute.xlu0 %2024
  %2026 = vrot.lane.b32.xlu0 %v1888, 8
  %v2027 = vpop.permute.xlu0 %2026
  %2028 = vrot.lane.b32.xlu0 %v1889, 8
  %v2029 = vpop.permute.xlu0 %2028
  %2030 = vrot.lane.b32.xlu0 %v1890, 8
  %v2031 = vpop.permute.xlu0 %2030
  %2032 = vrot.lane.b32.xlu0 %v1891, 8
  %v2033 = vpop.permute.xlu0 %2032
  %2034 = vrot.lane.b32.xlu0 %v1892, 8
  %v2035 = vpop.permute.xlu0 %2034
  %2036 = vrot.lane.b32.xlu0 %v1893, 8
  %v2037 = vpop.permute.xlu0 %2036
  %vm2038 = vcmask 64512
  %v2039 = vsel %vm2038, %v1943, %v1945
  %v2040 = vsel %vm2038, %v1947, %v1949
  %v2041 = vsel %vm2038, %v1951, %v1953
  %v2042 = vsel %vm2038, %v1955, %v1957
  %v2043 = vsel %vm2038, %v1959, %v1961
  %v2044 = vsel %vm2038, %v1963, %v1965
  %v2045 = vsel %vm2038, %v1967, %v1969
  %v2046 = vsel %vm2038, %v1971, %v1973
  %v2047 = vsel %vm2038, %v1975, %v1977
  %v2048 = vsel %vm2038, %v1979, %v1981
  %v2049 = vsel %vm2038, %v1983, %v1985
  %v2050 = vsel %vm2038, %v1987, %v1989
  %v2051 = vsel %vm2038, %v1991, %v1993
  %v2052 = vsel %vm2038, %v1995, %v1997
  %v2053 = vsel %vm2038, %v1999, %v2001
  %v2054 = vsel %vm2038, %v2003, %v2005
  %v2055 = vsel %vm2038, %v2007, %v2009
  %v2056 = vsel %vm2038, %v2011, %v2013
  %v2057 = vsel %vm2038, %v2015, %v2017
  %v2058 = vsel %vm2038, %v2019, %v2021
  %v2059 = vsel %vm2038, %v2023, %v2025
  %v2060 = vsel %vm2038, %v2027, %v2029
  %v2061 = vsel %vm2038, %v2031, %v2033
  %v2062 = vsel %vm2038, %v2035, %v2037
  %v2087 = vmax.f32 %v1846, %v2039
  %v2088 = vmax.f32 %v1848, %v2040
  %v2089 = vmax.f32 %v1850, %v2041
  %v2090 = vmax.f32 %v1852, %v2042
  %v2091 = vmax.f32 %v1854, %v2043
  %v2092 = vmax.f32 %v1856, %v2044
  %v2093 = vmax.f32 %v1858, %v2045
  %v2094 = vmax.f32 %v1860, %v2046
  %v2095 = vmax.f32 %v1862, %v2047
  %v2096 = vmax.f32 %v1864, %v2048
  %v2097 = vmax.f32 %v1866, %v2049
  %v2098 = vmax.f32 %v1868, %v2050
  %v2099 = vmax.f32 %v1870, %v2051
  %v2100 = vmax.f32 %v1872, %v2052
  %v2101 = vmax.f32 %v1874, %v2053
  %v2102 = vmax.f32 %v1876, %v2054
  %v2103 = vmax.f32 %v1878, %v2055
  %v2104 = vmax.f32 %v1880, %v2056
  %v2105 = vmax.f32 %v1882, %v2057
  %v2106 = vmax.f32 %v1884, %v2058
  %v2107 = vmax.f32 %v1886, %v2059
  %v2108 = vmax.f32 %v1888, %v2060
  %v2109 = vmax.f32 %v1890, %v2061
  %v2110 = vmax.f32 %v1892, %v2062
  %v2135 = vrot.slane %v2087, 1
  %v2136 = vrot.slane %v2088, 1
  %v2137 = vsel %vm110, %v2135, %v2136
  %v2138 = vrot.slane %v2089, 1
  %v2139 = vsel %vm110, %v2136, %v2138
  %v2140 = vrot.slane %v2090, 1
  %v2141 = vsel %vm110, %v2138, %v2140
  %v2142 = vrot.slane %v2091, 1
  %v2143 = vsel %vm110, %v2140, %v2142
  %v2144 = vrot.slane %v2092, 1
  %v2145 = vsel %vm110, %v2142, %v2144
  %v2146 = vrot.slane %v2093, 1
  %v2147 = vsel %vm110, %v2144, %v2146
  %v2148 = vrot.slane %v2094, 1
  %v2149 = vsel %vm110, %v2146, %v2148
  %v2150 = vrot.slane %v2095, 1
  %v2151 = vsel %vm110, %v2148, %v2150
  %v2152 = vrot.slane %v2096, 1
  %v2153 = vsel %vm110, %v2150, %v2152
  %v2154 = vrot.slane %v2097, 1
  %v2155 = vsel %vm110, %v2152, %v2154
  %v2156 = vrot.slane %v2098, 1
  %v2157 = vsel %vm110, %v2154, %v2156
  %v2158 = vrot.slane %v2099, 1
  %v2159 = vsel %vm110, %v2156, %v2158
  %v2160 = vrot.slane %v2100, 1
  %v2161 = vsel %vm110, %v2158, %v2160
  %v2162 = vrot.slane %v2101, 1
  %v2163 = vsel %vm110, %v2160, %v2162
  %v2164 = vrot.slane %v2102, 1
  %v2165 = vsel %vm110, %v2162, %v2164
  %v2166 = vrot.slane %v2103, 1
  %v2167 = vsel %vm110, %v2164, %v2166
  %v2168 = vrot.slane %v2104, 1
  %v2169 = vsel %vm110, %v2166, %v2168
  %v2170 = vrot.slane %v2105, 1
  %v2171 = vsel %vm110, %v2168, %v2170
  %v2172 = vrot.slane %v2106, 1
  %v2173 = vsel %vm110, %v2170, %v2172
  %v2174 = vrot.slane %v2107, 1
  %v2175 = vsel %vm110, %v2172, %v2174
  %v2176 = vrot.slane %v2108, 1
  %v2177 = vsel %vm110, %v2174, %v2176
  %v2178 = vrot.slane %v2109, 1
  %v2179 = vsel %vm110, %v2176, %v2178
  %v2180 = vrot.slane %v2110, 1
  %v2181 = vsel %vm110, %v2178, %v2180
  %v2206 = vmax.f32 %v2087, %v2137
  %v2207 = vmax.f32 %v2088, %v2139
  %v2208 = vmax.f32 %v2089, %v2141
  %v2209 = vmax.f32 %v2090, %v2143
  %v2210 = vmax.f32 %v2091, %v2145
  %v2211 = vmax.f32 %v2092, %v2147
  %v2212 = vmax.f32 %v2093, %v2149
  %v2213 = vmax.f32 %v2094, %v2151
  %v2214 = vmax.f32 %v2095, %v2153
  %v2215 = vmax.f32 %v2096, %v2155
  %v2216 = vmax.f32 %v2097, %v2157
  %v2217 = vmax.f32 %v2098, %v2159
  %v2218 = vmax.f32 %v2099, %v2161
  %v2219 = vmax.f32 %v2100, %v2163
  %v2220 = vmax.f32 %v2101, %v2165
  %v2221 = vmax.f32 %v2102, %v2167
  %v2222 = vmax.f32 %v2103, %v2169
  %v2223 = vmax.f32 %v2104, %v2171
  %v2224 = vmax.f32 %v2105, %v2173
  %v2225 = vmax.f32 %v2106, %v2175
  %v2226 = vmax.f32 %v2107, %v2177
  %v2227 = vmax.f32 %v2108, %v2179
  %v2228 = vmax.f32 %v2109, %v2181
  %v2229 = vmax.f32 %v2110, %v2180
  %v2230 = vmax.f32 %v2206, 0.0
  %v2231 = vmax.f32 %v2207, 0.0
  %v2232 = vmax.f32 %v2208, 0.0
  %v2233 = vmax.f32 %v2209, 0.0
  %v2234 = vmax.f32 %v2210, 0.0
  %v2235 = vmax.f32 %v2211, 0.0
  %v2236 = vmax.f32 %v2212, 0.0
  %v2237 = vmax.f32 %v2213, 0.0
  %v2238 = vmax.f32 %v2214, 0.0
  %v2239 = vmax.f32 %v2215, 0.0
  %v2240 = vmax.f32 %v2216, 0.0
  %v2241 = vmax.f32 %v2217, 0.0
  %v2242 = vmax.f32 %v2218, 0.0
  %v2243 = vmax.f32 %v2219, 0.0
  %v2244 = vmax.f32 %v2220, 0.0
  %v2245 = vmax.f32 %v2221, 0.0
  %v2246 = vmax.f32 %v2222, 0.0
  %v2247 = vmax.f32 %v2223, 0.0
  %v2248 = vmax.f32 %v2224, 0.0
  %v2249 = vmax.f32 %v2225, 0.0
  %v2250 = vmax.f32 %v2226, 0.0
  %v2251 = vmax.f32 %v2227, 0.0
  %v2252 = vmax.f32 %v2228, 0.0
  %v2253 = vmax.f32 %v2229, 0.0
  %v2254 = vld [vmem:[%s5] sm:$0xff]
  %v2255 = vld [vmem:[%s5 + $0x8] sm:$0xff]
  %v2256 = vld [vmem:[%s5 + $0x10] sm:$0xff]
  %v2257 = vld [vmem:[%s5 + $0x18] sm:$0xff]
  %v2258 = vld [vmem:[%s5 + $0x20] sm:$0xff]
  %v2259 = vld [vmem:[%s5 + $0x28] sm:$0xff]
  %v2260 = vld [vmem:[%s5 + $0x30] sm:$0xff]
  %v2261 = vld [vmem:[%s5 + $0x38] sm:$0xff]
  %v2262 = vld [vmem:[%s5 + $0x40] sm:$0xff]
  %v2263 = vld [vmem:[%s5 + $0x48] sm:$0xff]
  %v2264 = vld [vmem:[%s5 + $0x50] sm:$0xff]
  %v2265 = vld [vmem:[%s5 + $0x58] sm:$0xff]
  %v2266 = vld [vmem:[%s5 + $0x60] sm:$0xff]
  %v2267 = vld [vmem:[%s5 + $0x68] sm:$0xff]
  %v2268 = vld [vmem:[%s5 + $0x70] sm:$0xff]
  %v2269 = vld [vmem:[%s5 + $0x78] sm:$0xff]
  %vm2270 = vcmask 515072
  %v2272 = vsel %vm2270, %v2255, 0
  %v2275 = vsel %vm2270, %v2257, 0
  %v2278 = vsel %vm2270, %v2259, 0
  %v2281 = vsel %vm2270, %v2261, 0
  %v2284 = vsel %vm2270, %v2263, 0
  %v2287 = vsel %vm2270, %v2265, 0
  %v2290 = vsel %vm2270, %v2267, 0
  %v2293 = vsel %vm2270, %v2269, 0
  %v2296 = vsel %vm110, %v2253, 0
  %2298 = vmatprep.subr.mxu0 0.0
  %2299 = vmatpush1.msra.mxu0 %v2230
  %2300 = vmatprep.subr.mxu0 0.0
  %2301 = vmatpush1.msra.mxu0 %v2231
  %2302 = vmatprep.subr.mxu0 0.0
  %2303 = vmatpush1.msra.mxu0 %v2232
  %2304 = vmatprep.subr.mxu0 0.0
  %2305 = vmatpush1.msra.mxu0 %v2233
  %2306 = vmatprep.subr.mxu0 0.0
  %2307 = vmatpush1.msra.mxu0 %v2234
  %2308 = vmatprep.subr.mxu0 0.0
  %2309 = vmatpush1.msra.mxu0 %v2235
  %2310 = vmatprep.subr.mxu0 0.0
  %2311 = vmatpush1.msra.mxu0 %v2236
  %2312 = vmatprep.subr.mxu0 0.0
  %2313 = vmatpush1.msra.mxu0 %v2237
  %2314 = vmatprep.subr.mxu0 0.0
  %2315 = vmatpush1.msra.mxu0 %v2238
  %2316 = vmatprep.subr.mxu0 0.0
  %2317 = vmatpush1.msra.mxu0 %v2239
  %2318 = vmatprep.subr.mxu0 0.0
  %2319 = vmatpush1.msra.mxu0 %v2240
  %2320 = vmatprep.subr.mxu0 0.0
  %2321 = vmatpush1.msra.mxu0 %v2241
  %2322 = vmatprep.subr.mxu0 0.0
  %2323 = vmatpush1.msra.mxu0 %v2242
  %2324 = vmatprep.subr.mxu0 0.0
  %2325 = vmatpush1.msra.mxu0 %v2243
  %2326 = vmatprep.subr.mxu0 0.0
  %2327 = vmatpush1.msra.mxu0 %v2244
  %2328 = vmatprep.subr.mxu0 0.0
  %2329 = vmatpush1.msra.mxu0 %v2245
  %2330 = vmatprep.subr.mxu0 0.0
  %2331 = vmatpush1.msra.mxu0 %v2246
  %2332 = vmatprep.subr.mxu0 0.0
  %2333 = vmatpush1.msra.mxu0 %v2247
  %2334 = vmatprep.subr.mxu0 0.0
  %2335 = vmatpush1.msra.mxu0 %v2248
  %2336 = vmatprep.subr.mxu0 0.0
  %2337 = vmatpush1.msra.mxu0 %v2249
  %2338 = vmatprep.subr.mxu0 0.0
  %2339 = vmatpush1.msra.mxu0 %v2250
  %2340 = vmatprep.subr.mxu0 0.0
  %2341 = vmatpush1.msra.mxu0 %v2251
  %2342 = vmatprep.subr.mxu0 0.0
  %2343 = vmatpush1.msra.mxu0 %v2252
  %2344 = vmatprep.subr.mxu0 0.0
  %2345 = vmatpush1.msra.mxu0 %v2296
  %2346 = vmatprep.subr.mxu0 0.0
  %2347 = vmatpush1.msra.mxu0 0.0
  %2348 = vmatprep.subr.mxu0 0.0
  %2349 = vmatpush1.msra.mxu0 0.0
  %2350 = vmatprep.subr.mxu0 0.0
  %2351 = vmatpush1.msra.mxu0 0.0
  %2352 = vmatprep.subr.mxu0 0.0
  %2353 = vmatpush1.msra.mxu0 0.0
  %2354 = vmatprep.subr.mxu0 0.0
  %2355 = vmatpush1.msra.mxu0 0.0
  %2356 = vmatprep.subr.mxu0 0.0
  %2357 = vmatpush1.msra.mxu0 0.0
  %2358 = vmatprep.subr.mxu0 0.0
  %2359 = vmatpush1.msra.mxu0 0.0
  %2360 = vmatprep.subr.mxu0 0.0
  %2361 = vmatpush1.msra.mxu0 0.0
  %2362 = vmatprep.mubr.f32.mxu0 %v2272
  %2363 = vmatmul.mubr.f32.gmra.mrb[0].mxu0 %v2254
  %v2364 = vpop.f32.mrb[0].mxu0
  %v2365 = vadd.f32 0.0, %v2364
  %v2366 = vpop.f32.mrb[0].mxu0
  %2367 = vmatprep.mubr.f32.mxu0 %v2275
  %2368 = vmatmul.mubr.f32.gmra.mrb[0].mxu0 %v2256
  %v2369 = vpop.f32.mrb[0].mxu0
  %v2370 = vadd.f32 0.0, %v2369
  %v2371 = vpop.f32.mrb[0].mxu0
  %2372 = vmatprep.mubr.f32.mxu0 %v2278
  %2373 = vmatmul.mubr.f32.gmra.mrb[0].mxu0 %v2258
  %v2374 = vpop.f32.mrb[0].mxu0
  %v2375 = vadd.f32 0.0, %v2374
  %v2376 = vpop.f32.mrb[0].mxu0
  %2377 = vmatprep.mubr.f32.mxu0 %v2281
  %2378 = vmatmul.mubr.f32.gmra.mrb[0].mxu0 %v2260
  %v2379 = vpop.f32.mrb[0].mxu0
  %v2380 = vadd.f32 0.0, %v2379
  %v2381 = vpop.f32.mrb[0].mxu0
  %2382 = vmatprep.mubr.f32.mxu0 %v2284
  %2383 = vmatmul.mubr.f32.gmra.mrb[0].mxu0 %v2262
  %v2384 = vpop.f32.mrb[0].mxu0
  %v2385 = vadd.f32 0.0, %v2384
  %v2386 = vpop.f32.mrb[0].mxu0
  %2387 = vmatprep.mubr.f32.mxu0 %v2287
  %2388 = vmatmul.mubr.f32.gmra.mrb[0].mxu0 %v2264
  %v2389 = vpop.f32.mrb[0].mxu0
  %v2390 = vadd.f32 0.0, %v2389
  %v2391 = vpop.f32.mrb[0].mxu0
  %2392 = vmatprep.mubr.f32.mxu0 %v2290
  %2393 = vmatmul.mubr.f32.gmra.mrb[0].mxu0 %v2266
  %v2394 = vpop.f32.mrb[0].mxu0
  %v2395 = vadd.f32 0.0, %v2394
  %v2396 = vpop.f32.mrb[0].mxu0
  %2397 = vmatprep.mubr.f32.mxu0 %v2293
  %2398 = vmatmul.mubr.f32.gmra.mrb[0].mxu0 %v2268
  %v2399 = vpop.f32.mrb[0].mxu0
  %v2400 = vadd.f32 0.0, %v2399
  %v2401 = vpop.f32.mrb[0].mxu0
  %2402 = vdwg.mxu0
  %v2403 = vld [vmem:[%s3] sm:$0xff]
  %v2404 = vld [vmem:[%s3 + $0x8] sm:$0xff]
  %v2405 = vld [vmem:[%s3 + $0x10] sm:$0xff]
  %v2406 = vld [vmem:[%s3 + $0x18] sm:$0xff]
  %v2407 = vld [vmem:[%s3 + $0x20] sm:$0xff]
  %v2408 = vld [vmem:[%s3 + $0x28] sm:$0xff]
  %v2409 = vld [vmem:[%s3 + $0x30] sm:$0xff]
  %v2410 = vld [vmem:[%s3 + $0x38] sm:$0xff]
  %v2411 = vld [vmem:[%s3 + $0x40] sm:$0xff]
  %v2412 = vld [vmem:[%s3 + $0x48] sm:$0xff]
  %v2413 = vld [vmem:[%s3 + $0x50] sm:$0xff]
  %v2414 = vld [vmem:[%s3 + $0x58] sm:$0xff]
  %v2415 = vld [vmem:[%s3 + $0x60] sm:$0xff]
  %v2416 = vld [vmem:[%s3 + $0x68] sm:$0xff]
  %v2417 = vld [vmem:[%s3 + $0x70] sm:$0xff]
  %v2418 = vld [vmem:[%s3 + $0x78] sm:$0xff]
  %v2419 = vld [vmem:[%s3 + $0x80] sm:$0xff]
  %v2420 = vld [vmem:[%s3 + $0x88] sm:$0xff]
  %v2421 = vld [vmem:[%s3 + $0x90] sm:$0xff]
  %v2422 = vld [vmem:[%s3 + $0x98] sm:$0xff]
  %v2423 = vld [vmem:[%s3 + $0xa0] sm:$0xff]
  %v2424 = vld [vmem:[%s3 + $0xa8] sm:$0xff]
  %v2425 = vld [vmem:[%s3 + $0xb0] sm:$0xff]
  %v2426 = vld [vmem:[%s3 + $0xb8] sm:$0xff]
  %v2427 = vld [vmem:[%s3 + $0xc0] sm:$0xff]
  %v2428 = vld [vmem:[%s3 + $0xc8] sm:$0xff]
  %v2429 = vld [vmem:[%s3 + $0xd0] sm:$0xff]
  %v2430 = vld [vmem:[%s3 + $0xd8] sm:$0xff]
  %v2431 = vld [vmem:[%s3 + $0xe0] sm:$0xff]
  %v2432 = vld [vmem:[%s3 + $0xe8] sm:$0xff]
  %s2433 = scalar_lea.vmem %s5, 128
  %v2434 = vld [vmem:[%s2433] sm:$0xff]
  %v2435 = vld [vmem:[%s2433 + $0x8] sm:$0xff]
  %v2436 = vld [vmem:[%s2433 + $0x10] sm:$0xff]
  %v2437 = vld [vmem:[%s2433 + $0x18] sm:$0xff]
  %v2438 = vld [vmem:[%s2433 + $0x20] sm:$0xff]
  %v2439 = vld [vmem:[%s2433 + $0x28] sm:$0xff]
  %v2440 = vld [vmem:[%s2433 + $0x30] sm:$0xff]
  %v2441 = vld [vmem:[%s2433 + $0x38] sm:$0xff]
  %v2442 = vld [vmem:[%s2433 + $0x40] sm:$0xff]
  %v2443 = vld [vmem:[%s2433 + $0x48] sm:$0xff]
  %v2444 = vld [vmem:[%s2433 + $0x50] sm:$0xff]
  %v2445 = vld [vmem:[%s2433 + $0x58] sm:$0xff]
  %v2446 = vld [vmem:[%s2433 + $0x60] sm:$0xff]
  %v2447 = vld [vmem:[%s2433 + $0x68] sm:$0xff]
  %v2448 = vld [vmem:[%s2433 + $0x70] sm:$0xff]
  %v2449 = vld [vmem:[%s2433 + $0x78] sm:$0xff]
  %v2451 = vsel %vm2270, %v2435, 0
  %v2454 = vsel %vm2270, %v2437, 0
  %v2457 = vsel %vm2270, %v2439, 0
  %v2460 = vsel %vm2270, %v2441, 0
  %v2463 = vsel %vm2270, %v2443, 0
  %v2466 = vsel %vm2270, %v2445, 0
  %v2469 = vsel %vm2270, %v2447, 0
  %v2472 = vsel %vm2270, %v2449, 0
  %2474 = vmatprep.subr.mxu0 0.0
  %2475 = vmatpush1.msra.mxu0 %v2230
  %2476 = vmatprep.subr.mxu0 0.0
  %2477 = vmatpush1.msra.mxu0 %v2231
  %2478 = vmatprep.subr.mxu0 0.0
  %2479 = vmatpush1.msra.mxu0 %v2232
  %2480 = vmatprep.subr.mxu0 0.0
  %2481 = vmatpush1.msra.mxu0 %v2233
  %2482 = vmatprep.subr.mxu0 0.0
  %2483 = vmatpush1.msra.mxu0 %v2234
  %2484 = vmatprep.subr.mxu0 0.0
  %2485 = vmatpush1.msra.mxu0 %v2235
  %2486 = vmatprep.subr.mxu0 0.0
  %2487 = vmatpush1.msra.mxu0 %v2236
  %2488 = vmatprep.subr.mxu0 0.0
  %2489 = vmatpush1.msra.mxu0 %v2237
  %2490 = vmatprep.subr.mxu0 0.0
  %2491 = vmatpush1.msra.mxu0 %v2238
  %2492 = vmatprep.subr.mxu0 0.0
  %2493 = vmatpush1.msra.mxu0 %v2239
  %2494 = vmatprep.subr.mxu0 0.0
  %2495 = vmatpush1.msra.mxu0 %v2240
  %2496 = vmatprep.subr.mxu0 0.0
  %2497 = vmatpush1.msra.mxu0 %v2241
  %2498 = vmatprep.subr.mxu0 0.0
  %2499 = vmatpush1.msra.mxu0 %v2242
  %2500 = vmatprep.subr.mxu0 0.0
  %2501 = vmatpush1.msra.mxu0 %v2243
  %2502 = vmatprep.subr.mxu0 0.0
  %2503 = vmatpush1.msra.mxu0 %v2244
  %2504 = vmatprep.subr.mxu0 0.0
  %2505 = vmatpush1.msra.mxu0 %v2245
  %2506 = vmatprep.subr.mxu0 0.0
  %2507 = vmatpush1.msra.mxu0 %v2246
  %2508 = vmatprep.subr.mxu0 0.0
  %2509 = vmatpush1.msra.mxu0 %v2247
  %2510 = vmatprep.subr.mxu0 0.0
  %2511 = vmatpush1.msra.mxu0 %v2248
  %2512 = vmatprep.subr.mxu0 0.0
  %2513 = vmatpush1.msra.mxu0 %v2249
  %2514 = vmatprep.subr.mxu0 0.0
  %2515 = vmatpush1.msra.mxu0 %v2250
  %2516 = vmatprep.subr.mxu0 0.0
  %2517 = vmatpush1.msra.mxu0 %v2251
  %2518 = vmatprep.subr.mxu0 0.0
  %2519 = vmatpush1.msra.mxu0 %v2252
  %2520 = vmatprep.subr.mxu0 0.0
  %2521 = vmatpush1.msra.mxu0 %v2296
  %2522 = vmatprep.subr.mxu0 0.0
  %2523 = vmatpush1.msra.mxu0 0.0
  %2524 = vmatprep.subr.mxu0 0.0
  %2525 = vmatpush1.msra.mxu0 0.0
  %2526 = vmatprep.subr.mxu0 0.0
  %2527 = vmatpush1.msra.mxu0 0.0
  %2528 = vmatprep.subr.mxu0 0.0
  %2529 = vmatpush1.msra.mxu0 0.0
  %2530 = vmatprep.subr.mxu0 0.0
  %2531 = vmatpush1.msra.mxu0 0.0
  %2532 = vmatprep.subr.mxu0 0.0
  %2533 = vmatpush1.msra.mxu0 0.0
  %2534 = vmatprep.subr.mxu0 0.0
  %2535 = vmatpush1.msra.mxu0 0.0
  %2536 = vmatprep.subr.mxu0 0.0
  %2537 = vmatpush1.msra.mxu0 0.0
  %2538 = vmatprep.mubr.f32.mxu0 %v2451
  %2539 = vmatmul.mubr.f32.gmra.mrb[0].mxu0 %v2434
  %v2540 = vpop.f32.mrb[0].mxu0
  %v2541 = vadd.f32 0.0, %v2540
  %v2542 = vpop.f32.mrb[0].mxu0
  %2543 = vmatprep.mubr.f32.mxu0 %v2454
  %2544 = vmatmul.mubr.f32.gmra.mrb[0].mxu0 %v2436
  %v2545 = vpop.f32.mrb[0].mxu0
  %v2546 = vadd.f32 0.0, %v2545
  %v2547 = vpop.f32.mrb[0].mxu0
  %2548 = vmatprep.mubr.f32.mxu0 %v2457
  %2549 = vmatmul.mubr.f32.gmra.mrb[0].mxu0 %v2438
  %v2550 = vpop.f32.mrb[0].mxu0
  %v2551 = vadd.f32 0.0, %v2550
  %v2552 = vpop.f32.mrb[0].mxu0
  %2553 = vmatprep.mubr.f32.mxu0 %v2460
  %2554 = vmatmul.mubr.f32.gmra.mrb[0].mxu0 %v2440
  %v2555 = vpop.f32.mrb[0].mxu0
  %v2556 = vadd.f32 0.0, %v2555
  %v2557 = vpop.f32.mrb[0].mxu0
  %2558 = vmatprep.mubr.f32.mxu0 %v2463
  %2559 = vmatmul.mubr.f32.gmra.mrb[0].mxu0 %v2442
  %v2560 = vpop.f32.mrb[0].mxu0
  %v2561 = vadd.f32 0.0, %v2560
  %v2562 = vpop.f32.mrb[0].mxu0
  %2563 = vmatprep.mubr.f32.mxu0 %v2466
  %2564 = vmatmul.mubr.f32.gmra.mrb[0].mxu0 %v2444
  %v2565 = vpop.f32.mrb[0].mxu0
  %v2566 = vadd.f32 0.0, %v2565
  %v2567 = vpop.f32.mrb[0].mxu0
  %2568 = vmatprep.mubr.f32.mxu0 %v2469
  %2569 = vmatmul.mubr.f32.gmra.mrb[0].mxu0 %v2446
  %v2570 = vpop.f32.mrb[0].mxu0
  %v2571 = vadd.f32 0.0, %v2570
  %v2572 = vpop.f32.mrb[0].mxu0
  %2573 = vmatprep.mubr.f32.mxu0 %v2472
  %2574 = vmatmul.mubr.f32.gmra.mrb[0].mxu0 %v2448
  %v2575 = vpop.f32.mrb[0].mxu0
  %v2576 = vadd.f32 0.0, %v2575
  %v2577 = vpop.f32.mrb[0].mxu0
  %2578 = vdwg.mxu0
  %s2579 = scalar_lea.vmem %s3, 240
  %v2580 = vld [vmem:[%s2579] sm:$0xff]
  %v2581 = vld [vmem:[%s2579 + $0x8] sm:$0xff]
  %v2582 = vld [vmem:[%s2579 + $0x10] sm:$0xff]
  %v2583 = vld [vmem:[%s2579 + $0x18] sm:$0xff]
  %v2584 = vld [vmem:[%s2579 + $0x20] sm:$0xff]
  %v2585 = vld [vmem:[%s2579 + $0x28] sm:$0xff]
  %v2586 = vld [vmem:[%s2579 + $0x30] sm:$0xff]
  %v2587 = vld [vmem:[%s2579 + $0x38] sm:$0xff]
  %v2588 = vld [vmem:[%s2579 + $0x40] sm:$0xff]
  %v2589 = vld [vmem:[%s2579 + $0x48] sm:$0xff]
  %v2590 = vld [vmem:[%s2579 + $0x50] sm:$0xff]
  %v2591 = vld [vmem:[%s2579 + $0x58] sm:$0xff]
  %v2592 = vld [vmem:[%s2579 + $0x60] sm:$0xff]
  %v2593 = vld [vmem:[%s2579 + $0x68] sm:$0xff]
  %v2594 = vld [vmem:[%s2579 + $0x70] sm:$0xff]
  %v2595 = vld [vmem:[%s2579 + $0x78] sm:$0xff]
  %v2596 = vld [vmem:[%s2579 + $0x80] sm:$0xff]
  %v2597 = vld [vmem:[%s2579 + $0x88] sm:$0xff]
  %v2598 = vld [vmem:[%s2579 + $0x90] sm:$0xff]
  %v2599 = vld [vmem:[%s2579 + $0x98] sm:$0xff]
  %v2600 = vld [vmem:[%s2579 + $0xa0] sm:$0xff]
  %v2601 = vld [vmem:[%s2579 + $0xa8] sm:$0xff]
  %v2602 = vld [vmem:[%s2579 + $0xb0] sm:$0xff]
  %v2603 = vld [vmem:[%s2579 + $0xb8] sm:$0xff]
  %v2604 = vld [vmem:[%s2579 + $0xc0] sm:$0xff]
  %v2605 = vld [vmem:[%s2579 + $0xc8] sm:$0xff]
  %v2606 = vld [vmem:[%s2579 + $0xd0] sm:$0xff]
  %v2607 = vld [vmem:[%s2579 + $0xd8] sm:$0xff]
  %v2608 = vld [vmem:[%s2579 + $0xe0] sm:$0xff]
  %v2609 = vld [vmem:[%s2579 + $0xe8] sm:$0xff]
  %vm2610 = vcmask 982016
  %v2612 = vsel %vm2610, %v2541, 0
  %v2615 = vsel %vm2610, %v2546, 0
  %v2618 = vsel %vm2610, %v2551, 0
  %v2621 = vsel %vm2610, %v2556, 0
  %v2624 = vsel %vm2610, %v2561, 0
  %v2627 = vsel %vm2610, %v2566, 0
  %v2630 = vsel %vm2610, %v2571, 0
  %v2633 = vsel %vm2610, %v2576, 0
  %2635 = vmatprep.subr.mxu0 %v2581
  %2636 = vmatpush1.msra.mxu0 %v2580
  %2637 = vmatprep.subr.mxu0 %v2583
  %2638 = vmatpush1.msra.mxu0 %v2582
  %2639 = vmatprep.subr.mxu0 %v2585
  %2640 = vmatpush1.msra.mxu0 %v2584
  %2641 = vmatprep.subr.mxu0 %v2587
  %2642 = vmatpush1.msra.mxu0 %v2586
  %2643 = vmatprep.subr.mxu0 %v2589
  %2644 = vmatpush1.msra.mxu0 %v2588
  %2645 = vmatprep.subr.mxu0 %v2591
  %2646 = vmatpush1.msra.mxu0 %v2590
  %2647 = vmatprep.subr.mxu0 %v2593
  %2648 = vmatpush1.msra.mxu0 %v2592
  %2649 = vmatprep.subr.mxu0 %v2595
  %2650 = vmatpush1.msra.mxu0 %v2594
  %2651 = vmatprep.subr.mxu0 %v2597
  %2652 = vmatpush1.msra.mxu0 %v2596
  %2653 = vmatprep.subr.mxu0 %v2599
  %2654 = vmatpush1.msra.mxu0 %v2598
  %2655 = vmatprep.subr.mxu0 %v2601
  %2656 = vmatpush1.msra.mxu0 %v2600
  %2657 = vmatprep.subr.mxu0 %v2603
  %2658 = vmatpush1.msra.mxu0 %v2602
  %2659 = vmatprep.subr.mxu0 %v2605
  %2660 = vmatpush1.msra.mxu0 %v2604
  %2661 = vmatprep.subr.mxu0 %v2607
  %2662 = vmatpush1.msra.mxu0 %v2606
  %2663 = vmatprep.subr.mxu0 %v2609
  %2664 = vmatpush1.msra.mxu0 %v2608
  %2665 = vmatprep.subr.mxu0 0.0
  %2666 = vmatpush1.msra.mxu0 0.0
  %2667 = vmatprep.subr.mxu0 0.0
  %2668 = vmatpush1.msra.mxu0 0.0
  %2669 = vmatprep.subr.mxu0 0.0
  %2670 = vmatpush1.msra.mxu0 0.0
  %2671 = vmatprep.subr.mxu0 0.0
  %2672 = vmatpush1.msra.mxu0 0.0
  %2673 = vmatprep.subr.mxu0 0.0
  %2674 = vmatpush1.msra.mxu0 0.0
  %2675 = vmatprep.subr.mxu0 0.0
  %2676 = vmatpush1.msra.mxu0 0.0
  %2677 = vmatprep.subr.mxu0 0.0
  %2678 = vmatpush1.msra.mxu0 0.0
  %2679 = vmatprep.subr.mxu0 0.0
  %2680 = vmatpush1.msra.mxu0 0.0
  %2681 = vmatprep.subr.mxu0 0.0
  %2682 = vmatpush1.msra.mxu0 0.0
  %2683 = vmatprep.subr.mxu0 0.0
  %2684 = vmatpush1.msra.mxu0 0.0
  %2685 = vmatprep.subr.mxu0 0.0
  %2686 = vmatpush1.msra.mxu0 0.0
  %2687 = vmatprep.subr.mxu0 0.0
  %2688 = vmatpush1.msra.mxu0 0.0
  %2689 = vmatprep.subr.mxu0 0.0
  %2690 = vmatpush1.msra.mxu0 0.0
  %2691 = vmatprep.subr.mxu0 0.0
  %2692 = vmatpush1.msra.mxu0 0.0
  %2693 = vmatprep.subr.mxu0 0.0
  %2694 = vmatpush1.msra.mxu0 0.0
  %2695 = vmatprep.subr.mxu0 0.0
  %2696 = vmatpush1.msra.mxu0 0.0
  %2697 = vmatprep.subr.mxu0 0.0
  %2698 = vmatpush1.msra.mxu0 0.0
  %2699 = vmatprep.mubr.f32.mxu0 0.0
  %2700 = vmatmul.mubr.f32.gmra.mrb[0].mxu0 %v2612
  %v2701 = vpop.f32.mrb[0].mxu0
  %v2702 = vadd.f32 0.0, %v2701
  %v2703 = vpop.f32.mrb[0].mxu0
  %v2704 = vadd.f32 0.0, %v2703
  %2705 = vmatprep.mubr.f32.mxu0 0.0
  %2706 = vmatmul.mubr.f32.gmra.mrb[0].mxu0 %v2615
  %v2707 = vpop.f32.mrb[0].mxu0
  %v2708 = vadd.f32 0.0, %v2707
  %v2709 = vpop.f32.mrb[0].mxu0
  %v2710 = vadd.f32 0.0, %v2709
  %2711 = vmatprep.mubr.f32.mxu0 0.0
  %2712 = vmatmul.mubr.f32.gmra.mrb[0].mxu0 %v2618
  %v2713 = vpop.f32.mrb[0].mxu0
  %v2714 = vadd.f32 0.0, %v2713
  %v2715 = vpop.f32.mrb[0].mxu0
  %v2716 = vadd.f32 0.0, %v2715
  %2717 = vmatprep.mubr.f32.mxu0 0.0
  %2718 = vmatmul.mubr.f32.gmra.mrb[0].mxu0 %v2621
  %v2719 = vpop.f32.mrb[0].mxu0
  %v2720 = vadd.f32 0.0, %v2719
  %v2721 = vpop.f32.mrb[0].mxu0
  %v2722 = vadd.f32 0.0, %v2721
  %2723 = vmatprep.mubr.f32.mxu0 0.0
  %2724 = vmatmul.mubr.f32.gmra.mrb[0].mxu0 %v2624
  %v2725 = vpop.f32.mrb[0].mxu0
  %v2726 = vadd.f32 0.0, %v2725
  %v2727 = vpop.f32.mrb[0].mxu0
  %v2728 = vadd.f32 0.0, %v2727
  %2729 = vmatprep.mubr.f32.mxu0 0.0
  %2730 = vmatmul.mubr.f32.gmra.mrb[0].mxu0 %v2627
  %v2731 = vpop.f32.mrb[0].mxu0
  %v2732 = vadd.f32 0.0, %v2731
  %v2733 = vpop.f32.mrb[0].mxu0
  %v2734 = vadd.f32 0.0, %v2733
  %2735 = vmatprep.mubr.f32.mxu0 0.0
  %2736 = vmatmul.mubr.f32.gmra.mrb[0].mxu0 %v2630
  %v2737 = vpop.f32.mrb[0].mxu0
  %v2738 = vadd.f32 0.0, %v2737
  %v2739 = vpop.f32.mrb[0].mxu0
  %v2740 = vadd.f32 0.0, %v2739
  %2741 = vmatprep.mubr.f32.mxu0 0.0
  %2742 = vmatmul.mubr.f32.gmra.mrb[0].mxu0 %v2633
  %v2743 = vpop.f32.mrb[0].mxu0
  %v2744 = vadd.f32 0.0, %v2743
  %v2745 = vpop.f32.mrb[0].mxu0
  %v2746 = vadd.f32 0.0, %v2745
  %2747 = vdwg.mxu0
  %v2749 = vsel %vm2610, %v2365, 0
  %v2752 = vsel %vm2610, %v2370, 0
  %v2755 = vsel %vm2610, %v2375, 0
  %v2758 = vsel %vm2610, %v2380, 0
  %v2761 = vsel %vm2610, %v2385, 0
  %v2764 = vsel %vm2610, %v2390, 0
  %v2767 = vsel %vm2610, %v2395, 0
  %v2770 = vsel %vm2610, %v2400, 0
  %2772 = vmatprep.subr.mxu0 %v2404
  %2773 = vmatpush1.msra.mxu0 %v2403
  %2774 = vmatprep.subr.mxu0 %v2406
  %2775 = vmatpush1.msra.mxu0 %v2405
  %2776 = vmatprep.subr.mxu0 %v2408
  %2777 = vmatpush1.msra.mxu0 %v2407
  %2778 = vmatprep.subr.mxu0 %v2410
  %2779 = vmatpush1.msra.mxu0 %v2409
  %2780 = vmatprep.subr.mxu0 %v2412
  %2781 = vmatpush1.msra.mxu0 %v2411
  %2782 = vmatprep.subr.mxu0 %v2414
  %2783 = vmatpush1.msra.mxu0 %v2413
  %2784 = vmatprep.subr.mxu0 %v2416
  %2785 = vmatpush1.msra.mxu0 %v2415
  %2786 = vmatprep.subr.mxu0 %v2418
  %2787 = vmatpush1.msra.mxu0 %v2417
  %2788 = vmatprep.subr.mxu0 %v2420
  %2789 = vmatpush1.msra.mxu0 %v2419
  %2790 = vmatprep.subr.mxu0 %v2422
  %2791 = vmatpush1.msra.mxu0 %v2421
  %2792 = vmatprep.subr.mxu0 %v2424
  %2793 = vmatpush1.msra.mxu0 %v2423
  %2794 = vmatprep.subr.mxu0 %v2426
  %2795 = vmatpush1.msra.mxu0 %v2425
  %2796 = vmatprep.subr.mxu0 %v2428
  %2797 = vmatpush1.msra.mxu0 %v2427
  %2798 = vmatprep.subr.mxu0 %v2430
  %2799 = vmatpush1.msra.mxu0 %v2429
  %2800 = vmatprep.subr.mxu0 %v2432
  %2801 = vmatpush1.msra.mxu0 %v2431
  %2802 = vmatprep.subr.mxu0 0.0
  %2803 = vmatpush1.msra.mxu0 0.0
  %2804 = vmatprep.subr.mxu0 0.0
  %2805 = vmatpush1.msra.mxu0 0.0
  %2806 = vmatprep.subr.mxu0 0.0
  %2807 = vmatpush1.msra.mxu0 0.0
  %2808 = vmatprep.subr.mxu0 0.0
  %2809 = vmatpush1.msra.mxu0 0.0
  %2810 = vmatprep.subr.mxu0 0.0
  %2811 = vmatpush1.msra.mxu0 0.0
  %2812 = vmatprep.subr.mxu0 0.0
  %2813 = vmatpush1.msra.mxu0 0.0
  %2814 = vmatprep.subr.mxu0 0.0
  %2815 = vmatpush1.msra.mxu0 0.0
  %2816 = vmatprep.subr.mxu0 0.0
  %2817 = vmatpush1.msra.mxu0 0.0
  %2818 = vmatprep.subr.mxu0 0.0
  %2819 = vmatpush1.msra.mxu0 0.0
  %2820 = vmatprep.subr.mxu0 0.0
  %2821 = vmatpush1.msra.mxu0 0.0
  %2822 = vmatprep.subr.mxu0 0.0
  %2823 = vmatpush1.msra.mxu0 0.0
  %2824 = vmatprep.subr.mxu0 0.0
  %2825 = vmatpush1.msra.mxu0 0.0
  %2826 = vmatprep.subr.mxu0 0.0
  %2827 = vmatpush1.msra.mxu0 0.0
  %2828 = vmatprep.subr.mxu0 0.0
  %2829 = vmatpush1.msra.mxu0 0.0
  %2830 = vmatprep.subr.mxu0 0.0
  %2831 = vmatpush1.msra.mxu0 0.0
  %2832 = vmatprep.subr.mxu0 0.0
  %2833 = vmatpush1.msra.mxu0 0.0
  %2834 = vmatprep.subr.mxu0 0.0
  %2835 = vmatpush1.msra.mxu0 0.0
  %2836 = vmatprep.mubr.f32.mxu0 0.0
  %2837 = vmatmul.mubr.f32.gmra.mrb[0].mxu0 %v2749
  %v2838 = vpop.f32.mrb[0].mxu0
  %v2839 = vadd.f32 %v2702, %v2838
  %v2840 = vpop.f32.mrb[0].mxu0
  %v2841 = vadd.f32 %v2704, %v2840
  %2842 = vmatprep.mubr.f32.mxu0 0.0
  %2843 = vmatmul.mubr.f32.gmra.mrb[0].mxu0 %v2752
  %v2844 = vpop.f32.mrb[0].mxu0
  %v2845 = vadd.f32 %v2708, %v2844
  %v2846 = vpop.f32.mrb[0].mxu0
  %v2847 = vadd.f32 %v2710, %v2846
  %2848 = vmatprep.mubr.f32.mxu0 0.0
  %2849 = vmatmul.mubr.f32.gmra.mrb[0].mxu0 %v2755
  %v2850 = vpop.f32.mrb[0].mxu0
  %v2851 = vadd.f32 %v2714, %v2850
  %v2852 = vpop.f32.mrb[0].mxu0
  %v2853 = vadd.f32 %v2716, %v2852
  %2854 = vmatprep.mubr.f32.mxu0 0.0
  %2855 = vmatmul.mubr.f32.gmra.mrb[0].mxu0 %v2758
  %v2856 = vpop.f32.mrb[0].mxu0
  %v2857 = vadd.f32 %v2720, %v2856
  %v2858 = vpop.f32.mrb[0].mxu0
  %v2859 = vadd.f32 %v2722, %v2858
  %2860 = vmatprep.mubr.f32.mxu0 0.0
  %2861 = vmatmul.mubr.f32.gmra.mrb[0].mxu0 %v2761
  %v2862 = vpop.f32.mrb[0].mxu0
  %v2863 = vadd.f32 %v2726, %v2862
  %v2864 = vpop.f32.mrb[0].mxu0
  %v2865 = vadd.f32 %v2728, %v2864
  %2866 = vmatprep.mubr.f32.mxu0 0.0
  %2867 = vmatmul.mubr.f32.gmra.mrb[0].mxu0 %v2764
  %v2868 = vpop.f32.mrb[0].mxu0
  %v2869 = vadd.f32 %v2732, %v2868
  %v2870 = vpop.f32.mrb[0].mxu0
  %v2871 = vadd.f32 %v2734, %v2870
  %2872 = vmatprep.mubr.f32.mxu0 0.0
  %2873 = vmatmul.mubr.f32.gmra.mrb[0].mxu0 %v2767
  %v2874 = vpop.f32.mrb[0].mxu0
  %v2875 = vadd.f32 %v2738, %v2874
  %v2876 = vpop.f32.mrb[0].mxu0
  %v2877 = vadd.f32 %v2740, %v2876
  %2878 = vmatprep.mubr.f32.mxu0 0.0
  %2879 = vmatmul.mubr.f32.gmra.mrb[0].mxu0 %v2770
  %v2880 = vpop.f32.mrb[0].mxu0
  %v2881 = vadd.f32 %v2744, %v2880
  %v2882 = vpop.f32.mrb[0].mxu0
  %v2883 = vadd.f32 %v2746, %v2882
  %2884 = vdwg.mxu0
  %s2885 = scalar_lea.vmem %s5, 256
  %v2886 = vld [vmem:[%s2885] sm:$0xff]
  %v2887 = vld [vmem:[%s2885 + $0x8] sm:$0xff]
  %v2888 = vld [vmem:[%s2885 + $0x10] sm:$0xff]
  %v2889 = vld [vmem:[%s2885 + $0x18] sm:$0xff]
  %v2890 = vld [vmem:[%s2885 + $0x20] sm:$0xff]
  %v2891 = vld [vmem:[%s2885 + $0x28] sm:$0xff]
  %v2892 = vld [vmem:[%s2885 + $0x30] sm:$0xff]
  %v2893 = vld [vmem:[%s2885 + $0x38] sm:$0xff]
  %v2894 = vld [vmem:[%s2885 + $0x40] sm:$0xff]
  %v2895 = vld [vmem:[%s2885 + $0x48] sm:$0xff]
  %v2896 = vld [vmem:[%s2885 + $0x50] sm:$0xff]
  %v2897 = vld [vmem:[%s2885 + $0x58] sm:$0xff]
  %v2898 = vld [vmem:[%s2885 + $0x60] sm:$0xff]
  %v2899 = vld [vmem:[%s2885 + $0x68] sm:$0xff]
  %v2900 = vld [vmem:[%s2885 + $0x70] sm:$0xff]
  %v2901 = vld [vmem:[%s2885 + $0x78] sm:$0xff]
  %v2903 = vsel %vm2270, %v2887, 0
  %v2906 = vsel %vm2270, %v2889, 0
  %v2909 = vsel %vm2270, %v2891, 0
  %v2912 = vsel %vm2270, %v2893, 0
  %v2915 = vsel %vm2270, %v2895, 0
  %v2918 = vsel %vm2270, %v2897, 0
  %v2921 = vsel %vm2270, %v2899, 0
  %v2924 = vsel %vm2270, %v2901, 0
  %2926 = vmatprep.subr.mxu0 0.0
  %2927 = vmatpush1.msra.mxu0 %v2230
  %2928 = vmatprep.subr.mxu0 0.0
  %2929 = vmatpush1.msra.mxu0 %v2231
  %2930 = vmatprep.subr.mxu0 0.0
  %2931 = vmatpush1.msra.mxu0 %v2232
  %2932 = vmatprep.subr.mxu0 0.0
  %2933 = vmatpush1.msra.mxu0 %v2233
  %2934 = vmatprep.subr.mxu0 0.0
  %2935 = vmatpush1.msra.mxu0 %v2234
  %2936 = vmatprep.subr.mxu0 0.0
  %2937 = vmatpush1.msra.mxu0 %v2235
  %2938 = vmatprep.subr.mxu0 0.0
  %2939 = vmatpush1.msra.mxu0 %v2236
  %2940 = vmatprep.subr.mxu0 0.0
  %2941 = vmatpush1.msra.mxu0 %v2237
  %2942 = vmatprep.subr.mxu0 0.0
  %2943 = vmatpush1.msra.mxu0 %v2238
  %2944 = vmatprep.subr.mxu0 0.0
  %2945 = vmatpush1.msra.mxu0 %v2239
  %2946 = vmatprep.subr.mxu0 0.0
  %2947 = vmatpush1.msra.mxu0 %v2240
  %2948 = vmatprep.subr.mxu0 0.0
  %2949 = vmatpush1.msra.mxu0 %v2241
  %2950 = vmatprep.subr.mxu0 0.0
  %2951 = vmatpush1.msra.mxu0 %v2242
  %2952 = vmatprep.subr.mxu0 0.0
  %2953 = vmatpush1.msra.mxu0 %v2243
  %2954 = vmatprep.subr.mxu0 0.0
  %2955 = vmatpush1.msra.mxu0 %v2244
  %2956 = vmatprep.subr.mxu0 0.0
  %2957 = vmatpush1.msra.mxu0 %v2245
  %2958 = vmatprep.subr.mxu0 0.0
  %2959 = vmatpush1.msra.mxu0 %v2246
  %2960 = vmatprep.subr.mxu0 0.0
  %2961 = vmatpush1.msra.mxu0 %v2247
  %2962 = vmatprep.subr.mxu0 0.0
  %2963 = vmatpush1.msra.mxu0 %v2248
  %2964 = vmatprep.subr.mxu0 0.0
  %2965 = vmatpush1.msra.mxu0 %v2249
  %2966 = vmatprep.subr.mxu0 0.0
  %2967 = vmatpush1.msra.mxu0 %v2250
  %2968 = vmatprep.subr.mxu0 0.0
  %2969 = vmatpush1.msra.mxu0 %v2251
  %2970 = vmatprep.subr.mxu0 0.0
  %2971 = vmatpush1.msra.mxu0 %v2252
  %2972 = vmatprep.subr.mxu0 0.0
  %2973 = vmatpush1.msra.mxu0 %v2296
  %2974 = vmatprep.subr.mxu0 0.0
  %2975 = vmatpush1.msra.mxu0 0.0
  %2976 = vmatprep.subr.mxu0 0.0
  %2977 = vmatpush1.msra.mxu0 0.0
  %2978 = vmatprep.subr.mxu0 0.0
  %2979 = vmatpush1.msra.mxu0 0.0
  %2980 = vmatprep.subr.mxu0 0.0
  %2981 = vmatpush1.msra.mxu0 0.0
  %2982 = vmatprep.subr.mxu0 0.0
  %2983 = vmatpush1.msra.mxu0 0.0
  %2984 = vmatprep.subr.mxu0 0.0
  %2985 = vmatpush1.msra.mxu0 0.0
  %2986 = vmatprep.subr.mxu0 0.0
  %2987 = vmatpush1.msra.mxu0 0.0
  %2988 = vmatprep.subr.mxu0 0.0
  %2989 = vmatpush1.msra.mxu0 0.0
  %2990 = vmatprep.mubr.f32.mxu0 %v2903
  %2991 = vmatmul.mubr.f32.gmra.mrb[0].mxu0 %v2886
  %v2992 = vpop.f32.mrb[0].mxu0
  %v2993 = vadd.f32 0.0, %v2992
  %v2994 = vpop.f32.mrb[0].mxu0
  %2995 = vmatprep.mubr.f32.mxu0 %v2906
  %2996 = vmatmul.mubr.f32.gmra.mrb[0].mxu0 %v2888
  %v2997 = vpop.f32.mrb[0].mxu0
  %v2998 = vadd.f32 0.0, %v2997
  %v2999 = vpop.f32.mrb[0].mxu0
  %3000 = vmatprep.mubr.f32.mxu0 %v2909
  %3001 = vmatmul.mubr.f32.gmra.mrb[0].mxu0 %v2890
  %v3002 = vpop.f32.mrb[0].mxu0
  %v3003 = vadd.f32 0.0, %v3002
  %v3004 = vpop.f32.mrb[0].mxu0
  %3005 = vmatprep.mubr.f32.mxu0 %v2912
  %3006 = vmatmul.mubr.f32.gmra.mrb[0].mxu0 %v2892
  %v3007 = vpop.f32.mrb[0].mxu0
  %v3008 = vadd.f32 0.0, %v3007
  %v3009 = vpop.f32.mrb[0].mxu0
  %3010 = vmatprep.mubr.f32.mxu0 %v2915
  %3011 = vmatmul.mubr.f32.gmra.mrb[0].mxu0 %v2894
  %v3012 = vpop.f32.mrb[0].mxu0
  %v3013 = vadd.f32 0.0, %v3012
  %v3014 = vpop.f32.mrb[0].mxu0
  %3015 = vmatprep.mubr.f32.mxu0 %v2918
  %3016 = vmatmul.mubr.f32.gmra.mrb[0].mxu0 %v2896
  %v3017 = vpop.f32.mrb[0].mxu0
  %v3018 = vadd.f32 0.0, %v3017
  %v3019 = vpop.f32.mrb[0].mxu0
  %3020 = vmatprep.mubr.f32.mxu0 %v2921
  %3021 = vmatmul.mubr.f32.gmra.mrb[0].mxu0 %v2898
  %v3022 = vpop.f32.mrb[0].mxu0
  %v3023 = vadd.f32 0.0, %v3022
  %v3024 = vpop.f32.mrb[0].mxu0
  %3025 = vmatprep.mubr.f32.mxu0 %v2924
  %3026 = vmatmul.mubr.f32.gmra.mrb[0].mxu0 %v2900
  %v3027 = vpop.f32.mrb[0].mxu0
  %v3028 = vadd.f32 0.0, %v3027
  %v3029 = vpop.f32.mrb[0].mxu0
  %3030 = vdwg.mxu0
  %s3031 = scalar_lea.vmem %s3, 480
  %v3032 = vld [vmem:[%s3031] sm:$0xff]
  %v3033 = vld [vmem:[%s3031 + $0x8] sm:$0xff]
  %v3034 = vld [vmem:[%s3031 + $0x10] sm:$0xff]
  %v3035 = vld [vmem:[%s3031 + $0x18] sm:$0xff]
  %v3036 = vld [vmem:[%s3031 + $0x20] sm:$0xff]
  %v3037 = vld [vmem:[%s3031 + $0x28] sm:$0xff]
  %v3038 = vld [vmem:[%s3031 + $0x30] sm:$0xff]
  %v3039 = vld [vmem:[%s3031 + $0x38] sm:$0xff]
  %v3040 = vld [vmem:[%s3031 + $0x40] sm:$0xff]
  %v3041 = vld [vmem:[%s3031 + $0x48] sm:$0xff]
  %v3042 = vld [vmem:[%s3031 + $0x50] sm:$0xff]
  %v3043 = vld [vmem:[%s3031 + $0x58] sm:$0xff]
  %v3044 = vld [vmem:[%s3031 + $0x60] sm:$0xff]
  %v3045 = vld [vmem:[%s3031 + $0x68] sm:$0xff]
  %v3046 = vld [vmem:[%s3031 + $0x70] sm:$0xff]
  %v3047 = vld [vmem:[%s3031 + $0x78] sm:$0xff]
  %v3048 = vld [vmem:[%s3031 + $0x80] sm:$0xff]
  %v3049 = vld [vmem:[%s3031 + $0x88] sm:$0xff]
  %v3050 = vld [vmem:[%s3031 + $0x90] sm:$0xff]
  %v3051 = vld [vmem:[%s3031 + $0x98] sm:$0xff]
  %v3052 = vld [vmem:[%s3031 + $0xa0] sm:$0xff]
  %v3053 = vld [vmem:[%s3031 + $0xa8] sm:$0xff]
  %v3054 = vld [vmem:[%s3031 + $0xb0] sm:$0xff]
  %v3055 = vld [vmem:[%s3031 + $0xb8] sm:$0xff]
  %v3056 = vld [vmem:[%s3031 + $0xc0] sm:$0xff]
  %v3057 = vld [vmem:[%s3031 + $0xc8] sm:$0xff]
  %v3058 = vld [vmem:[%s3031 + $0xd0] sm:$0xff]
  %v3059 = vld [vmem:[%s3031 + $0xd8] sm:$0xff]
  %v3060 = vld [vmem:[%s3031 + $0xe0] sm:$0xff]
  %v3061 = vld [vmem:[%s3031 + $0xe8] sm:$0xff]
  %v3063 = vsel %vm2610, %v2993, 0
  %v3066 = vsel %vm2610, %v2998, 0
  %v3069 = vsel %vm2610, %v3003, 0
  %v3072 = vsel %vm2610, %v3008, 0
  %v3075 = vsel %vm2610, %v3013, 0
  %v3078 = vsel %vm2610, %v3018, 0
  %v3081 = vsel %vm2610, %v3023, 0
  %v3084 = vsel %vm2610, %v3028, 0
  %3086 = vmatprep.subr.mxu0 %v3033
  %3087 = vmatpush1.msra.mxu0 %v3032
  %3088 = vmatprep.subr.mxu0 %v3035
  %3089 = vmatpush1.msra.mxu0 %v3034
  %3090 = vmatprep.subr.mxu0 %v3037
  %3091 = vmatpush1.msra.mxu0 %v3036
  %3092 = vmatprep.subr.mxu0 %v3039
  %3093 = vmatpush1.msra.mxu0 %v3038
  %3094 = vmatprep.subr.mxu0 %v3041
  %3095 = vmatpush1.msra.mxu0 %v3040
  %3096 = vmatprep.subr.mxu0 %v3043
  %3097 = vmatpush1.msra.mxu0 %v3042
  %3098 = vmatprep.subr.mxu0 %v3045
  %3099 = vmatpush1.msra.mxu0 %v3044
  %3100 = vmatprep.subr.mxu0 %v3047
  %3101 = vmatpush1.msra.mxu0 %v3046
  %3102 = vmatprep.subr.mxu0 %v3049
  %3103 = vmatpush1.msra.mxu0 %v3048
  %3104 = vmatprep.subr.mxu0 %v3051
  %3105 = vmatpush1.msra.mxu0 %v3050
  %3106 = vmatprep.subr.mxu0 %v3053
  %3107 = vmatpush1.msra.mxu0 %v3052
  %3108 = vmatprep.subr.mxu0 %v3055
  %3109 = vmatpush1.msra.mxu0 %v3054
  %3110 = vmatprep.subr.mxu0 %v3057
  %3111 = vmatpush1.msra.mxu0 %v3056
  %3112 = vmatprep.subr.mxu0 %v3059
  %3113 = vmatpush1.msra.mxu0 %v3058
  %3114 = vmatprep.subr.mxu0 %v3061
  %3115 = vmatpush1.msra.mxu0 %v3060
  %3116 = vmatprep.subr.mxu0 0.0
  %3117 = vmatpush1.msra.mxu0 0.0
  %3118 = vmatprep.subr.mxu0 0.0
  %3119 = vmatpush1.msra.mxu0 0.0
  %3120 = vmatprep.subr.mxu0 0.0
  %3121 = vmatpush1.msra.mxu0 0.0
  %3122 = vmatprep.subr.mxu0 0.0
  %3123 = vmatpush1.msra.mxu0 0.0
  %3124 = vmatprep.subr.mxu0 0.0
  %3125 = vmatpush1.msra.mxu0 0.0
  %3126 = vmatprep.subr.mxu0 0.0
  %3127 = vmatpush1.msra.mxu0 0.0
  %3128 = vmatprep.subr.mxu0 0.0
  %3129 = vmatpush1.msra.mxu0 0.0
  %3130 = vmatprep.subr.mxu0 0.0
  %3131 = vmatpush1.msra.mxu0 0.0
  %3132 = vmatprep.subr.mxu0 0.0
  %3133 = vmatpush1.msra.mxu0 0.0
  %3134 = vmatprep.subr.mxu0 0.0
  %3135 = vmatpush1.msra.mxu0 0.0
  %3136 = vmatprep.subr.mxu0 0.0
  %3137 = vmatpush1.msra.mxu0 0.0
  %3138 = vmatprep.subr.mxu0 0.0
  %3139 = vmatpush1.msra.mxu0 0.0
  %3140 = vmatprep.subr.mxu0 0.0
  %3141 = vmatpush1.msra.mxu0 0.0
  %3142 = vmatprep.subr.mxu0 0.0
  %3143 = vmatpush1.msra.mxu0 0.0
  %3144 = vmatprep.subr.mxu0 0.0
  %3145 = vmatpush1.msra.mxu0 0.0
  %3146 = vmatprep.subr.mxu0 0.0
  %3147 = vmatpush1.msra.mxu0 0.0
  %3148 = vmatprep.subr.mxu0 0.0
  %3149 = vmatpush1.msra.mxu0 0.0
  %3150 = vmatprep.mubr.f32.mxu0 0.0
  %3151 = vmatmul.mubr.f32.gmra.mrb[0].mxu0 %v3063
  %v3152 = vpop.f32.mrb[0].mxu0
  %v3153 = vadd.f32 0.0, %v3152
  %v3154 = vpop.f32.mrb[0].mxu0
  %v3155 = vadd.f32 0.0, %v3154
  %3156 = vmatprep.mubr.f32.mxu0 0.0
  %3157 = vmatmul.mubr.f32.gmra.mrb[0].mxu0 %v3066
  %v3158 = vpop.f32.mrb[0].mxu0
  %v3159 = vadd.f32 0.0, %v3158
  %v3160 = vpop.f32.mrb[0].mxu0
  %v3161 = vadd.f32 0.0, %v3160
  %3162 = vmatprep.mubr.f32.mxu0 0.0
  %3163 = vmatmul.mubr.f32.gmra.mrb[0].mxu0 %v3069
  %v3164 = vpop.f32.mrb[0].mxu0
  %v3165 = vadd.f32 0.0, %v3164
  %v3166 = vpop.f32.mrb[0].mxu0
  %v3167 = vadd.f32 0.0, %v3166
  %3168 = vmatprep.mubr.f32.mxu0 0.0
  %3169 = vmatmul.mubr.f32.gmra.mrb[0].mxu0 %v3072
  %v3170 = vpop.f32.mrb[0].mxu0
  %v3171 = vadd.f32 0.0, %v3170
  %v3172 = vpop.f32.mrb[0].mxu0
  %v3173 = vadd.f32 0.0, %v3172
  %3174 = vmatprep.mubr.f32.mxu0 0.0
  %3175 = vmatmul.mubr.f32.gmra.mrb[0].mxu0 %v3075
  %v3176 = vpop.f32.mrb[0].mxu0
  %v3177 = vadd.f32 0.0, %v3176
  %v3178 = vpop.f32.mrb[0].mxu0
  %v3179 = vadd.f32 0.0, %v3178
  %3180 = vmatprep.mubr.f32.mxu0 0.0
  %3181 = vmatmul.mubr.f32.gmra.mrb[0].mxu0 %v3078
  %v3182 = vpop.f32.mrb[0].mxu0
  %v3183 = vadd.f32 0.0, %v3182
  %v3184 = vpop.f32.mrb[0].mxu0
  %v3185 = vadd.f32 0.0, %v3184
  %3186 = vmatprep.mubr.f32.mxu0 0.0
  %3187 = vmatmul.mubr.f32.gmra.mrb[0].mxu0 %v3081
  %v3188 = vpop.f32.mrb[0].mxu0
  %v3189 = vadd.f32 0.0, %v3188
  %v3190 = vpop.f32.mrb[0].mxu0
  %v3191 = vadd.f32 0.0, %v3190
  %3192 = vmatprep.mubr.f32.mxu0 0.0
  %3193 = vmatmul.mubr.f32.gmra.mrb[0].mxu0 %v3084
  %v3194 = vpop.f32.mrb[0].mxu0
  %v3195 = vadd.f32 0.0, %v3194
  %v3196 = vpop.f32.mrb[0].mxu0
  %v3197 = vadd.f32 0.0, %v3196
  %3198 = vdwg.mxu0
  %v3199 = vadd.f32 %v2839, %v3153
  %v3200 = vadd.f32 %v2841, %v3155
  %v3201 = vadd.f32 %v2845, %v3159
  %v3202 = vadd.f32 %v2847, %v3161
  %v3203 = vadd.f32 %v2851, %v3165
  %v3204 = vadd.f32 %v2853, %v3167
  %v3205 = vadd.f32 %v2857, %v3171
  %v3206 = vadd.f32 %v2859, %v3173
  %v3207 = vadd.f32 %v2863, %v3177
  %v3208 = vadd.f32 %v2865, %v3179
  %v3209 = vadd.f32 %v2869, %v3183
  %v3210 = vadd.f32 %v2871, %v3185
  %v3211 = vadd.f32 %v2875, %v3189
  %v3212 = vadd.f32 %v2877, %v3191
  %v3213 = vadd.f32 %v2881, %v3195
  %v3214 = vadd.f32 %v2883, %v3197
  %s3215 = scalar_lea.vmem %s5, 384
  %v3216 = vld [vmem:[%s3215] sm:$0xff]
  %v3217 = vld [vmem:[%s3215 + $0x8] sm:$0xff]
  %v3218 = vld [vmem:[%s3215 + $0x10] sm:$0xff]
  %v3219 = vld [vmem:[%s3215 + $0x18] sm:$0xff]
  %v3220 = vld [vmem:[%s3215 + $0x20] sm:$0xff]
  %v3221 = vld [vmem:[%s3215 + $0x28] sm:$0xff]
  %v3222 = vld [vmem:[%s3215 + $0x30] sm:$0xff]
  %v3223 = vld [vmem:[%s3215 + $0x38] sm:$0xff]
  %v3224 = vld [vmem:[%s3215 + $0x40] sm:$0xff]
  %v3225 = vld [vmem:[%s3215 + $0x48] sm:$0xff]
  %v3226 = vld [vmem:[%s3215 + $0x50] sm:$0xff]
  %v3227 = vld [vmem:[%s3215 + $0x58] sm:$0xff]
  %v3228 = vld [vmem:[%s3215 + $0x60] sm:$0xff]
  %v3229 = vld [vmem:[%s3215 + $0x68] sm:$0xff]
  %v3230 = vld [vmem:[%s3215 + $0x70] sm:$0xff]
  %v3231 = vld [vmem:[%s3215 + $0x78] sm:$0xff]
  %v3233 = vsel %vm2270, %v3217, 0
  %v3236 = vsel %vm2270, %v3219, 0
  %v3239 = vsel %vm2270, %v3221, 0
  %v3242 = vsel %vm2270, %v3223, 0
  %v3245 = vsel %vm2270, %v3225, 0
  %v3248 = vsel %vm2270, %v3227, 0
  %v3251 = vsel %vm2270, %v3229, 0
  %v3254 = vsel %vm2270, %v3231, 0
  %3256 = vmatprep.subr.mxu0 0.0
  %3257 = vmatpush1.msra.mxu0 %v2230
  %3258 = vmatprep.subr.mxu0 0.0
  %3259 = vmatpush1.msra.mxu0 %v2231
  %3260 = vmatprep.subr.mxu0 0.0
  %3261 = vmatpush1.msra.mxu0 %v2232
  %3262 = vmatprep.subr.mxu0 0.0
  %3263 = vmatpush1.msra.mxu0 %v2233
  %3264 = vmatprep.subr.mxu0 0.0
  %3265 = vmatpush1.msra.mxu0 %v2234
  %3266 = vmatprep.subr.mxu0 0.0
  %3267 = vmatpush1.msra.mxu0 %v2235
  %3268 = vmatprep.subr.mxu0 0.0
  %3269 = vmatpush1.msra.mxu0 %v2236
  %3270 = vmatprep.subr.mxu0 0.0
  %3271 = vmatpush1.msra.mxu0 %v2237
  %3272 = vmatprep.subr.mxu0 0.0
  %3273 = vmatpush1.msra.mxu0 %v2238
  %3274 = vmatprep.subr.mxu0 0.0
  %3275 = vmatpush1.msra.mxu0 %v2239
  %3276 = vmatprep.subr.mxu0 0.0
  %3277 = vmatpush1.msra.mxu0 %v2240
  %3278 = vmatprep.subr.mxu0 0.0
  %3279 = vmatpush1.msra.mxu0 %v2241
  %3280 = vmatprep.subr.mxu0 0.0
  %3281 = vmatpush1.msra.mxu0 %v2242
  %3282 = vmatprep.subr.mxu0 0.0
  %3283 = vmatpush1.msra.mxu0 %v2243
  %3284 = vmatprep.subr.mxu0 0.0
  %3285 = vmatpush1.msra.mxu0 %v2244
  %3286 = vmatprep.subr.mxu0 0.0
  %3287 = vmatpush1.msra.mxu0 %v2245
  %3288 = vmatprep.subr.mxu0 0.0
  %3289 = vmatpush1.msra.mxu0 %v2246
  %3290 = vmatprep.subr.mxu0 0.0
  %3291 = vmatpush1.msra.mxu0 %v2247
  %3292 = vmatprep.subr.mxu0 0.0
  %3293 = vmatpush1.msra.mxu0 %v2248
  %3294 = vmatprep.subr.mxu0 0.0
  %3295 = vmatpush1.msra.mxu0 %v2249
  %3296 = vmatprep.subr.mxu0 0.0
  %3297 = vmatpush1.msra.mxu0 %v2250
  %3298 = vmatprep.subr.mxu0 0.0
  %3299 = vmatpush1.msra.mxu0 %v2251
  %3300 = vmatprep.subr.mxu0 0.0
  %3301 = vmatpush1.msra.mxu0 %v2252
  %3302 = vmatprep.subr.mxu0 0.0
  %3303 = vmatpush1.msra.mxu0 %v2296
  %3304 = vmatprep.subr.mxu0 0.0
  %3305 = vmatpush1.msra.mxu0 0.0
  %3306 = vmatprep.subr.mxu0 0.0
  %3307 = vmatpush1.msra.mxu0 0.0
  %3308 = vmatprep.subr.mxu0 0.0
  %3309 = vmatpush1.msra.mxu0 0.0
  %3310 = vmatprep.subr.mxu0 0.0
  %3311 = vmatpush1.msra.mxu0 0.0
  %3312 = vmatprep.subr.mxu0 0.0
  %3313 = vmatpush1.msra.mxu0 0.0
  %3314 = vmatprep.subr.mxu0 0.0
  %3315 = vmatpush1.msra.mxu0 0.0
  %3316 = vmatprep.subr.mxu0 0.0
  %3317 = vmatpush1.msra.mxu0 0.0
  %3318 = vmatprep.subr.mxu0 0.0
  %3319 = vmatpush1.msra.mxu0 0.0
  %3320 = vmatprep.mubr.f32.mxu0 %v3233
  %3321 = vmatmul.mubr.f32.gmra.mrb[0].mxu0 %v3216
  %v3322 = vpop.f32.mrb[0].mxu0
  %v3323 = vadd.f32 0.0, %v3322
  %v3324 = vpop.f32.mrb[0].mxu0
  %3325 = vmatprep.mubr.f32.mxu0 %v3236
  %3326 = vmatmul.mubr.f32.gmra.mrb[0].mxu0 %v3218
  %v3327 = vpop.f32.mrb[0].mxu0
  %v3328 = vadd.f32 0.0, %v3327
  %v3329 = vpop.f32.mrb[0].mxu0
  %3330 = vmatprep.mubr.f32.mxu0 %v3239
  %3331 = vmatmul.mubr.f32.gmra.mrb[0].mxu0 %v3220
  %v3332 = vpop.f32.mrb[0].mxu0
  %v3333 = vadd.f32 0.0, %v3332
  %v3334 = vpop.f32.mrb[0].mxu0
  %3335 = vmatprep.mubr.f32.mxu0 %v3242
  %3336 = vmatmul.mubr.f32.gmra.mrb[0].mxu0 %v3222
  %v3337 = vpop.f32.mrb[0].mxu0
  %v3338 = vadd.f32 0.0, %v3337
  %v3339 = vpop.f32.mrb[0].mxu0
  %3340 = vmatprep.mubr.f32.mxu0 %v3245
  %3341 = vmatmul.mubr.f32.gmra.mrb[0].mxu0 %v3224
  %v3342 = vpop.f32.mrb[0].mxu0
  %v3343 = vadd.f32 0.0, %v3342
  %v3344 = vpop.f32.mrb[0].mxu0
  %3345 = vmatprep.mubr.f32.mxu0 %v3248
  %3346 = vmatmul.mubr.f32.gmra.mrb[0].mxu0 %v3226
  %v3347 = vpop.f32.mrb[0].mxu0
  %v3348 = vadd.f32 0.0, %v3347
  %v3349 = vpop.f32.mrb[0].mxu0
  %3350 = vmatprep.mubr.f32.mxu0 %v3251
  %3351 = vmatmul.mubr.f32.gmra.mrb[0].mxu0 %v3228
  %v3352 = vpop.f32.mrb[0].mxu0
  %v3353 = vadd.f32 0.0, %v3352
  %v3354 = vpop.f32.mrb[0].mxu0
  %3355 = vmatprep.mubr.f32.mxu0 %v3254
  %3356 = vmatmul.mubr.f32.gmra.mrb[0].mxu0 %v3230
  %v3357 = vpop.f32.mrb[0].mxu0
  %v3358 = vadd.f32 0.0, %v3357
  %v3359 = vpop.f32.mrb[0].mxu0
  %3360 = vdwg.mxu0
  %s3361 = scalar_lea.vmem %s3, 720
  %v3362 = vld [vmem:[%s3361] sm:$0xff]
  %v3363 = vld [vmem:[%s3361 + $0x8] sm:$0xff]
  %v3364 = vld [vmem:[%s3361 + $0x10] sm:$0xff]
  %v3365 = vld [vmem:[%s3361 + $0x18] sm:$0xff]
  %v3366 = vld [vmem:[%s3361 + $0x20] sm:$0xff]
  %v3367 = vld [vmem:[%s3361 + $0x28] sm:$0xff]
  %v3368 = vld [vmem:[%s3361 + $0x30] sm:$0xff]
  %v3369 = vld [vmem:[%s3361 + $0x38] sm:$0xff]
  %v3370 = vld [vmem:[%s3361 + $0x40] sm:$0xff]
  %v3371 = vld [vmem:[%s3361 + $0x48] sm:$0xff]
  %v3372 = vld [vmem:[%s3361 + $0x50] sm:$0xff]
  %v3373 = vld [vmem:[%s3361 + $0x58] sm:$0xff]
  %v3374 = vld [vmem:[%s3361 + $0x60] sm:$0xff]
  %v3375 = vld [vmem:[%s3361 + $0x68] sm:$0xff]
  %v3376 = vld [vmem:[%s3361 + $0x70] sm:$0xff]
  %v3377 = vld [vmem:[%s3361 + $0x78] sm:$0xff]
  %v3378 = vld [vmem:[%s3361 + $0x80] sm:$0xff]
  %v3379 = vld [vmem:[%s3361 + $0x88] sm:$0xff]
  %v3380 = vld [vmem:[%s3361 + $0x90] sm:$0xff]
  %v3381 = vld [vmem:[%s3361 + $0x98] sm:$0xff]
  %v3382 = vld [vmem:[%s3361 + $0xa0] sm:$0xff]
  %v3383 = vld [vmem:[%s3361 + $0xa8] sm:$0xff]
  %v3384 = vld [vmem:[%s3361 + $0xb0] sm:$0xff]
  %v3385 = vld [vmem:[%s3361 + $0xb8] sm:$0xff]
  %v3386 = vld [vmem:[%s3361 + $0xc0] sm:$0xff]
  %v3387 = vld [vmem:[%s3361 + $0xc8] sm:$0xff]
  %v3388 = vld [vmem:[%s3361 + $0xd0] sm:$0xff]
  %v3389 = vld [vmem:[%s3361 + $0xd8] sm:$0xff]
  %v3390 = vld [vmem:[%s3361 + $0xe0] sm:$0xff]
  %v3391 = vld [vmem:[%s3361 + $0xe8] sm:$0xff]
  %v3393 = vsel %vm2610, %v3323, 0
  %v3396 = vsel %vm2610, %v3328, 0
  %v3399 = vsel %vm2610, %v3333, 0
  %v3402 = vsel %vm2610, %v3338, 0
  %v3405 = vsel %vm2610, %v3343, 0
  %v3408 = vsel %vm2610, %v3348, 0
  %v3411 = vsel %vm2610, %v3353, 0
  %v3414 = vsel %vm2610, %v3358, 0
  %3416 = vmatprep.subr.mxu0 %v3363
  %3417 = vmatpush1.msra.mxu0 %v3362
  %3418 = vmatprep.subr.mxu0 %v3365
  %3419 = vmatpush1.msra.mxu0 %v3364
  %3420 = vmatprep.subr.mxu0 %v3367
  %3421 = vmatpush1.msra.mxu0 %v3366
  %3422 = vmatprep.subr.mxu0 %v3369
  %3423 = vmatpush1.msra.mxu0 %v3368
  %3424 = vmatprep.subr.mxu0 %v3371
  %3425 = vmatpush1.msra.mxu0 %v3370
  %3426 = vmatprep.subr.mxu0 %v3373
  %3427 = vmatpush1.msra.mxu0 %v3372
  %3428 = vmatprep.subr.mxu0 %v3375
  %3429 = vmatpush1.msra.mxu0 %v3374
  %3430 = vmatprep.subr.mxu0 %v3377
  %3431 = vmatpush1.msra.mxu0 %v3376
  %3432 = vmatprep.subr.mxu0 %v3379
  %3433 = vmatpush1.msra.mxu0 %v3378
  %3434 = vmatprep.subr.mxu0 %v3381
  %3435 = vmatpush1.msra.mxu0 %v3380
  %3436 = vmatprep.subr.mxu0 %v3383
  %3437 = vmatpush1.msra.mxu0 %v3382
  %3438 = vmatprep.subr.mxu0 %v3385
  %3439 = vmatpush1.msra.mxu0 %v3384
  %3440 = vmatprep.subr.mxu0 %v3387
  %3441 = vmatpush1.msra.mxu0 %v3386
  %3442 = vmatprep.subr.mxu0 %v3389
  %3443 = vmatpush1.msra.mxu0 %v3388
  %3444 = vmatprep.subr.mxu0 %v3391
  %3445 = vmatpush1.msra.mxu0 %v3390
  %3446 = vmatprep.subr.mxu0 0.0
  %3447 = vmatpush1.msra.mxu0 0.0
  %3448 = vmatprep.subr.mxu0 0.0
  %3449 = vmatpush1.msra.mxu0 0.0
  %3450 = vmatprep.subr.mxu0 0.0
  %3451 = vmatpush1.msra.mxu0 0.0
  %3452 = vmatprep.subr.mxu0 0.0
  %3453 = vmatpush1.msra.mxu0 0.0
  %3454 = vmatprep.subr.mxu0 0.0
  %3455 = vmatpush1.msra.mxu0 0.0
  %3456 = vmatprep.subr.mxu0 0.0
  %3457 = vmatpush1.msra.mxu0 0.0
  %3458 = vmatprep.subr.mxu0 0.0
  %3459 = vmatpush1.msra.mxu0 0.0
  %3460 = vmatprep.subr.mxu0 0.0
  %3461 = vmatpush1.msra.mxu0 0.0
  %3462 = vmatprep.subr.mxu0 0.0
  %3463 = vmatpush1.msra.mxu0 0.0
  %3464 = vmatprep.subr.mxu0 0.0
  %3465 = vmatpush1.msra.mxu0 0.0
  %3466 = vmatprep.subr.mxu0 0.0
  %3467 = vmatpush1.msra.mxu0 0.0
  %3468 = vmatprep.subr.mxu0 0.0
  %3469 = vmatpush1.msra.mxu0 0.0
  %3470 = vmatprep.subr.mxu0 0.0
  %3471 = vmatpush1.msra.mxu0 0.0
  %3472 = vmatprep.subr.mxu0 0.0
  %3473 = vmatpush1.msra.mxu0 0.0
  %3474 = vmatprep.subr.mxu0 0.0
  %3475 = vmatpush1.msra.mxu0 0.0
  %3476 = vmatprep.subr.mxu0 0.0
  %3477 = vmatpush1.msra.mxu0 0.0
  %3478 = vmatprep.subr.mxu0 0.0
  %3479 = vmatpush1.msra.mxu0 0.0
  %3480 = vmatprep.mubr.f32.mxu0 0.0
  %3481 = vmatmul.mubr.f32.gmra.mrb[0].mxu0 %v3393
  %v3482 = vpop.f32.mrb[0].mxu0
  %v3483 = vadd.f32 0.0, %v3482
  %v3484 = vpop.f32.mrb[0].mxu0
  %v3485 = vadd.f32 0.0, %v3484
  %3486 = vmatprep.mubr.f32.mxu0 0.0
  %3487 = vmatmul.mubr.f32.gmra.mrb[0].mxu0 %v3396
  %v3488 = vpop.f32.mrb[0].mxu0
  %v3489 = vadd.f32 0.0, %v3488
  %v3490 = vpop.f32.mrb[0].mxu0
  %v3491 = vadd.f32 0.0, %v3490
  %3492 = vmatprep.mubr.f32.mxu0 0.0
  %3493 = vmatmul.mubr.f32.gmra.mrb[0].mxu0 %v3399
  %v3494 = vpop.f32.mrb[0].mxu0
  %v3495 = vadd.f32 0.0, %v3494
  %v3496 = vpop.f32.mrb[0].mxu0
  %v3497 = vadd.f32 0.0, %v3496
  %3498 = vmatprep.mubr.f32.mxu0 0.0
  %3499 = vmatmul.mubr.f32.gmra.mrb[0].mxu0 %v3402
  %v3500 = vpop.f32.mrb[0].mxu0
  %v3501 = vadd.f32 0.0, %v3500
  %v3502 = vpop.f32.mrb[0].mxu0
  %v3503 = vadd.f32 0.0, %v3502
  %3504 = vmatprep.mubr.f32.mxu0 0.0
  %3505 = vmatmul.mubr.f32.gmra.mrb[0].mxu0 %v3405
  %v3506 = vpop.f32.mrb[0].mxu0
  %v3507 = vadd.f32 0.0, %v3506
  %v3508 = vpop.f32.mrb[0].mxu0
  %v3509 = vadd.f32 0.0, %v3508
  %3510 = vmatprep.mubr.f32.mxu0 0.0
  %3511 = vmatmul.mubr.f32.gmra.mrb[0].mxu0 %v3408
  %v3512 = vpop.f32.mrb[0].mxu0
  %v3513 = vadd.f32 0.0, %v3512
  %v3514 = vpop.f32.mrb[0].mxu0
  %v3515 = vadd.f32 0.0, %v3514
  %3516 = vmatprep.mubr.f32.mxu0 0.0
  %3517 = vmatmul.mubr.f32.gmra.mrb[0].mxu0 %v3411
  %v3518 = vpop.f32.mrb[0].mxu0
  %v3519 = vadd.f32 0.0, %v3518
  %v3520 = vpop.f32.mrb[0].mxu0
  %v3521 = vadd.f32 0.0, %v3520
  %3522 = vmatprep.mubr.f32.mxu0 0.0
  %3523 = vmatmul.mubr.f32.gmra.mrb[0].mxu0 %v3414
  %v3524 = vpop.f32.mrb[0].mxu0
  %v3525 = vadd.f32 0.0, %v3524
  %v3526 = vpop.f32.mrb[0].mxu0
  %v3527 = vadd.f32 0.0, %v3526
  %3528 = vdwg.mxu0
  %v3529 = vadd.f32 %v3199, %v3483
  %v3530 = vadd.f32 %v3200, %v3485
  %v3531 = vadd.f32 %v3201, %v3489
  %v3532 = vadd.f32 %v3202, %v3491
  %v3533 = vadd.f32 %v3203, %v3495
  %v3534 = vadd.f32 %v3204, %v3497
  %v3535 = vadd.f32 %v3205, %v3501
  %v3536 = vadd.f32 %v3206, %v3503
  %v3537 = vadd.f32 %v3207, %v3507
  %v3538 = vadd.f32 %v3208, %v3509
  %v3539 = vadd.f32 %v3209, %v3513
  %v3540 = vadd.f32 %v3210, %v3515
  %v3541 = vadd.f32 %v3211, %v3519
  %v3542 = vadd.f32 %v3212, %v3521
  %v3543 = vadd.f32 %v3213, %v3525
  %v3544 = vadd.f32 %v3214, %v3527
  %s3545 = scalar_lea.vmem %s5, 512
  %v3546 = vld [vmem:[%s3545] sm:$0xff]
  %v3547 = vld [vmem:[%s3545 + $0x8] sm:$0xff]
  %v3548 = vld [vmem:[%s3545 + $0x10] sm:$0xff]
  %v3549 = vld [vmem:[%s3545 + $0x18] sm:$0xff]
  %v3550 = vld [vmem:[%s3545 + $0x20] sm:$0xff]
  %v3551 = vld [vmem:[%s3545 + $0x28] sm:$0xff]
  %v3552 = vld [vmem:[%s3545 + $0x30] sm:$0xff]
  %v3553 = vld [vmem:[%s3545 + $0x38] sm:$0xff]
  %v3554 = vld [vmem:[%s3545 + $0x40] sm:$0xff]
  %v3555 = vld [vmem:[%s3545 + $0x48] sm:$0xff]
  %v3556 = vld [vmem:[%s3545 + $0x50] sm:$0xff]
  %v3557 = vld [vmem:[%s3545 + $0x58] sm:$0xff]
  %v3558 = vld [vmem:[%s3545 + $0x60] sm:$0xff]
  %v3559 = vld [vmem:[%s3545 + $0x68] sm:$0xff]
  %v3560 = vld [vmem:[%s3545 + $0x70] sm:$0xff]
  %v3561 = vld [vmem:[%s3545 + $0x78] sm:$0xff]
  %v3563 = vsel %vm2270, %v3547, 0
  %v3566 = vsel %vm2270, %v3549, 0
  %v3569 = vsel %vm2270, %v3551, 0
  %v3572 = vsel %vm2270, %v3553, 0
  %v3575 = vsel %vm2270, %v3555, 0
  %v3578 = vsel %vm2270, %v3557, 0
  %v3581 = vsel %vm2270, %v3559, 0
  %v3584 = vsel %vm2270, %v3561, 0
  %3586 = vmatprep.subr.mxu0 0.0
  %3587 = vmatpush1.msra.mxu0 %v2230
  %3588 = vmatprep.subr.mxu0 0.0
  %3589 = vmatpush1.msra.mxu0 %v2231
  %3590 = vmatprep.subr.mxu0 0.0
  %3591 = vmatpush1.msra.mxu0 %v2232
  %3592 = vmatprep.subr.mxu0 0.0
  %3593 = vmatpush1.msra.mxu0 %v2233
  %3594 = vmatprep.subr.mxu0 0.0
  %3595 = vmatpush1.msra.mxu0 %v2234
  %3596 = vmatprep.subr.mxu0 0.0
  %3597 = vmatpush1.msra.mxu0 %v2235
  %3598 = vmatprep.subr.mxu0 0.0
  %3599 = vmatpush1.msra.mxu0 %v2236
  %3600 = vmatprep.subr.mxu0 0.0
  %3601 = vmatpush1.msra.mxu0 %v2237
  %3602 = vmatprep.subr.mxu0 0.0
  %3603 = vmatpush1.msra.mxu0 %v2238
  %3604 = vmatprep.subr.mxu0 0.0
  %3605 = vmatpush1.msra.mxu0 %v2239
  %3606 = vmatprep.subr.mxu0 0.0
  %3607 = vmatpush1.msra.mxu0 %v2240
  %3608 = vmatprep.subr.mxu0 0.0
  %3609 = vmatpush1.msra.mxu0 %v2241
  %3610 = vmatprep.subr.mxu0 0.0
  %3611 = vmatpush1.msra.mxu0 %v2242
  %3612 = vmatprep.subr.mxu0 0.0
  %3613 = vmatpush1.msra.mxu0 %v2243
  %3614 = vmatprep.subr.mxu0 0.0
  %3615 = vmatpush1.msra.mxu0 %v2244
  %3616 = vmatprep.subr.mxu0 0.0
  %3617 = vmatpush1.msra.mxu0 %v2245
  %3618 = vmatprep.subr.mxu0 0.0
  %3619 = vmatpush1.msra.mxu0 %v2246
  %3620 = vmatprep.subr.mxu0 0.0
  %3621 = vmatpush1.msra.mxu0 %v2247
  %3622 = vmatprep.subr.mxu0 0.0
  %3623 = vmatpush1.msra.mxu0 %v2248
  %3624 = vmatprep.subr.mxu0 0.0
  %3625 = vmatpush1.msra.mxu0 %v2249
  %3626 = vmatprep.subr.mxu0 0.0
  %3627 = vmatpush1.msra.mxu0 %v2250
  %3628 = vmatprep.subr.mxu0 0.0
  %3629 = vmatpush1.msra.mxu0 %v2251
  %3630 = vmatprep.subr.mxu0 0.0
  %3631 = vmatpush1.msra.mxu0 %v2252
  %3632 = vmatprep.subr.mxu0 0.0
  %3633 = vmatpush1.msra.mxu0 %v2296
  %3634 = vmatprep.subr.mxu0 0.0
  %3635 = vmatpush1.msra.mxu0 0.0
  %3636 = vmatprep.subr.mxu0 0.0
  %3637 = vmatpush1.msra.mxu0 0.0
  %3638 = vmatprep.subr.mxu0 0.0
  %3639 = vmatpush1.msra.mxu0 0.0
  %3640 = vmatprep.subr.mxu0 0.0
  %3641 = vmatpush1.msra.mxu0 0.0
  %3642 = vmatprep.subr.mxu0 0.0
  %3643 = vmatpush1.msra.mxu0 0.0
  %3644 = vmatprep.subr.mxu0 0.0
  %3645 = vmatpush1.msra.mxu0 0.0
  %3646 = vmatprep.subr.mxu0 0.0
  %3647 = vmatpush1.msra.mxu0 0.0
  %3648 = vmatprep.subr.mxu0 0.0
  %3649 = vmatpush1.msra.mxu0 0.0
  %3650 = vmatprep.mubr.f32.mxu0 %v3563
  %3651 = vmatmul.mubr.f32.gmra.mrb[0].mxu0 %v3546
  %v3652 = vpop.f32.mrb[0].mxu0
  %v3653 = vadd.f32 0.0, %v3652
  %v3654 = vpop.f32.mrb[0].mxu0
  %3655 = vmatprep.mubr.f32.mxu0 %v3566
  %3656 = vmatmul.mubr.f32.gmra.mrb[0].mxu0 %v3548
  %v3657 = vpop.f32.mrb[0].mxu0
  %v3658 = vadd.f32 0.0, %v3657
  %v3659 = vpop.f32.mrb[0].mxu0
  %3660 = vmatprep.mubr.f32.mxu0 %v3569
  %3661 = vmatmul.mubr.f32.gmra.mrb[0].mxu0 %v3550
  %v3662 = vpop.f32.mrb[0].mxu0
  %v3663 = vadd.f32 0.0, %v3662
  %v3664 = vpop.f32.mrb[0].mxu0
  %3665 = vmatprep.mubr.f32.mxu0 %v3572
  %3666 = vmatmul.mubr.f32.gmra.mrb[0].mxu0 %v3552
  %v3667 = vpop.f32.mrb[0].mxu0
  %v3668 = vadd.f32 0.0, %v3667
  %v3669 = vpop.f32.mrb[0].mxu0
  %3670 = vmatprep.mubr.f32.mxu0 %v3575
  %3671 = vmatmul.mubr.f32.gmra.mrb[0].mxu0 %v3554
  %v3672 = vpop.f32.mrb[0].mxu0
  %v3673 = vadd.f32 0.0, %v3672
  %v3674 = vpop.f32.mrb[0].mxu0
  %3675 = vmatprep.mubr.f32.mxu0 %v3578
  %3676 = vmatmul.mubr.f32.gmra.mrb[0].mxu0 %v3556
  %v3677 = vpop.f32.mrb[0].mxu0
  %v3678 = vadd.f32 0.0, %v3677
  %v3679 = vpop.f32.mrb[0].mxu0
  %3680 = vmatprep.mubr.f32.mxu0 %v3581
  %3681 = vmatmul.mubr.f32.gmra.mrb[0].mxu0 %v3558
  %v3682 = vpop.f32.mrb[0].mxu0
  %v3683 = vadd.f32 0.0, %v3682
  %v3684 = vpop.f32.mrb[0].mxu0
  %3685 = vmatprep.mubr.f32.mxu0 %v3584
  %3686 = vmatmul.mubr.f32.gmra.mrb[0].mxu0 %v3560
  %v3687 = vpop.f32.mrb[0].mxu0
  %v3688 = vadd.f32 0.0, %v3687
  %v3689 = vpop.f32.mrb[0].mxu0
  %3690 = vdwg.mxu0
  %s3691 = scalar_lea.vmem %s3, 960
  %v3692 = vld [vmem:[%s3691] sm:$0xff]
  %v3693 = vld [vmem:[%s3691 + $0x8] sm:$0xff]
  %v3694 = vld [vmem:[%s3691 + $0x10] sm:$0xff]
  %v3695 = vld [vmem:[%s3691 + $0x18] sm:$0xff]
  %v3696 = vld [vmem:[%s3691 + $0x20] sm:$0xff]
  %v3697 = vld [vmem:[%s3691 + $0x28] sm:$0xff]
  %v3698 = vld [vmem:[%s3691 + $0x30] sm:$0xff]
  %v3699 = vld [vmem:[%s3691 + $0x38] sm:$0xff]
  %v3700 = vld [vmem:[%s3691 + $0x40] sm:$0xff]
  %v3701 = vld [vmem:[%s3691 + $0x48] sm:$0xff]
  %v3702 = vld [vmem:[%s3691 + $0x50] sm:$0xff]
  %v3703 = vld [vmem:[%s3691 + $0x58] sm:$0xff]
  %v3704 = vld [vmem:[%s3691 + $0x60] sm:$0xff]
  %v3705 = vld [vmem:[%s3691 + $0x68] sm:$0xff]
  %v3706 = vld [vmem:[%s3691 + $0x70] sm:$0xff]
  %v3707 = vld [vmem:[%s3691 + $0x78] sm:$0xff]
  %v3708 = vld [vmem:[%s3691 + $0x80] sm:$0xff]
  %v3709 = vld [vmem:[%s3691 + $0x88] sm:$0xff]
  %v3710 = vld [vmem:[%s3691 + $0x90] sm:$0xff]
  %v3711 = vld [vmem:[%s3691 + $0x98] sm:$0xff]
  %v3712 = vld [vmem:[%s3691 + $0xa0] sm:$0xff]
  %v3713 = vld [vmem:[%s3691 + $0xa8] sm:$0xff]
  %v3714 = vld [vmem:[%s3691 + $0xb0] sm:$0xff]
  %v3715 = vld [vmem:[%s3691 + $0xb8] sm:$0xff]
  %v3716 = vld [vmem:[%s3691 + $0xc0] sm:$0xff]
  %v3717 = vld [vmem:[%s3691 + $0xc8] sm:$0xff]
  %v3718 = vld [vmem:[%s3691 + $0xd0] sm:$0xff]
  %v3719 = vld [vmem:[%s3691 + $0xd8] sm:$0xff]
  %v3720 = vld [vmem:[%s3691 + $0xe0] sm:$0xff]
  %v3721 = vld [vmem:[%s3691 + $0xe8] sm:$0xff]
  %v3723 = vsel %vm2610, %v3653, 0
  %v3726 = vsel %vm2610, %v3658, 0
  %v3729 = vsel %vm2610, %v3663, 0
  %v3732 = vsel %vm2610, %v3668, 0
  %v3735 = vsel %vm2610, %v3673, 0
  %v3738 = vsel %vm2610, %v3678, 0
  %v3741 = vsel %vm2610, %v3683, 0
  %v3744 = vsel %vm2610, %v3688, 0
  %3746 = vmatprep.subr.mxu0 %v3693
  %3747 = vmatpush1.msra.mxu0 %v3692
  %3748 = vmatprep.subr.mxu0 %v3695
  %3749 = vmatpush1.msra.mxu0 %v3694
  %3750 = vmatprep.subr.mxu0 %v3697
  %3751 = vmatpush1.msra.mxu0 %v3696
  %3752 = vmatprep.subr.mxu0 %v3699
  %3753 = vmatpush1.msra.mxu0 %v3698
  %3754 = vmatprep.subr.mxu0 %v3701
  %3755 = vmatpush1.msra.mxu0 %v3700
  %3756 = vmatprep.subr.mxu0 %v3703
  %3757 = vmatpush1.msra.mxu0 %v3702
  %3758 = vmatprep.subr.mxu0 %v3705
  %3759 = vmatpush1.msra.mxu0 %v3704
  %3760 = vmatprep.subr.mxu0 %v3707
  %3761 = vmatpush1.msra.mxu0 %v3706
  %3762 = vmatprep.subr.mxu0 %v3709
  %3763 = vmatpush1.msra.mxu0 %v3708
  %3764 = vmatprep.subr.mxu0 %v3711
  %3765 = vmatpush1.msra.mxu0 %v3710
  %3766 = vmatprep.subr.mxu0 %v3713
  %3767 = vmatpush1.msra.mxu0 %v3712
  %3768 = vmatprep.subr.mxu0 %v3715
  %3769 = vmatpush1.msra.mxu0 %v3714
  %3770 = vmatprep.subr.mxu0 %v3717
  %3771 = vmatpush1.msra.mxu0 %v3716
  %3772 = vmatprep.subr.mxu0 %v3719
  %3773 = vmatpush1.msra.mxu0 %v3718
  %3774 = vmatprep.subr.mxu0 %v3721
  %3775 = vmatpush1.msra.mxu0 %v3720
  %3776 = vmatprep.subr.mxu0 0.0
  %3777 = vmatpush1.msra.mxu0 0.0
  %3778 = vmatprep.subr.mxu0 0.0
  %3779 = vmatpush1.msra.mxu0 0.0
  %3780 = vmatprep.subr.mxu0 0.0
  %3781 = vmatpush1.msra.mxu0 0.0
  %3782 = vmatprep.subr.mxu0 0.0
  %3783 = vmatpush1.msra.mxu0 0.0
  %3784 = vmatprep.subr.mxu0 0.0
  %3785 = vmatpush1.msra.mxu0 0.0
  %3786 = vmatprep.subr.mxu0 0.0
  %3787 = vmatpush1.msra.mxu0 0.0
  %3788 = vmatprep.subr.mxu0 0.0
  %3789 = vmatpush1.msra.mxu0 0.0
  %3790 = vmatprep.subr.mxu0 0.0
  %3791 = vmatpush1.msra.mxu0 0.0
  %3792 = vmatprep.subr.mxu0 0.0
  %3793 = vmatpush1.msra.mxu0 0.0
  %3794 = vmatprep.subr.mxu0 0.0
  %3795 = vmatpush1.msra.mxu0 0.0
  %3796 = vmatprep.subr.mxu0 0.0
  %3797 = vmatpush1.msra.mxu0 0.0
  %3798 = vmatprep.subr.mxu0 0.0
  %3799 = vmatpush1.msra.mxu0 0.0
  %3800 = vmatprep.subr.mxu0 0.0
  %3801 = vmatpush1.msra.mxu0 0.0
  %3802 = vmatprep.subr.mxu0 0.0
  %3803 = vmatpush1.msra.mxu0 0.0
  %3804 = vmatprep.subr.mxu0 0.0
  %3805 = vmatpush1.msra.mxu0 0.0
  %3806 = vmatprep.subr.mxu0 0.0
  %3807 = vmatpush1.msra.mxu0 0.0
  %3808 = vmatprep.subr.mxu0 0.0
  %3809 = vmatpush1.msra.mxu0 0.0
  %3810 = vmatprep.mubr.f32.mxu0 0.0
  %3811 = vmatmul.mubr.f32.gmra.mrb[0].mxu0 %v3723
  %v3812 = vpop.f32.mrb[0].mxu0
  %v3813 = vadd.f32 0.0, %v3812
  %v3814 = vpop.f32.mrb[0].mxu0
  %v3815 = vadd.f32 0.0, %v3814
  %3816 = vmatprep.mubr.f32.mxu0 0.0
  %3817 = vmatmul.mubr.f32.gmra.mrb[0].mxu0 %v3726
  %v3818 = vpop.f32.mrb[0].mxu0
  %v3819 = vadd.f32 0.0, %v3818
  %v3820 = vpop.f32.mrb[0].mxu0
  %v3821 = vadd.f32 0.0, %v3820
  %3822 = vmatprep.mubr.f32.mxu0 0.0
  %3823 = vmatmul.mubr.f32.gmra.mrb[0].mxu0 %v3729
  %v3824 = vpop.f32.mrb[0].mxu0
  %v3825 = vadd.f32 0.0, %v3824
  %v3826 = vpop.f32.mrb[0].mxu0
  %v3827 = vadd.f32 0.0, %v3826
  %3828 = vmatprep.mubr.f32.mxu0 0.0
  %3829 = vmatmul.mubr.f32.gmra.mrb[0].mxu0 %v3732
  %v3830 = vpop.f32.mrb[0].mxu0
  %v3831 = vadd.f32 0.0, %v3830
  %v3832 = vpop.f32.mrb[0].mxu0
  %v3833 = vadd.f32 0.0, %v3832
  %3834 = vmatprep.mubr.f32.mxu0 0.0
  %3835 = vmatmul.mubr.f32.gmra.mrb[0].mxu0 %v3735
  %v3836 = vpop.f32.mrb[0].mxu0
  %v3837 = vadd.f32 0.0, %v3836
  %v3838 = vpop.f32.mrb[0].mxu0
  %v3839 = vadd.f32 0.0, %v3838
  %3840 = vmatprep.mubr.f32.mxu0 0.0
  %3841 = vmatmul.mubr.f32.gmra.mrb[0].mxu0 %v3738
  %v3842 = vpop.f32.mrb[0].mxu0
  %v3843 = vadd.f32 0.0, %v3842
  %v3844 = vpop.f32.mrb[0].mxu0
  %v3845 = vadd.f32 0.0, %v3844
  %3846 = vmatprep.mubr.f32.mxu0 0.0
  %3847 = vmatmul.mubr.f32.gmra.mrb[0].mxu0 %v3741
  %v3848 = vpop.f32.mrb[0].mxu0
  %v3849 = vadd.f32 0.0, %v3848
  %v3850 = vpop.f32.mrb[0].mxu0
  %v3851 = vadd.f32 0.0, %v3850
  %3852 = vmatprep.mubr.f32.mxu0 0.0
  %3853 = vmatmul.mubr.f32.gmra.mrb[0].mxu0 %v3744
  %v3854 = vpop.f32.mrb[0].mxu0
  %v3855 = vadd.f32 0.0, %v3854
  %v3856 = vpop.f32.mrb[0].mxu0
  %v3857 = vadd.f32 0.0, %v3856
  %3858 = vdwg.mxu0
  %v3859 = vadd.f32 %v3529, %v3813
  %v3860 = vadd.f32 %v3530, %v3815
  %v3861 = vadd.f32 %v3531, %v3819
  %v3862 = vadd.f32 %v3532, %v3821
  %v3863 = vadd.f32 %v3533, %v3825
  %v3864 = vadd.f32 %v3534, %v3827
  %v3865 = vadd.f32 %v3535, %v3831
  %v3866 = vadd.f32 %v3536, %v3833
  %v3867 = vadd.f32 %v3537, %v3837
  %v3868 = vadd.f32 %v3538, %v3839
  %v3869 = vadd.f32 %v3539, %v3843
  %v3870 = vadd.f32 %v3540, %v3845
  %v3871 = vadd.f32 %v3541, %v3849
  %v3872 = vadd.f32 %v3542, %v3851
  %v3873 = vadd.f32 %v3543, %v3855
  %v3874 = vadd.f32 %v3544, %v3857
  %v3875 = vld [vmem:[%s4] sm:$0x3]
  %v3877 = vlaneseq
  %v3878 = vshrl.u32 %v3877, 7
  %v3879 = vsub.s32 0, %v3878
  %v3880 = vrot.slane %v3875, %v3879
  %v3881 = vlaneseq
  %v3882 = vshrl.u32 %v3881, 7
  %v3883 = vsub.s32 1, %v3882
  %v3884 = vrot.slane %v3875, %v3883
  %v3887 = vadd.f32 %v3859, %v3880
  %v3888 = vadd.f32 %v3860, %v3884
  %v3889 = vadd.f32 %v3861, %v3880
  %v3890 = vadd.f32 %v3862, %v3884
  %v3891 = vadd.f32 %v3863, %v3880
  %v3892 = vadd.f32 %v3864, %v3884
  %v3893 = vadd.f32 %v3865, %v3880
  %v3894 = vadd.f32 %v3866, %v3884
  %v3895 = vadd.f32 %v3867, %v3880
  %v3896 = vadd.f32 %v3868, %v3884
  %v3897 = vadd.f32 %v3869, %v3880
  %v3898 = vadd.f32 %v3870, %v3884
  %v3899 = vadd.f32 %v3871, %v3880
  %v3900 = vadd.f32 %v3872, %v3884
  %v3901 = vadd.f32 %v3873, %v3880
  %v3902 = vadd.f32 %v3874, %v3884
  %3919 = vrot.lane.b32.xlu0 %v3887, 48
  %v3920 = vpop.permute.xlu0 %3919
  %3921 = vrot.lane.b32.xlu0 %v3888, 48
  %v3922 = vpop.permute.xlu0 %3921
  %3923 = vrot.lane.b32.xlu0 %v3889, 48
  %v3924 = vpop.permute.xlu0 %3923
  %3925 = vrot.lane.b32.xlu0 %v3890, 48
  %v3926 = vpop.permute.xlu0 %3925
  %3927 = vrot.lane.b32.xlu0 %v3891, 48
  %v3928 = vpop.permute.xlu0 %3927
  %3929 = vrot.lane.b32.xlu0 %v3892, 48
  %v3930 = vpop.permute.xlu0 %3929
  %3931 = vrot.lane.b32.xlu0 %v3893, 48
  %v3932 = vpop.permute.xlu0 %3931
  %3933 = vrot.lane.b32.xlu0 %v3894, 48
  %v3934 = vpop.permute.xlu0 %3933
  %3935 = vrot.lane.b32.xlu0 %v3895, 48
  %v3936 = vpop.permute.xlu0 %3935
  %3937 = vrot.lane.b32.xlu0 %v3896, 48
  %v3938 = vpop.permute.xlu0 %3937
  %3939 = vrot.lane.b32.xlu0 %v3897, 48
  %v3940 = vpop.permute.xlu0 %3939
  %3941 = vrot.lane.b32.xlu0 %v3898, 48
  %v3942 = vpop.permute.xlu0 %3941
  %3943 = vrot.lane.b32.xlu0 %v3899, 48
  %v3944 = vpop.permute.xlu0 %3943
  %3945 = vrot.lane.b32.xlu0 %v3900, 48
  %v3946 = vpop.permute.xlu0 %3945
  %3947 = vrot.lane.b32.xlu0 %v3901, 48
  %v3948 = vpop.permute.xlu0 %3947
  %3949 = vrot.lane.b32.xlu0 %v3902, 48
  %v3950 = vpop.permute.xlu0 %3949
  %vm3951 = vcmask 392192
  %v3952 = vsel %vm3951, %v3920, %v3922
  %v3953 = vsel %vm3951, %v3924, %v3926
  %v3954 = vsel %vm3951, %v3928, %v3930
  %v3955 = vsel %vm3951, %v3932, %v3934
  %v3956 = vsel %vm3951, %v3936, %v3938
  %v3957 = vsel %vm3951, %v3940, %v3942
  %v3958 = vsel %vm3951, %v3944, %v3946
  %v3959 = vsel %vm3951, %v3948, %v3950
  %v3968 = vmax.f32 %v3887, %v3952
  %v3969 = vmax.f32 %v3889, %v3953
  %v3970 = vmax.f32 %v3891, %v3954
  %v3971 = vmax.f32 %v3893, %v3955
  %v3972 = vmax.f32 %v3895, %v3956
  %v3973 = vmax.f32 %v3897, %v3957
  %v3974 = vmax.f32 %v3899, %v3958
  %v3975 = vmax.f32 %v3901, %v3959
  %v3984 = vrot.slane %v3968, 1
  %v3985 = vrot.slane %v3969, 1
  %v3986 = vsel %vm110, %v3984, %v3985
  %v3987 = vrot.slane %v3970, 1
  %v3988 = vsel %vm110, %v3985, %v3987
  %v3989 = vrot.slane %v3971, 1
  %v3990 = vsel %vm110, %v3987, %v3989
  %v3991 = vrot.slane %v3972, 1
  %v3992 = vsel %vm110, %v3989, %v3991
  %v3993 = vrot.slane %v3973, 1
  %v3994 = vsel %vm110, %v3991, %v3993
  %v3995 = vrot.slane %v3974, 1
  %v3996 = vsel %vm110, %v3993, %v3995
  %v3997 = vrot.slane %v3975, 1
  %v3998 = vsel %vm110, %v3995, %v3997
  %v4007 = vmax.f32 %v3968, %v3986
  %v4008 = vmax.f32 %v3969, %v3988
  %v4009 = vmax.f32 %v3970, %v3990
  %v4010 = vmax.f32 %v3971, %v3992
  %v4011 = vmax.f32 %v3972, %v3994
  %v4012 = vmax.f32 %v3973, %v3996
  %v4013 = vmax.f32 %v3974, %v3998
  %v4014 = vmax.f32 %v3975, %v3997
  %v4015 = vmax.f32 %v4007, 0.0
  %v4016 = vmax.f32 %v4008, 0.0
  %v4017 = vmax.f32 %v4009, 0.0
  %v4018 = vmax.f32 %v4010, 0.0
  %v4019 = vmax.f32 %v4011, 0.0
  %v4020 = vmax.f32 %v4012, 0.0
  %v4021 = vmax.f32 %v4013, 0.0
  %v4022 = vmax.f32 %v4014, 0.0
  %v4023 = vld [vmem:[%s6] sm:$0xff]
  %v4025 = vsel %vm2270, %v4023, 0
  %v4028 = vsel %vm110, %v4022, 0
  %4030 = vmatprep.subr.mxu0 0.0
  %4031 = vmatpush1.msra.mxu0 %v4015
  %4032 = vmatprep.subr.mxu0 0.0
  %4033 = vmatpush1.msra.mxu0 %v4016
  %4034 = vmatprep.subr.mxu0 0.0
  %4035 = vmatpush1.msra.mxu0 %v4017
  %4036 = vmatprep.subr.mxu0 0.0
  %4037 = vmatpush1.msra.mxu0 %v4018
  %4038 = vmatprep.subr.mxu0 0.0
  %4039 = vmatpush1.msra.mxu0 %v4019
  %4040 = vmatprep.subr.mxu0 0.0
  %4041 = vmatpush1.msra.mxu0 %v4020
  %4042 = vmatprep.subr.mxu0 0.0
  %4043 = vmatpush1.msra.mxu0 %v4021
  %4044 = vmatprep.subr.mxu0 0.0
  %4045 = vmatpush1.msra.mxu0 %v4028
  %4046 = vmatprep.subr.mxu0 0.0
  %4047 = vmatpush1.msra.mxu0 0.0
  %4048 = vmatprep.subr.mxu0 0.0
  %4049 = vmatpush1.msra.mxu0 0.0
  %4050 = vmatprep.subr.mxu0 0.0
  %4051 = vmatpush1.msra.mxu0 0.0
  %4052 = vmatprep.subr.mxu0 0.0
  %4053 = vmatpush1.msra.mxu0 0.0
  %4054 = vmatprep.subr.mxu0 0.0
  %4055 = vmatpush1.msra.mxu0 0.0
  %4056 = vmatprep.subr.mxu0 0.0
  %4057 = vmatpush1.msra.mxu0 0.0
  %4058 = vmatprep.subr.mxu0 0.0
  %4059 = vmatpush1.msra.mxu0 0.0
  %4060 = vmatprep.subr.mxu0 0.0
  %4061 = vmatpush1.msra.mxu0 0.0
  %4062 = vmatprep.subr.mxu0 0.0
  %4063 = vmatpush1.msra.mxu0 0.0
  %4064 = vmatprep.subr.mxu0 0.0
  %4065 = vmatpush1.msra.mxu0 0.0
  %4066 = vmatprep.subr.mxu0 0.0
  %4067 = vmatpush1.msra.mxu0 0.0
  %4068 = vmatprep.subr.mxu0 0.0
  %4069 = vmatpush1.msra.mxu0 0.0
  %4070 = vmatprep.subr.mxu0 0.0
  %4071 = vmatpush1.msra.mxu0 0.0
  %4072 = vmatprep.subr.mxu0 0.0
  %4073 = vmatpush1.msra.mxu0 0.0
  %4074 = vmatprep.subr.mxu0 0.0
  %4075 = vmatpush1.msra.mxu0 0.0
  %4076 = vmatprep.subr.mxu0 0.0
  %4077 = vmatpush1.msra.mxu0 0.0
  %4078 = vmatprep.subr.mxu0 0.0
  %4079 = vmatpush1.msra.mxu0 0.0
  %4080 = vmatprep.subr.mxu0 0.0
  %4081 = vmatpush1.msra.mxu0 0.0
  %4082 = vmatprep.subr.mxu0 0.0
  %4083 = vmatpush1.msra.mxu0 0.0
  %4084 = vmatprep.subr.mxu0 0.0
  %4085 = vmatpush1.msra.mxu0 0.0
  %4086 = vmatprep.subr.mxu0 0.0
  %4087 = vmatpush1.msra.mxu0 0.0
  %4088 = vmatprep.subr.mxu0 0.0
  %4089 = vmatpush1.msra.mxu0 0.0
  %4090 = vmatprep.subr.mxu0 0.0
  %4091 = vmatpush1.msra.mxu0 0.0
  %4092 = vmatprep.subr.mxu0 0.0
  %4093 = vmatpush1.msra.mxu0 0.0
  %4094 = vmatprep.mubr.f32.mxu0 0.0
  %4095 = vmatmul.mubr.f32.gmra.mrb[0].mxu0 %v4025
  %v4096 = vpop.f32.mrb[0].mxu0
  %v4097 = vadd.f32 0.0, %v4096
  %v4098 = vpop.f32.mrb[0].mxu0
  %4099 = vdwg.mxu0
  %v4100 = vld [vmem:[%s7] sm:$0xff]
  %v4101 = vld [vmem:[%s7 + $0x8] sm:$0xff]
  %v4102 = vld [vmem:[%s7 + $0x10] sm:$0xff]
  %v4103 = vld [vmem:[%s7 + $0x18] sm:$0xff]
  %v4104 = vld [vmem:[%s7 + $0x20] sm:$0xff]
  %v4105 = vld [vmem:[%s7 + $0x28] sm:$0xff]
  %v4106 = vld [vmem:[%s7 + $0x30] sm:$0xff]
  %v4107 = vld [vmem:[%s7 + $0x38] sm:$0xff]
  %v4108 = vld [vmem:[%s7 + $0x40] sm:$0xff]
  %v4109 = vld [vmem:[%s7 + $0x48] sm:$0xff]
  %s4110 = scalar_lea.vmem %s6, 8
  %v4111 = vld [vmem:[%s4110] sm:$0xff]
  %v4113 = vsel %vm2270, %v4111, 0
  %4115 = vmatprep.subr.mxu0 0.0
  %4116 = vmatpush1.msra.mxu0 %v4015
  %4117 = vmatprep.subr.mxu0 0.0
  %4118 = vmatpush1.msra.mxu0 %v4016
  %4119 = vmatprep.subr.mxu0 0.0
  %4120 = vmatpush1.msra.mxu0 %v4017
  %4121 = vmatprep.subr.mxu0 0.0
  %4122 = vmatpush1.msra.mxu0 %v4018
  %4123 = vmatprep.subr.mxu0 0.0
  %4124 = vmatpush1.msra.mxu0 %v4019
  %4125 = vmatprep.subr.mxu0 0.0
  %4126 = vmatpush1.msra.mxu0 %v4020
  %4127 = vmatprep.subr.mxu0 0.0
  %4128 = vmatpush1.msra.mxu0 %v4021
  %4129 = vmatprep.subr.mxu0 0.0
  %4130 = vmatpush1.msra.mxu0 %v4028
  %4131 = vmatprep.subr.mxu0 0.0
  %4132 = vmatpush1.msra.mxu0 0.0
  %4133 = vmatprep.subr.mxu0 0.0
  %4134 = vmatpush1.msra.mxu0 0.0
  %4135 = vmatprep.subr.mxu0 0.0
  %4136 = vmatpush1.msra.mxu0 0.0
  %4137 = vmatprep.subr.mxu0 0.0
  %4138 = vmatpush1.msra.mxu0 0.0
  %4139 = vmatprep.subr.mxu0 0.0
  %4140 = vmatpush1.msra.mxu0 0.0
  %4141 = vmatprep.subr.mxu0 0.0
  %4142 = vmatpush1.msra.mxu0 0.0
  %4143 = vmatprep.subr.mxu0 0.0
  %4144 = vmatpush1.msra.mxu0 0.0
  %4145 = vmatprep.subr.mxu0 0.0
  %4146 = vmatpush1.msra.mxu0 0.0
  %4147 = vmatprep.subr.mxu0 0.0
  %4148 = vmatpush1.msra.mxu0 0.0
  %4149 = vmatprep.subr.mxu0 0.0
  %4150 = vmatpush1.msra.mxu0 0.0
  %4151 = vmatprep.subr.mxu0 0.0
  %4152 = vmatpush1.msra.mxu0 0.0
  %4153 = vmatprep.subr.mxu0 0.0
  %4154 = vmatpush1.msra.mxu0 0.0
  %4155 = vmatprep.subr.mxu0 0.0
  %4156 = vmatpush1.msra.mxu0 0.0
  %4157 = vmatprep.subr.mxu0 0.0
  %4158 = vmatpush1.msra.mxu0 0.0
  %4159 = vmatprep.subr.mxu0 0.0
  %4160 = vmatpush1.msra.mxu0 0.0
  %4161 = vmatprep.subr.mxu0 0.0
  %4162 = vmatpush1.msra.mxu0 0.0
  %4163 = vmatprep.subr.mxu0 0.0
  %4164 = vmatpush1.msra.mxu0 0.0
  %4165 = vmatprep.subr.mxu0 0.0
  %4166 = vmatpush1.msra.mxu0 0.0
  %4167 = vmatprep.subr.mxu0 0.0
  %4168 = vmatpush1.msra.mxu0 0.0
  %4169 = vmatprep.subr.mxu0 0.0
  %4170 = vmatpush1.msra.mxu0 0.0
  %4171 = vmatprep.subr.mxu0 0.0
  %4172 = vmatpush1.msra.mxu0 0.0
  %4173 = vmatprep.subr.mxu0 0.0
  %4174 = vmatpush1.msra.mxu0 0.0
  %4175 = vmatprep.subr.mxu0 0.0
  %4176 = vmatpush1.msra.mxu0 0.0
  %4177 = vmatprep.subr.mxu0 0.0
  %4178 = vmatpush1.msra.mxu0 0.0
  %4179 = vmatprep.mubr.f32.mxu0 0.0
  %4180 = vmatmul.mubr.f32.gmra.mrb[0].mxu0 %v4113
  %v4181 = vpop.f32.mrb[0].mxu0
  %v4182 = vadd.f32 0.0, %v4181
  %v4183 = vpop.f32.mrb[0].mxu0
  %4184 = vdwg.mxu0
  %s4185 = scalar_lea.vmem %s7, 80
  %v4186 = vld [vmem:[%s4185] sm:$0xff]
  %v4187 = vld [vmem:[%s4185 + $0x8] sm:$0xff]
  %v4188 = vld [vmem:[%s4185 + $0x10] sm:$0xff]
  %v4189 = vld [vmem:[%s4185 + $0x18] sm:$0xff]
  %v4190 = vld [vmem:[%s4185 + $0x20] sm:$0xff]
  %v4191 = vld [vmem:[%s4185 + $0x28] sm:$0xff]
  %v4192 = vld [vmem:[%s4185 + $0x30] sm:$0xff]
  %v4193 = vld [vmem:[%s4185 + $0x38] sm:$0xff]
  %v4194 = vld [vmem:[%s4185 + $0x40] sm:$0xff]
  %v4195 = vld [vmem:[%s4185 + $0x48] sm:$0xff]
  %vm4196 = vcmask 654336
  %v4198 = vsel %vm4196, %v4182, 0
  %4200 = vmatprep.subr.mxu0 0.0
  %4201 = vmatpush1.msra.mxu0 %v4186
  %4202 = vmatprep.subr.mxu0 0.0
  %4203 = vmatpush1.msra.mxu0 %v4187
  %4204 = vmatprep.subr.mxu0 0.0
  %4205 = vmatpush1.msra.mxu0 %v4188
  %4206 = vmatprep.subr.mxu0 0.0
  %4207 = vmatpush1.msra.mxu0 %v4189
  %4208 = vmatprep.subr.mxu0 0.0
  %4209 = vmatpush1.msra.mxu0 %v4190
  %4210 = vmatprep.subr.mxu0 0.0
  %4211 = vmatpush1.msra.mxu0 %v4191
  %4212 = vmatprep.subr.mxu0 0.0
  %4213 = vmatpush1.msra.mxu0 %v4192
  %4214 = vmatprep.subr.mxu0 0.0
  %4215 = vmatpush1.msra.mxu0 %v4193
  %4216 = vmatprep.subr.mxu0 0.0
  %4217 = vmatpush1.msra.mxu0 %v4194
  %4218 = vmatprep.subr.mxu0 0.0
  %4219 = vmatpush1.msra.mxu0 %v4195
  %4220 = vmatprep.subr.mxu0 0.0
  %4221 = vmatpush1.msra.mxu0 0.0
  %4222 = vmatprep.subr.mxu0 0.0
  %4223 = vmatpush1.msra.mxu0 0.0
  %4224 = vmatprep.subr.mxu0 0.0
  %4225 = vmatpush1.msra.mxu0 0.0
  %4226 = vmatprep.subr.mxu0 0.0
  %4227 = vmatpush1.msra.mxu0 0.0
  %4228 = vmatprep.subr.mxu0 0.0
  %4229 = vmatpush1.msra.mxu0 0.0
  %4230 = vmatprep.subr.mxu0 0.0
  %4231 = vmatpush1.msra.mxu0 0.0
  %4232 = vmatprep.subr.mxu0 0.0
  %4233 = vmatpush1.msra.mxu0 0.0
  %4234 = vmatprep.subr.mxu0 0.0
  %4235 = vmatpush1.msra.mxu0 0.0
  %4236 = vmatprep.subr.mxu0 0.0
  %4237 = vmatpush1.msra.mxu0 0.0
  %4238 = vmatprep.subr.mxu0 0.0
  %4239 = vmatpush1.msra.mxu0 0.0
  %4240 = vmatprep.subr.mxu0 0.0
  %4241 = vmatpush1.msra.mxu0 0.0
  %4242 = vmatprep.subr.mxu0 0.0
  %4243 = vmatpush1.msra.mxu0 0.0
  %4244 = vmatprep.subr.mxu0 0.0
  %4245 = vmatpush1.msra.mxu0 0.0
  %4246 = vmatprep.subr.mxu0 0.0
  %4247 = vmatpush1.msra.mxu0 0.0
  %4248 = vmatprep.subr.mxu0 0.0
  %4249 = vmatpush1.msra.mxu0 0.0
  %4250 = vmatprep.subr.mxu0 0.0
  %4251 = vmatpush1.msra.mxu0 0.0
  %4252 = vmatprep.subr.mxu0 0.0
  %4253 = vmatpush1.msra.mxu0 0.0
  %4254 = vmatprep.subr.mxu0 0.0
  %4255 = vmatpush1.msra.mxu0 0.0
  %4256 = vmatprep.subr.mxu0 0.0
  %4257 = vmatpush1.msra.mxu0 0.0
  %4258 = vmatprep.subr.mxu0 0.0
  %4259 = vmatpush1.msra.mxu0 0.0
  %4260 = vmatprep.subr.mxu0 0.0
  %4261 = vmatpush1.msra.mxu0 0.0
  %4262 = vmatprep.subr.mxu0 0.0
  %4263 = vmatpush1.msra.mxu0 0.0
  %4264 = vmatprep.mubr.f32.mxu0 0.0
  %4265 = vmatmul.mubr.f32.gmra.mrb[0].mxu0 %v4198
  %v4266 = vpop.f32.mrb[0].mxu0
  %v4267 = vadd.f32 0.0, %v4266
  %v4268 = vpop.f32.mrb[0].mxu0
  %4269 = vdwg.mxu0
  %v4271 = vsel %vm4196, %v4097, 0
  %4273 = vmatprep.subr.mxu0 0.0
  %4274 = vmatpush1.msra.mxu0 %v4100
  %4275 = vmatprep.subr.mxu0 0.0
  %4276 = vmatpush1.msra.mxu0 %v4101
  %4277 = vmatprep.subr.mxu0 0.0
  %4278 = vmatpush1.msra.mxu0 %v4102
  %4279 = vmatprep.subr.mxu0 0.0
  %4280 = vmatpush1.msra.mxu0 %v4103
  %4281 = vmatprep.subr.mxu0 0.0
  %4282 = vmatpush1.msra.mxu0 %v4104
  %4283 = vmatprep.subr.mxu0 0.0
  %4284 = vmatpush1.msra.mxu0 %v4105
  %4285 = vmatprep.subr.mxu0 0.0
  %4286 = vmatpush1.msra.mxu0 %v4106
  %4287 = vmatprep.subr.mxu0 0.0
  %4288 = vmatpush1.msra.mxu0 %v4107
  %4289 = vmatprep.subr.mxu0 0.0
  %4290 = vmatpush1.msra.mxu0 %v4108
  %4291 = vmatprep.subr.mxu0 0.0
  %4292 = vmatpush1.msra.mxu0 %v4109
  %4293 = vmatprep.subr.mxu0 0.0
  %4294 = vmatpush1.msra.mxu0 0.0
  %4295 = vmatprep.subr.mxu0 0.0
  %4296 = vmatpush1.msra.mxu0 0.0
  %4297 = vmatprep.subr.mxu0 0.0
  %4298 = vmatpush1.msra.mxu0 0.0
  %4299 = vmatprep.subr.mxu0 0.0
  %4300 = vmatpush1.msra.mxu0 0.0
  %4301 = vmatprep.subr.mxu0 0.0
  %4302 = vmatpush1.msra.mxu0 0.0
  %4303 = vmatprep.subr.mxu0 0.0
  %4304 = vmatpush1.msra.mxu0 0.0
  %4305 = vmatprep.subr.mxu0 0.0
  %4306 = vmatpush1.msra.mxu0 0.0
  %4307 = vmatprep.subr.mxu0 0.0
  %4308 = vmatpush1.msra.mxu0 0.0
  %4309 = vmatprep.subr.mxu0 0.0
  %4310 = vmatpush1.msra.mxu0 0.0
  %4311 = vmatprep.subr.mxu0 0.0
  %4312 = vmatpush1.msra.mxu0 0.0
  %4313 = vmatprep.subr.mxu0 0.0
  %4314 = vmatpush1.msra.mxu0 0.0
  %4315 = vmatprep.subr.mxu0 0.0
  %4316 = vmatpush1.msra.mxu0 0.0
  %4317 = vmatprep.subr.mxu0 0.0
  %4318 = vmatpush1.msra.mxu0 0.0
  %4319 = vmatprep.subr.mxu0 0.0
  %4320 = vmatpush1.msra.mxu0 0.0
  %4321 = vmatprep.subr.mxu0 0.0
  %4322 = vmatpush1.msra.mxu0 0.0
  %4323 = vmatprep.subr.mxu0 0.0
  %4324 = vmatpush1.msra.mxu0 0.0
  %4325 = vmatprep.subr.mxu0 0.0
  %4326 = vmatpush1.msra.mxu0 0.0
  %4327 = vmatprep.subr.mxu0 0.0
  %4328 = vmatpush1.msra.mxu0 0.0
  %4329 = vmatprep.subr.mxu0 0.0
  %4330 = vmatpush1.msra.mxu0 0.0
  %4331 = vmatprep.subr.mxu0 0.0
  %4332 = vmatpush1.msra.mxu0 0.0
  %4333 = vmatprep.subr.mxu0 0.0
  %4334 = vmatpush1.msra.mxu0 0.0
  %4335 = vmatprep.subr.mxu0 0.0
  %4336 = vmatpush1.msra.mxu0 0.0
  %4337 = vmatprep.mubr.f32.mxu0 0.0
  %4338 = vmatmul.mubr.f32.gmra.mrb[0].mxu0 %v4271
  %v4339 = vpop.f32.mrb[0].mxu0
  %v4340 = vadd.f32 %v4267, %v4339
  %v4341 = vpop.f32.mrb[0].mxu0
  %4342 = vdwg.mxu0
  %s4343 = scalar_lea.vmem %s6, 16
  %v4344 = vld [vmem:[%s4343] sm:$0xff]
  %v4346 = vsel %vm2270, %v4344, 0
  %4348 = vmatprep.subr.mxu0 0.0
  %4349 = vmatpush1.msra.mxu0 %v4015
  %4350 = vmatprep.subr.mxu0 0.0
  %4351 = vmatpush1.msra.mxu0 %v4016
  %4352 = vmatprep.subr.mxu0 0.0
  %4353 = vmatpush1.msra.mxu0 %v4017
  %4354 = vmatprep.subr.mxu0 0.0
  %4355 = vmatpush1.msra.mxu0 %v4018
  %4356 = vmatprep.subr.mxu0 0.0
  %4357 = vmatpush1.msra.mxu0 %v4019
  %4358 = vmatprep.subr.mxu0 0.0
  %4359 = vmatpush1.msra.mxu0 %v4020
  %4360 = vmatprep.subr.mxu0 0.0
  %4361 = vmatpush1.msra.mxu0 %v4021
  %4362 = vmatprep.subr.mxu0 0.0
  %4363 = vmatpush1.msra.mxu0 %v4028
  %4364 = vmatprep.subr.mxu0 0.0
  %4365 = vmatpush1.msra.mxu0 0.0
  %4366 = vmatprep.subr.mxu0 0.0
  %4367 = vmatpush1.msra.mxu0 0.0
  %4368 = vmatprep.subr.mxu0 0.0
  %4369 = vmatpush1.msra.mxu0 0.0
  %4370 = vmatprep.subr.mxu0 0.0
  %4371 = vmatpush1.msra.mxu0 0.0
  %4372 = vmatprep.subr.mxu0 0.0
  %4373 = vmatpush1.msra.mxu0 0.0
  %4374 = vmatprep.subr.mxu0 0.0
  %4375 = vmatpush1.msra.mxu0 0.0
  %4376 = vmatprep.subr.mxu0 0.0
  %4377 = vmatpush1.msra.mxu0 0.0
  %4378 = vmatprep.subr.mxu0 0.0
  %4379 = vmatpush1.msra.mxu0 0.0
  %4380 = vmatprep.subr.mxu0 0.0
  %4381 = vmatpush1.msra.mxu0 0.0
  %4382 = vmatprep.subr.mxu0 0.0
  %4383 = vmatpush1.msra.mxu0 0.0
  %4384 = vmatprep.subr.mxu0 0.0
  %4385 = vmatpush1.msra.mxu0 0.0
  %4386 = vmatprep.subr.mxu0 0.0
  %4387 = vmatpush1.msra.mxu0 0.0
  %4388 = vmatprep.subr.mxu0 0.0
  %4389 = vmatpush1.msra.mxu0 0.0
  %4390 = vmatprep.subr.mxu0 0.0
  %4391 = vmatpush1.msra.mxu0 0.0
  %4392 = vmatprep.subr.mxu0 0.0
  %4393 = vmatpush1.msra.mxu0 0.0
  %4394 = vmatprep.subr.mxu0 0.0
  %4395 = vmatpush1.msra.mxu0 0.0
  %4396 = vmatprep.subr.mxu0 0.0
  %4397 = vmatpush1.msra.mxu0 0.0
  %4398 = vmatprep.subr.mxu0 0.0
  %4399 = vmatpush1.msra.mxu0 0.0
  %4400 = vmatprep.subr.mxu0 0.0
  %4401 = vmatpush1.msra.mxu0 0.0
  %4402 = vmatprep.subr.mxu0 0.0
  %4403 = vmatpush1.msra.mxu0 0.0
  %4404 = vmatprep.subr.mxu0 0.0
  %4405 = vmatpush1.msra.mxu0 0.0
  %4406 = vmatprep.subr.mxu0 0.0
  %4407 = vmatpush1.msra.mxu0 0.0
  %4408 = vmatprep.subr.mxu0 0.0
  %4409 = vmatpush1.msra.mxu0 0.0
  %4410 = vmatprep.subr.mxu0 0.0
  %4411 = vmatpush1.msra.mxu0 0.0
  %4412 = vmatprep.mubr.f32.mxu0 0.0
  %4413 = vmatmul.mubr.f32.gmra.mrb[0].mxu0 %v4346
  %v4414 = vpop.f32.mrb[0].mxu0
  %v4415 = vadd.f32 0.0, %v4414
  %v4416 = vpop.f32.mrb[0].mxu0
  %4417 = vdwg.mxu0
  %s4418 = scalar_lea.vmem %s7, 160
  %v4419 = vld [vmem:[%s4418] sm:$0xff]
  %v4420 = vld [vmem:[%s4418 + $0x8] sm:$0xff]
  %v4421 = vld [vmem:[%s4418 + $0x10] sm:$0xff]
  %v4422 = vld [vmem:[%s4418 + $0x18] sm:$0xff]
  %v4423 = vld [vmem:[%s4418 + $0x20] sm:$0xff]
  %v4424 = vld [vmem:[%s4418 + $0x28] sm:$0xff]
  %v4425 = vld [vmem:[%s4418 + $0x30] sm:$0xff]
  %v4426 = vld [vmem:[%s4418 + $0x38] sm:$0xff]
  %v4427 = vld [vmem:[%s4418 + $0x40] sm:$0xff]
  %v4428 = vld [vmem:[%s4418 + $0x48] sm:$0xff]
  %v4430 = vsel %vm4196, %v4415, 0
  %4432 = vmatprep.subr.mxu0 0.0
  %4433 = vmatpush1.msra.mxu0 %v4419
  %4434 = vmatprep.subr.mxu0 0.0
  %4435 = vmatpush1.msra.mxu0 %v4420
  %4436 = vmatprep.subr.mxu0 0.0
  %4437 = vmatpush1.msra.mxu0 %v4421
  %4438 = vmatprep.subr.mxu0 0.0
  %4439 = vmatpush1.msra.mxu0 %v4422
  %4440 = vmatprep.subr.mxu0 0.0
  %4441 = vmatpush1.msra.mxu0 %v4423
  %4442 = vmatprep.subr.mxu0 0.0
  %4443 = vmatpush1.msra.mxu0 %v4424
  %4444 = vmatprep.subr.mxu0 0.0
  %4445 = vmatpush1.msra.mxu0 %v4425
  %4446 = vmatprep.subr.mxu0 0.0
  %4447 = vmatpush1.msra.mxu0 %v4426
  %4448 = vmatprep.subr.mxu0 0.0
  %4449 = vmatpush1.msra.mxu0 %v4427
  %4450 = vmatprep.subr.mxu0 0.0
  %4451 = vmatpush1.msra.mxu0 %v4428
  %4452 = vmatprep.subr.mxu0 0.0
  %4453 = vmatpush1.msra.mxu0 0.0
  %4454 = vmatprep.subr.mxu0 0.0
  %4455 = vmatpush1.msra.mxu0 0.0
  %4456 = vmatprep.subr.mxu0 0.0
  %4457 = vmatpush1.msra.mxu0 0.0
  %4458 = vmatprep.subr.mxu0 0.0
  %4459 = vmatpush1.msra.mxu0 0.0
  %4460 = vmatprep.subr.mxu0 0.0
  %4461 = vmatpush1.msra.mxu0 0.0
  %4462 = vmatprep.subr.mxu0 0.0
  %4463 = vmatpush1.msra.mxu0 0.0
  %4464 = vmatprep.subr.mxu0 0.0
  %4465 = vmatpush1.msra.mxu0 0.0
  %4466 = vmatprep.subr.mxu0 0.0
  %4467 = vmatpush1.msra.mxu0 0.0
  %4468 = vmatprep.subr.mxu0 0.0
  %4469 = vmatpush1.msra.mxu0 0.0
  %4470 = vmatprep.subr.mxu0 0.0
  %4471 = vmatpush1.msra.mxu0 0.0
  %4472 = vmatprep.subr.mxu0 0.0
  %4473 = vmatpush1.msra.mxu0 0.0
  %4474 = vmatprep.subr.mxu0 0.0
  %4475 = vmatpush1.msra.mxu0 0.0
  %4476 = vmatprep.subr.mxu0 0.0
  %4477 = vmatpush1.msra.mxu0 0.0
  %4478 = vmatprep.subr.mxu0 0.0
  %4479 = vmatpush1.msra.mxu0 0.0
  %4480 = vmatprep.subr.mxu0 0.0
  %4481 = vmatpush1.msra.mxu0 0.0
  %4482 = vmatprep.subr.mxu0 0.0
  %4483 = vmatpush1.msra.mxu0 0.0
  %4484 = vmatprep.subr.mxu0 0.0
  %4485 = vmatpush1.msra.mxu0 0.0
  %4486 = vmatprep.subr.mxu0 0.0
  %4487 = vmatpush1.msra.mxu0 0.0
  %4488 = vmatprep.subr.mxu0 0.0
  %4489 = vmatpush1.msra.mxu0 0.0
  %4490 = vmatprep.subr.mxu0 0.0
  %4491 = vmatpush1.msra.mxu0 0.0
  %4492 = vmatprep.subr.mxu0 0.0
  %4493 = vmatpush1.msra.mxu0 0.0
  %4494 = vmatprep.subr.mxu0 0.0
  %4495 = vmatpush1.msra.mxu0 0.0
  %4496 = vmatprep.mubr.f32.mxu0 0.0
  %4497 = vmatmul.mubr.f32.gmra.mrb[0].mxu0 %v4430
  %v4498 = vpop.f32.mrb[0].mxu0
  %v4499 = vadd.f32 0.0, %v4498
  %v4500 = vpop.f32.mrb[0].mxu0
  %4501 = vdwg.mxu0
  %v4502 = vadd.f32 %v4340, %v4499
  %s4503 = scalar_lea.vmem %s6, 24
  %v4504 = vld [vmem:[%s4503] sm:$0xff]
  %v4506 = vsel %vm2270, %v4504, 0
  %4508 = vmatprep.subr.mxu0 0.0
  %4509 = vmatpush1.msra.mxu0 %v4015
  %4510 = vmatprep.subr.mxu0 0.0
  %4511 = vmatpush1.msra.mxu0 %v4016
  %4512 = vmatprep.subr.mxu0 0.0
  %4513 = vmatpush1.msra.mxu0 %v4017
  %4514 = vmatprep.subr.mxu0 0.0
  %4515 = vmatpush1.msra.mxu0 %v4018
  %4516 = vmatprep.subr.mxu0 0.0
  %4517 = vmatpush1.msra.mxu0 %v4019
  %4518 = vmatprep.subr.mxu0 0.0
  %4519 = vmatpush1.msra.mxu0 %v4020
  %4520 = vmatprep.subr.mxu0 0.0
  %4521 = vmatpush1.msra.mxu0 %v4021
  %4522 = vmatprep.subr.mxu0 0.0
  %4523 = vmatpush1.msra.mxu0 %v4028
  %4524 = vmatprep.subr.mxu0 0.0
  %4525 = vmatpush1.msra.mxu0 0.0
  %4526 = vmatprep.subr.mxu0 0.0
  %4527 = vmatpush1.msra.mxu0 0.0
  %4528 = vmatprep.subr.mxu0 0.0
  %4529 = vmatpush1.msra.mxu0 0.0
  %4530 = vmatprep.subr.mxu0 0.0
  %4531 = vmatpush1.msra.mxu0 0.0
  %4532 = vmatprep.subr.mxu0 0.0
  %4533 = vmatpush1.msra.mxu0 0.0
  %4534 = vmatprep.subr.mxu0 0.0
  %4535 = vmatpush1.msra.mxu0 0.0
  %4536 = vmatprep.subr.mxu0 0.0
  %4537 = vmatpush1.msra.mxu0 0.0
  %4538 = vmatprep.subr.mxu0 0.0
  %4539 = vmatpush1.msra.mxu0 0.0
  %4540 = vmatprep.subr.mxu0 0.0
  %4541 = vmatpush1.msra.mxu0 0.0
  %4542 = vmatprep.subr.mxu0 0.0
  %4543 = vmatpush1.msra.mxu0 0.0
  %4544 = vmatprep.subr.mxu0 0.0
  %4545 = vmatpush1.msra.mxu0 0.0
  %4546 = vmatprep.subr.mxu0 0.0
  %4547 = vmatpush1.msra.mxu0 0.0
  %4548 = vmatprep.subr.mxu0 0.0
  %4549 = vmatpush1.msra.mxu0 0.0
  %4550 = vmatprep.subr.mxu0 0.0
  %4551 = vmatpush1.msra.mxu0 0.0
  %4552 = vmatprep.subr.mxu0 0.0
  %4553 = vmatpush1.msra.mxu0 0.0
  %4554 = vmatprep.subr.mxu0 0.0
  %4555 = vmatpush1.msra.mxu0 0.0
  %4556 = vmatprep.subr.mxu0 0.0
  %4557 = vmatpush1.msra.mxu0 0.0
  %4558 = vmatprep.subr.mxu0 0.0
  %4559 = vmatpush1.msra.mxu0 0.0
  %4560 = vmatprep.subr.mxu0 0.0
  %4561 = vmatpush1.msra.mxu0 0.0
  %4562 = vmatprep.subr.mxu0 0.0
  %4563 = vmatpush1.msra.mxu0 0.0
  %4564 = vmatprep.subr.mxu0 0.0
  %4565 = vmatpush1.msra.mxu0 0.0
  %4566 = vmatprep.subr.mxu0 0.0
  %4567 = vmatpush1.msra.mxu0 0.0
  %4568 = vmatprep.subr.mxu0 0.0
  %4569 = vmatpush1.msra.mxu0 0.0
  %4570 = vmatprep.subr.mxu0 0.0
  %4571 = vmatpush1.msra.mxu0 0.0
  %4572 = vmatprep.mubr.f32.mxu0 0.0
  %4573 = vmatmul.mubr.f32.gmra.mrb[0].mxu0 %v4506
  %v4574 = vpop.f32.mrb[0].mxu0
  %v4575 = vadd.f32 0.0, %v4574
  %v4576 = vpop.f32.mrb[0].mxu0
  %4577 = vdwg.mxu0
  %s4578 = scalar_lea.vmem %s7, 240
  %v4579 = vld [vmem:[%s4578] sm:$0xff]
  %v4580 = vld [vmem:[%s4578 + $0x8] sm:$0xff]
  %v4581 = vld [vmem:[%s4578 + $0x10] sm:$0xff]
  %v4582 = vld [vmem:[%s4578 + $0x18] sm:$0xff]
  %v4583 = vld [vmem:[%s4578 + $0x20] sm:$0xff]
  %v4584 = vld [vmem:[%s4578 + $0x28] sm:$0xff]
  %v4585 = vld [vmem:[%s4578 + $0x30] sm:$0xff]
  %v4586 = vld [vmem:[%s4578 + $0x38] sm:$0xff]
  %v4587 = vld [vmem:[%s4578 + $0x40] sm:$0xff]
  %v4588 = vld [vmem:[%s4578 + $0x48] sm:$0xff]
  %v4590 = vsel %vm4196, %v4575, 0
  %4592 = vmatprep.subr.mxu0 0.0
  %4593 = vmatpush1.msra.mxu0 %v4579
  %4594 = vmatprep.subr.mxu0 0.0
  %4595 = vmatpush1.msra.mxu0 %v4580
  %4596 = vmatprep.subr.mxu0 0.0
  %4597 = vmatpush1.msra.mxu0 %v4581
  %4598 = vmatprep.subr.mxu0 0.0
  %4599 = vmatpush1.msra.mxu0 %v4582
  %4600 = vmatprep.subr.mxu0 0.0
  %4601 = vmatpush1.msra.mxu0 %v4583
  %4602 = vmatprep.subr.mxu0 0.0
  %4603 = vmatpush1.msra.mxu0 %v4584
  %4604 = vmatprep.subr.mxu0 0.0
  %4605 = vmatpush1.msra.mxu0 %v4585
  %4606 = vmatprep.subr.mxu0 0.0
  %4607 = vmatpush1.msra.mxu0 %v4586
  %4608 = vmatprep.subr.mxu0 0.0
  %4609 = vmatpush1.msra.mxu0 %v4587
  %4610 = vmatprep.subr.mxu0 0.0
  %4611 = vmatpush1.msra.mxu0 %v4588
  %4612 = vmatprep.subr.mxu0 0.0
  %4613 = vmatpush1.msra.mxu0 0.0
  %4614 = vmatprep.subr.mxu0 0.0
  %4615 = vmatpush1.msra.mxu0 0.0
  %4616 = vmatprep.subr.mxu0 0.0
  %4617 = vmatpush1.msra.mxu0 0.0
  %4618 = vmatprep.subr.mxu0 0.0
  %4619 = vmatpush1.msra.mxu0 0.0
  %4620 = vmatprep.subr.mxu0 0.0
  %4621 = vmatpush1.msra.mxu0 0.0
  %4622 = vmatprep.subr.mxu0 0.0
  %4623 = vmatpush1.msra.mxu0 0.0
  %4624 = vmatprep.subr.mxu0 0.0
  %4625 = vmatpush1.msra.mxu0 0.0
  %4626 = vmatprep.subr.mxu0 0.0
  %4627 = vmatpush1.msra.mxu0 0.0
  %4628 = vmatprep.subr.mxu0 0.0
  %4629 = vmatpush1.msra.mxu0 0.0
  %4630 = vmatprep.subr.mxu0 0.0
  %4631 = vmatpush1.msra.mxu0 0.0
  %4632 = vmatprep.subr.mxu0 0.0
  %4633 = vmatpush1.msra.mxu0 0.0
  %4634 = vmatprep.subr.mxu0 0.0
  %4635 = vmatpush1.msra.mxu0 0.0
  %4636 = vmatprep.subr.mxu0 0.0
  %4637 = vmatpush1.msra.mxu0 0.0
  %4638 = vmatprep.subr.mxu0 0.0
  %4639 = vmatpush1.msra.mxu0 0.0
  %4640 = vmatprep.subr.mxu0 0.0
  %4641 = vmatpush1.msra.mxu0 0.0
  %4642 = vmatprep.subr.mxu0 0.0
  %4643 = vmatpush1.msra.mxu0 0.0
  %4644 = vmatprep.subr.mxu0 0.0
  %4645 = vmatpush1.msra.mxu0 0.0
  %4646 = vmatprep.subr.mxu0 0.0
  %4647 = vmatpush1.msra.mxu0 0.0
  %4648 = vmatprep.subr.mxu0 0.0
  %4649 = vmatpush1.msra.mxu0 0.0
  %4650 = vmatprep.subr.mxu0 0.0
  %4651 = vmatpush1.msra.mxu0 0.0
  %4652 = vmatprep.subr.mxu0 0.0
  %4653 = vmatpush1.msra.mxu0 0.0
  %4654 = vmatprep.subr.mxu0 0.0
  %4655 = vmatpush1.msra.mxu0 0.0
  %4656 = vmatprep.mubr.f32.mxu0 0.0
  %4657 = vmatmul.mubr.f32.gmra.mrb[0].mxu0 %v4590
  %v4658 = vpop.f32.mrb[0].mxu0
  %v4659 = vadd.f32 0.0, %v4658
  %v4660 = vpop.f32.mrb[0].mxu0
  %4661 = vdwg.mxu0
  %v4662 = vadd.f32 %v4502, %v4659
  %v4663 = vld [vmem:[%s8] sm:$0x1]
  %v4665 = vlaneseq
  %v4666 = vshrl.u32 %v4665, 7
  %v4667 = vsub.s32 0, %v4666
  %v4668 = vrot.slane %v4663, %v4667
  %v4670 = vadd.f32 %v4662, %v4668
  %v4671 = vmax.f32 %v4670, 0.0
  %v4672 = vld [vmem:[%s9] sm:$0xff]
  %v4673 = vld [vmem:[%s9 + $0x8] sm:$0xff]
  %v4674 = vld [vmem:[%s9 + $0x10] sm:$0xff]
  %v4675 = vld [vmem:[%s9 + $0x18] sm:$0xff]
  %v4676 = vld [vmem:[%s9 + $0x20] sm:$0xff]
  %v4677 = vld [vmem:[%s9 + $0x28] sm:$0xff]
  %v4678 = vld [vmem:[%s9 + $0x30] sm:$0x3]
  %v4679 = vld [vmem:[%s10] sm:$0x1]
  %v4681 = vlaneseq
  %v4682 = vshrl.u32 %v4681, 7
  %v4683 = vsub.s32 0, %v4682
  %v4684 = vrot.slane %v4679, %v4683
  %vm4686 = vcmask 408576
  %v4688 = vsel %vm4686, %v4671, 0
  %vm4690 = vcmask 1041408
  %v4692 = vsel %vm4690, %v4678, 0
  %4694 = vmatprep.subr.mxu0 0.0
  %4695 = vmatpush1.msra.mxu0 %v4672
  %4696 = vmatprep.subr.mxu0 0.0
  %4697 = vmatpush1.msra.mxu0 %v4673
  %4698 = vmatprep.subr.mxu0 0.0
  %4699 = vmatpush1.msra.mxu0 %v4674
  %4700 = vmatprep.subr.mxu0 0.0
  %4701 = vmatpush1.msra.mxu0 %v4675
  %4702 = vmatprep.subr.mxu0 0.0
  %4703 = vmatpush1.msra.mxu0 %v4676
  %4704 = vmatprep.subr.mxu0 0.0
  %4705 = vmatpush1.msra.mxu0 %v4677
  %4706 = vmatprep.subr.mxu0 0.0
  %4707 = vmatpush1.msra.mxu0 %v4692
  %4708 = vmatprep.subr.mxu0 0.0
  %4709 = vmatpush1.msra.mxu0 0.0
  %4710 = vmatprep.subr.mxu0 0.0
  %4711 = vmatpush1.msra.mxu0 0.0
  %4712 = vmatprep.subr.mxu0 0.0
  %4713 = vmatpush1.msra.mxu0 0.0
  %4714 = vmatprep.subr.mxu0 0.0
  %4715 = vmatpush1.msra.mxu0 0.0
  %4716 = vmatprep.subr.mxu0 0.0
  %4717 = vmatpush1.msra.mxu0 0.0
  %4718 = vmatprep.subr.mxu0 0.0
  %4719 = vmatpush1.msra.mxu0 0.0
  %4720 = vmatprep.subr.mxu0 0.0
  %4721 = vmatpush1.msra.mxu0 0.0
  %4722 = vmatprep.subr.mxu0 0.0
  %4723 = vmatpush1.msra.mxu0 0.0
  %4724 = vmatprep.subr.mxu0 0.0
  %4725 = vmatpush1.msra.mxu0 0.0
  %4726 = vmatprep.subr.mxu0 0.0
  %4727 = vmatpush1.msra.mxu0 0.0
  %4728 = vmatprep.subr.mxu0 0.0
  %4729 = vmatpush1.msra.mxu0 0.0
  %4730 = vmatprep.subr.mxu0 0.0
  %4731 = vmatpush1.msra.mxu0 0.0
  %4732 = vmatprep.subr.mxu0 0.0
  %4733 = vmatpush1.msra.mxu0 0.0
  %4734 = vmatprep.subr.mxu0 0.0
  %4735 = vmatpush1.msra.mxu0 0.0
  %4736 = vmatprep.subr.mxu0 0.0
  %4737 = vmatpush1.msra.mxu0 0.0
  %4738 = vmatprep.subr.mxu0 0.0
  %4739 = vmatpush1.msra.mxu0 0.0
  %4740 = vmatprep.subr.mxu0 0.0
  %4741 = vmatpush1.msra.mxu0 0.0
  %4742 = vmatprep.subr.mxu0 0.0
  %4743 = vmatpush1.msra.mxu0 0.0
  %4744 = vmatprep.subr.mxu0 0.0
  %4745 = vmatpush1.msra.mxu0 0.0
  %4746 = vmatprep.subr.mxu0 0.0
  %4747 = vmatpush1.msra.mxu0 0.0
  %4748 = vmatprep.subr.mxu0 0.0
  %4749 = vmatpush1.msra.mxu0 0.0
  %4750 = vmatprep.subr.mxu0 0.0
  %4751 = vmatpush1.msra.mxu0 0.0
  %4752 = vmatprep.subr.mxu0 0.0
  %4753 = vmatpush1.msra.mxu0 0.0
  %4754 = vmatprep.subr.mxu0 0.0
  %4755 = vmatpush1.msra.mxu0 0.0
  %4756 = vmatprep.subr.mxu0 0.0
  %4757 = vmatpush1.msra.mxu0 0.0
  %4758 = vmatprep.mubr.f32.mxu0 0.0
  %4759 = vmatmul.mubr.f32.gmra.mrb[0].mxu0 %v4688
  %v4760 = vpop.f32.mrb[0].mxu0
  %v4761 = vadd.f32 %v4684, %v4760
  %v4762 = vpop.f32.mrb[0].mxu0
  %4763 = vdwg.mxu0
  %vm4764 = vcmask 80896
  %v4765 = vsel %vm4764, %v4761, -inf
  %4766 = vmax.xlane.f32.xlu0 %v4765
  %v4767 = vpop.xlane.xlu0 %4766
  %v4768 = vsub.f32 %v4761, %v4767
  %v4769 = vmul.f32 %v4768, 1.442695
  %v4770 = vpow.pop %v4769
  %v4771 = vsel %vm4764, %v4770, 0.0
  %4772 = vadd.xlane.f32.xlu0 %v4771
  %v4773 = vpop.xlane.xlu0 %4772
  %v4774 = vlog2.pop %v4773
  %v4775 = vmul.f32 %v4774, 0.6931472
  %v4776 = vsub.f32 %v4768, %v4775
  %4777 = vst.msk [vmem:[%s11] sm:$0xff] %vm4764, %v4776
  // Predicated region
  $region46: #{cnn_forward.1} parent=0 // pred_check
    _
  $region47: #{cnn_forward.1} parent=0 // pred_check_branch
    %4779 = sbr.rel (0) target = $region49
  $region48: #{cnn_forward.1} parent=0 // pred_region
    _
  $region49: #{cnn_forward.1} parent=0 // pred_fallthru
    _
  // Predicated region
  $region50: #{cnn_forward.1} parent=0 // pred_check
    _
  $region51: #{cnn_forward.1} parent=0 // pred_check_branch
    %4781 = sbr.rel (0) target = $region53
  $region52: #{cnn_forward.1} parent=0 // pred_region
    _
  $region53: #{cnn_forward.1} parent=0 // pred_fallthru
    _

</llo_original>
